<compile_context>
chip_gen: v6e
topology: v6e:2x2x1
jax: 0.10.0
libtpu: 0.0.40
codegen_flags: <defaults>
</compile_context>

<pallas_src>
import functools
import math

import jax
import jax.numpy as jnp
from jax.experimental import pallas as pl
from jax.experimental.pallas import tpu as pltpu

# ---------------- model hyper-parameters (small, consistent with module) ----
BATCH = 2
SEQ = 8
D_MODEL = 32          # input_size (must be divisible by num_heads)
NUM_HEADS = 8
HIDDEN = 64           # dim_feedforward (this module's default = 64)
NUM_LAYERS = 2
NUM_CLASSES = 10
LN_EPS = 1e-5

# Row layout of the per-layer packed vector slab: shape (8, 3*D_MODEL).
_ROW_BQKV = 0   # qkv bias            (cols [0, 3*D))
_ROW_B1 = 1     # linear1 bias        (cols [0, HIDDEN))
_ROW_BO = 2     # out-proj bias       (cols [0, D))
_ROW_B2 = 3     # linear2 bias        (cols [0, D))
_ROW_LN1W = 4   # LayerNorm1 weight   (cols [0, D))
_ROW_LN1B = 5   # LayerNorm1 bias
_ROW_LN2W = 6   # LayerNorm2 weight
_ROW_LN2B = 7   # LayerNorm2 bias


def _layer_norm(x, w, b):
    # PyTorch LayerNorm: biased variance over last dim, eps=1e-5.
    mean = jnp.mean(x, axis=-1, keepdims=True)
    var = jnp.mean(jnp.square(x - mean), axis=-1, keepdims=True)
    inv = jax.lax.rsqrt(var + LN_EPS)        # EUP rsqrt (idle slot), not VALU sqrt+div
    return (x - mean) * inv * w + b


def fused_transformer_kernel(x_ref,
                             wqkv_ref, wo_ref, w1_ref, w2_ref, vec_ref,
                             fcw_ref, fcb_ref,
                             out_ref,
                             attn_scr,
                             *, num_heads, num_layers, hidden):
    """Whole forward pass on a (B, S, D) block resident in VMEM."""
    B, S, D = x_ref.shape
    hd = D // num_heads
    scale = 1.0 / math.sqrt(hd)
    bf16 = jnp.bfloat16

    h = x_ref[...].reshape(B * S, D)          # token-major 2D activations, f32

    for layer in range(num_layers):           # static unroll over layers
        # Weights cast to bf16 once per layer: single-pass MXU ops, f32 accumulation.
        wqkv = wqkv_ref[layer].astype(bf16)   # (D, 3D)
        wo = wo_ref[layer].astype(bf16)       # (D, D)
        w1 = w1_ref[layer].astype(bf16)       # (D, HIDDEN)
        w2 = w2_ref[layer].astype(bf16)       # (HIDDEN, D)
        vec = vec_ref[layer]                  # (8, 3D) packed small vectors, f32

        b_qkv = vec[_ROW_BQKV:_ROW_BQKV + 1, :]
        b1 = vec[_ROW_B1:_ROW_B1 + 1, :hidden]
        bo = vec[_ROW_BO:_ROW_BO + 1, :D]
        b2 = vec[_ROW_B2:_ROW_B2 + 1, :D]
        ln1w = vec[_ROW_LN1W:_ROW_LN1W + 1, :D]
        ln1b = vec[_ROW_LN1B:_ROW_LN1B + 1, :D]
        ln2w = vec[_ROW_LN2W:_ROW_LN2W + 1, :D]
        ln2b = vec[_ROW_LN2B:_ROW_LN2B + 1, :D]

        # --- fused QKV projection: one MXU pass with N = 3D (f32 accumulate)
        qkv = jnp.dot(h.astype(bf16), wqkv,
                      preferred_element_type=jnp.float32) + b_qkv   # (B*S, 3D) f32

        # --- per-head scaled dot-product attention (static head unroll).
        # Each head's output is stored straight into a VMEM scratch slab; no concat.
        for hh in range(num_heads):
            lo, hi = hh * hd, (hh + 1) * hd
            qh = qkv[:, lo:hi].reshape(B, S, hd)
            kh = qkv[:, D + lo:D + hi].reshape(B, S, hd)
            vh = qkv[:, 2 * D + lo:2 * D + hi].reshape(B, S, hd)

            s = jnp.einsum('bqd,bkd->bqk', qh.astype(bf16), kh.astype(bf16),
                           preferred_element_type=jnp.float32) * scale
            m = jnp.max(s, axis=-1, keepdims=True)
            p = jnp.exp(s - m)
            denom = jnp.sum(p, axis=-1, keepdims=True)
            p = p * pl.reciprocal(denom, approx=True)               # EUP vrcp
            ho = jnp.einsum('bqk,bkd->bqd', p.astype(bf16), vh.astype(bf16),
                            preferred_element_type=jnp.float32)
            attn_scr[:, lo:hi] = ho.reshape(B * S, hd)

        # --- output projection + residual + LayerNorm1 (post-norm)
        attn = jnp.dot(attn_scr[...].astype(bf16), wo,
                       preferred_element_type=jnp.float32) + bo
        h1 = _layer_norm(h + attn, ln1w, ln1b)

        # --- feed-forward (ReLU) + residual + LayerNorm2
        ff = jnp.dot(h1.astype(bf16), w1,
                     preferred_element_type=jnp.float32) + b1
        ff = jnp.maximum(ff, 0.0)
        ff = jnp.dot(ff.astype(bf16), w2,
                     preferred_element_type=jnp.float32) + b2
        h = _layer_norm(h1 + ff, ln2w, ln2b)

    # --- last-token selection + final classifier, all in-kernel
    last = h.reshape(B, S, D)[:, S - 1:S, :].reshape(B, D)          # (B, D)
    out_ref[...] = (jnp.dot(last.astype(bf16), fcw_ref[...].astype(bf16),
                            preferred_element_type=jnp.float32) + fcb_ref[...])


def transformer_forward(x, params):
    """x: (B, S, D) float32 -> logits (B, NUM_CLASSES). Single fused pallas_call."""
    B, S, D = x.shape
    vmem = pl.BlockSpec(memory_space=pltpu.MemorySpace.VMEM)
    kernel = pl.pallas_call(
        functools.partial(fused_transformer_kernel,
                          num_heads=NUM_HEADS, num_layers=NUM_LAYERS,
                          hidden=HIDDEN),
        out_shape=jax.ShapeDtypeStruct((B, NUM_CLASSES), jnp.float32),
        in_specs=[vmem] * 8,
        out_specs=vmem,
        scratch_shapes=[pltpu.VMEM((B * S, D), jnp.float32)],
        cost_estimate=pl.CostEstimate(flops=560_000, transcendentals=2_200,
                                      bytes_accessed=80_000),
    )
    return kernel(x, params["wqkv"], params["wo"], params["w1"], params["w2"],
                  params["vecs"], params["fc_w"], params["fc_b"])


def init_params(key):
    """Deterministic synthetic parameters (shapes match the PyTorch module),
    stored pre-transposed (y = x @ W + b), stacked across layers, with all
    small bias / LayerNorm vectors packed into one (L, 8, 3D) slab."""
    def nrm(k, shape, scale=0.05):
        return scale * jax.random.normal(k, shape, dtype=jnp.float32)

    wqkv_l, wo_l, w1_l, w2_l, vec_l = [], [], [], [], []
    for _ in range(NUM_LAYERS):
        keys = jax.random.split(key, 9)
        key = keys[0]
        # MultiheadAttention in_proj split into q/k/v, fused along output dim.
        wq = nrm(keys[1], (D_MODEL, D_MODEL))
        wk = nrm(keys[2], (D_MODEL, D_MODEL))
        wv = nrm(keys[3], (D_MODEL, D_MODEL))
        wqkv = jnp.concatenate([wq, wk, wv], axis=1)          # (D, 3D)
        wo = nrm(keys[4], (D_MODEL, D_MODEL))
        # feed-forward: linear1 (D -> HIDDEN), linear2 (HIDDEN -> D)
        w1 = nrm(keys[5], (D_MODEL, HIDDEN))
        b1 = nrm(keys[6], (HIDDEN,), scale=0.01)
        w2 = nrm(keys[7], (HIDDEN, D_MODEL))
        b2 = nrm(keys[8], (D_MODEL,), scale=0.01)

        vec = jnp.zeros((8, 3 * D_MODEL), jnp.float32)
        # qkv bias, out-proj bias, LN biases = 0 (rows already zero)
        vec = vec.at[_ROW_B1, :HIDDEN].set(b1)
        vec = vec.at[_ROW_B2, :D_MODEL].set(b2)
        vec = vec.at[_ROW_LN1W, :D_MODEL].set(1.0)
        vec = vec.at[_ROW_LN2W, :D_MODEL].set(1.0)

        wqkv_l.append(wqkv)
        wo_l.append(wo)
        w1_l.append(w1)
        w2_l.append(w2)
        vec_l.append(vec)

    kf1, kf2 = jax.random.split(key)
    fc_w = nrm(kf1, (D_MODEL, NUM_CLASSES))
    fc_b = nrm(kf2, (1, NUM_CLASSES), scale=0.01)
    return {
        "wqkv": jnp.stack(wqkv_l),   # (L, D, 3D)
        "wo": jnp.stack(wo_l),       # (L, D, D)
        "w1": jnp.stack(w1_l),       # (L, D, HIDDEN)
        "w2": jnp.stack(w2_l),       # (L, HIDDEN, D)
        "vecs": jnp.stack(vec_l),    # (L, 8, 3D)
        "fc_w": fc_w,                # (D, C)
        "fc_b": fc_b,                # (1, C)
    }


if __name__ == "__main__":
    root = jax.random.PRNGKey(0)
    k_x, k_p = jax.random.split(root)
    x = jax.random.normal(k_x, (BATCH, SEQ, D_MODEL), dtype=jnp.float32)
    params = init_params(k_p)

    out = transformer_forward(x, params)
    out = jax.block_until_ready(out)
    assert out.shape == (BATCH, NUM_CLASSES)
    assert bool(jnp.all(jnp.isfinite(out)))
    print("KERNEL_OK")
</pallas_src>

<mosaic_0001>
module attributes {stable_mosaic.version = 11 : i64} {
  func.func @fused_transformer_kernel(%arg0: memref<2x8x32xf32, #tpu.memory_space<vmem>>, %arg1: memref<2x32x96xf32, #tpu.memory_space<vmem>>, %arg2: memref<2x32x32xf32, #tpu.memory_space<vmem>>, %arg3: memref<2x32x64xf32, #tpu.memory_space<vmem>>, %arg4: memref<2x64x32xf32, #tpu.memory_space<vmem>>, %arg5: memref<2x8x96xf32, #tpu.memory_space<vmem>>, %arg6: memref<32x10xf32, #tpu.memory_space<vmem>>, %arg7: memref<1x10xf32, #tpu.memory_space<vmem>>, %arg8: memref<2x10xf32, #tpu.memory_space<vmem>>, %arg9: memref<16x32xf32, #tpu.memory_space<vmem>>) attributes {dimension_semantics = [], scalar_prefetch = 0 : i64, scratch_operands = 1 : i64, tpu.core_type = #tpu.core_type<tc>} {
    %c0 = arith.constant 0 : index
    %c0_0 = arith.constant 0 : index
    %c0_1 = arith.constant 0 : index
    %0 = vector.load %arg0[%c0, %c0_0, %c0_1] : memref<2x8x32xf32, #tpu.memory_space<vmem>>, vector<2x8x32xf32>
    %1 = vector.shape_cast %0 : vector<2x8x32xf32> to vector<16x32xf32>
    %c0_2 = arith.constant 0 : index
    %c0_3 = arith.constant 0 : index
    %c0_4 = arith.constant 0 : index
    %2 = vector.load %arg1[%c0_2, %c0_3, %c0_4] : memref<2x32x96xf32, #tpu.memory_space<vmem>>, vector<1x32x96xf32>
    %3 = vector.shape_cast %2 : vector<1x32x96xf32> to vector<32x96xf32>
    %4 = arith.truncf %3 : vector<32x96xf32> to vector<32x96xbf16>
    %c0_5 = arith.constant 0 : index
    %c0_6 = arith.constant 0 : index
    %c0_7 = arith.constant 0 : index
    %5 = vector.load %arg2[%c0_5, %c0_6, %c0_7] : memref<2x32x32xf32, #tpu.memory_space<vmem>>, vector<1x32x32xf32>
    %6 = vector.shape_cast %5 : vector<1x32x32xf32> to vector<32x32xf32>
    %7 = arith.truncf %6 : vector<32x32xf32> to vector<32x32xbf16>
    %c0_8 = arith.constant 0 : index
    %c0_9 = arith.constant 0 : index
    %c0_10 = arith.constant 0 : index
    %8 = vector.load %arg3[%c0_8, %c0_9, %c0_10] : memref<2x32x64xf32, #tpu.memory_space<vmem>>, vector<1x32x64xf32>
    %9 = vector.shape_cast %8 : vector<1x32x64xf32> to vector<32x64xf32>
    %10 = arith.truncf %9 : vector<32x64xf32> to vector<32x64xbf16>
    %c0_11 = arith.constant 0 : index
    %c0_12 = arith.constant 0 : index
    %c0_13 = arith.constant 0 : index
    %11 = vector.load %arg4[%c0_11, %c0_12, %c0_13] : memref<2x64x32xf32, #tpu.memory_space<vmem>>, vector<1x64x32xf32>
    %12 = vector.shape_cast %11 : vector<1x64x32xf32> to vector<64x32xf32>
    %13 = arith.truncf %12 : vector<64x32xf32> to vector<64x32xbf16>
    %c0_14 = arith.constant 0 : index
    %c0_15 = arith.constant 0 : index
    %c0_16 = arith.constant 0 : index
    %14 = vector.load %arg5[%c0_14, %c0_15, %c0_16] : memref<2x8x96xf32, #tpu.memory_space<vmem>>, vector<1x8x96xf32>
    %15 = vector.shape_cast %14 : vector<1x8x96xf32> to vector<8x96xf32>
    %16 = vector.extract_strided_slice %15 {offsets = [0, 0], sizes = [1, 96], strides = [1, 1]} : vector<8x96xf32> to vector<1x96xf32>
    %17 = vector.extract_strided_slice %15 {offsets = [1, 0], sizes = [1, 64], strides = [1, 1]} : vector<8x96xf32> to vector<1x64xf32>
    %18 = vector.extract_strided_slice %15 {offsets = [2, 0], sizes = [1, 32], strides = [1, 1]} : vector<8x96xf32> to vector<1x32xf32>
    %19 = vector.extract_strided_slice %15 {offsets = [3, 0], sizes = [1, 32], strides = [1, 1]} : vector<8x96xf32> to vector<1x32xf32>
    %20 = vector.extract_strided_slice %15 {offsets = [4, 0], sizes = [1, 32], strides = [1, 1]} : vector<8x96xf32> to vector<1x32xf32>
    %21 = vector.extract_strided_slice %15 {offsets = [5, 0], sizes = [1, 32], strides = [1, 1]} : vector<8x96xf32> to vector<1x32xf32>
    %22 = vector.extract_strided_slice %15 {offsets = [6, 0], sizes = [1, 32], strides = [1, 1]} : vector<8x96xf32> to vector<1x32xf32>
    %23 = vector.extract_strided_slice %15 {offsets = [7, 0], sizes = [1, 32], strides = [1, 1]} : vector<8x96xf32> to vector<1x32xf32>
    %24 = arith.truncf %1 : vector<16x32xf32> to vector<16x32xbf16>
    %cst = arith.constant dense<0.000000e+00> : vector<16x96xf32>
    %25 = tpu.matmul %24, %4, %cst {dimension_numbers = #tpu.dot_dimension_numbers<[1], [0], [0], [1], [0, 0, 1, 1], [], []>} : vector<16x32xbf16>, vector<32x96xbf16>, vector<16x96xf32> -> vector<16x96xf32>
    %26 = vector.broadcast %16 : vector<1x96xf32> to vector<16x96xf32>
    %27 = arith.addf %25, %26 : vector<16x96xf32>
    %28 = vector.extract_strided_slice %27 {offsets = [0, 0], sizes = [16, 4], strides = [1, 1]} : vector<16x96xf32> to vector<16x4xf32>
    %29 = vector.shape_cast %28 : vector<16x4xf32> to vector<2x8x4xf32>
    %30 = vector.extract_strided_slice %27 {offsets = [0, 32], sizes = [16, 4], strides = [1, 1]} : vector<16x96xf32> to vector<16x4xf32>
    %31 = vector.shape_cast %30 : vector<16x4xf32> to vector<2x8x4xf32>
    %32 = vector.extract_strided_slice %27 {offsets = [0, 64], sizes = [16, 4], strides = [1, 1]} : vector<16x96xf32> to vector<16x4xf32>
    %33 = vector.shape_cast %32 : vector<16x4xf32> to vector<2x8x4xf32>
    %34 = arith.truncf %29 : vector<2x8x4xf32> to vector<2x8x4xbf16>
    %35 = arith.truncf %31 : vector<2x8x4xf32> to vector<2x8x4xbf16>
    "tpu.trace_start"() <{level = 10 : i32, message = "bqd,bkd->bqk"}> : () -> ()
    %cst_17 = arith.constant dense<0.000000e+00> : vector<2x8x8xf32>
    %36 = tpu.matmul %34, %35, %cst_17 {dimension_numbers = #tpu.dot_dimension_numbers<[2], [2], [1], [1], [0, 0, 0, 1, 1, 1], [0], [0]>} : vector<2x8x4xbf16>, vector<2x8x4xbf16>, vector<2x8x8xf32> -> vector<2x8x8xf32>
    "tpu.trace_stop"() : () -> ()
    %cst_18 = arith.constant 5.000000e-01 : f32
    %37 = vector.broadcast %cst_18 : f32 to vector<2x8x8xf32>
    %38 = arith.mulf %36, %37 : vector<2x8x8xf32>
    %cst_19 = arith.constant dense<0xFF800000> : vector<2x8xf32>
    %39 = vector.multi_reduction <maximumf>, %38, %cst_19 [2] : vector<2x8x8xf32> to vector<2x8xf32>
    %40 = vector.shape_cast %39 : vector<2x8xf32> to vector<2x8x1xf32>
    %41 = vector.broadcast %40 : vector<2x8x1xf32> to vector<2x8x8xf32>
    %42 = arith.subf %38, %41 : vector<2x8x8xf32>
    %43 = math.exp %42 : vector<2x8x8xf32>
    %cst_20 = arith.constant dense<0.000000e+00> : vector<2x8xf32>
    %44 = vector.multi_reduction <add>, %43, %cst_20 [2] : vector<2x8x8xf32> to vector<2x8xf32>
    %45 = vector.shape_cast %44 : vector<2x8xf32> to vector<2x8x1xf32>
    %46 = tpu.reciprocal %45 {approx = true} : vector<2x8x1xf32> -> vector<2x8x1xf32>
    %47 = vector.broadcast %46 : vector<2x8x1xf32> to vector<2x8x8xf32>
    %48 = arith.mulf %43, %47 : vector<2x8x8xf32>
    %49 = arith.truncf %48 : vector<2x8x8xf32> to vector<2x8x8xbf16>
    %50 = arith.truncf %33 : vector<2x8x4xf32> to vector<2x8x4xbf16>
    "tpu.trace_start"() <{level = 10 : i32, message = "bqk,bkd->bqd"}> : () -> ()
    %cst_21 = arith.constant dense<0.000000e+00> : vector<2x8x4xf32>
    %51 = tpu.matmul %49, %50, %cst_21 {dimension_numbers = #tpu.dot_dimension_numbers<[2], [1], [1], [2], [0, 0, 0, 1, 1, 2], [0], [0]>} : vector<2x8x8xbf16>, vector<2x8x4xbf16>, vector<2x8x4xf32> -> vector<2x8x4xf32>
    "tpu.trace_stop"() : () -> ()
    %52 = vector.shape_cast %51 : vector<2x8x4xf32> to vector<16x4xf32>
    %c0_22 = arith.constant 0 : index
    %c0_23 = arith.constant 0 : index
    %53 = vector.load %arg9[%c0_22, %c0_23] : memref<16x32xf32, #tpu.memory_space<vmem>>, vector<16x4xf32>
    tpu.vector_store %arg9[%c0_22, %c0_23], %52 {strides = array<i32>} : memref<16x32xf32, #tpu.memory_space<vmem>>, vector<16x4xf32>,
    %54 = vector.extract_strided_slice %27 {offsets = [0, 4], sizes = [16, 4], strides = [1, 1]} : vector<16x96xf32> to vector<16x4xf32>
    %55 = vector.shape_cast %54 : vector<16x4xf32> to vector<2x8x4xf32>
    %56 = vector.extract_strided_slice %27 {offsets = [0, 36], sizes = [16, 4], strides = [1, 1]} : vector<16x96xf32> to vector<16x4xf32>
    %57 = vector.shape_cast %56 : vector<16x4xf32> to vector<2x8x4xf32>
    %58 = vector.extract_strided_slice %27 {offsets = [0, 68], sizes = [16, 4], strides = [1, 1]} : vector<16x96xf32> to vector<16x4xf32>
    %59 = vector.shape_cast %58 : vector<16x4xf32> to vector<2x8x4xf32>
    %60 = arith.truncf %55 : vector<2x8x4xf32> to vector<2x8x4xbf16>
    %61 = arith.truncf %57 : vector<2x8x4xf32> to vector<2x8x4xbf16>
    "tpu.trace_start"() <{level = 10 : i32, message = "bqd,bkd->bqk"}> : () -> ()
    %cst_24 = arith.constant dense<0.000000e+00> : vector<2x8x8xf32>
    %62 = tpu.matmul %60, %61, %cst_24 {dimension_numbers = #tpu.dot_dimension_numbers<[2], [2], [1], [1], [0, 0, 0, 1, 1, 1], [0], [0]>} : vector<2x8x4xbf16>, vector<2x8x4xbf16>, vector<2x8x8xf32> -> vector<2x8x8xf32>
    "tpu.trace_stop"() : () -> ()
    %cst_25 = arith.constant 5.000000e-01 : f32
    %63 = vector.broadcast %cst_25 : f32 to vector<2x8x8xf32>
    %64 = arith.mulf %62, %63 : vector<2x8x8xf32>
    %cst_26 = arith.constant dense<0xFF800000> : vector<2x8xf32>
    %65 = vector.multi_reduction <maximumf>, %64, %cst_26 [2] : vector<2x8x8xf32> to vector<2x8xf32>
    %66 = vector.shape_cast %65 : vector<2x8xf32> to vector<2x8x1xf32>
    %67 = vector.broadcast %66 : vector<2x8x1xf32> to vector<2x8x8xf32>
    %68 = arith.subf %64, %67 : vector<2x8x8xf32>
    %69 = math.exp %68 : vector<2x8x8xf32>
    %cst_27 = arith.constant dense<0.000000e+00> : vector<2x8xf32>
    %70 = vector.multi_reduction <add>, %69, %cst_27 [2] : vector<2x8x8xf32> to vector<2x8xf32>
    %71 = vector.shape_cast %70 : vector<2x8xf32> to vector<2x8x1xf32>
    %72 = tpu.reciprocal %71 {approx = true} : vector<2x8x1xf32> -> vector<2x8x1xf32>
    %73 = vector.broadcast %72 : vector<2x8x1xf32> to vector<2x8x8xf32>
    %74 = arith.mulf %69, %73 : vector<2x8x8xf32>
    %75 = arith.truncf %74 : vector<2x8x8xf32> to vector<2x8x8xbf16>
    %76 = arith.truncf %59 : vector<2x8x4xf32> to vector<2x8x4xbf16>
    "tpu.trace_start"() <{level = 10 : i32, message = "bqk,bkd->bqd"}> : () -> ()
    %cst_28 = arith.constant dense<0.000000e+00> : vector<2x8x4xf32>
    %77 = tpu.matmul %75, %76, %cst_28 {dimension_numbers = #tpu.dot_dimension_numbers<[2], [1], [1], [2], [0, 0, 0, 1, 1, 2], [0], [0]>} : vector<2x8x8xbf16>, vector<2x8x4xbf16>, vector<2x8x4xf32> -> vector<2x8x4xf32>
    "tpu.trace_stop"() : () -> ()
    %78 = vector.shape_cast %77 : vector<2x8x4xf32> to vector<16x4xf32>
    %c0_29 = arith.constant 0 : index
    %c4 = arith.constant 4 : index
    %79 = vector.load %arg9[%c0_29, %c4] : memref<16x32xf32, #tpu.memory_space<vmem>>, vector<16x4xf32>
    tpu.vector_store %arg9[%c0_29, %c4], %78 {strides = array<i32>} : memref<16x32xf32, #tpu.memory_space<vmem>>, vector<16x4xf32>,
    %80 = vector.extract_strided_slice %27 {offsets = [0, 8], sizes = [16, 4], strides = [1, 1]} : vector<16x96xf32> to vector<16x4xf32>
    %81 = vector.shape_cast %80 : vector<16x4xf32> to vector<2x8x4xf32>
    %82 = vector.extract_strided_slice %27 {offsets = [0, 40], sizes = [16, 4], strides = [1, 1]} : vector<16x96xf32> to vector<16x4xf32>
    %83 = vector.shape_cast %82 : vector<16x4xf32> to vector<2x8x4xf32>
    %84 = vector.extract_strided_slice %27 {offsets = [0, 72], sizes = [16, 4], strides = [1, 1]} : vector<16x96xf32> to vector<16x4xf32>
    %85 = vector.shape_cast %84 : vector<16x4xf32> to vector<2x8x4xf32>
    %86 = arith.truncf %81 : vector<2x8x4xf32> to vector<2x8x4xbf16>
    %87 = arith.truncf %83 : vector<2x8x4xf32> to vector<2x8x4xbf16>
    "tpu.trace_start"() <{level = 10 : i32, message = "bqd,bkd->bqk"}> : () -> ()
    %cst_30 = arith.constant dense<0.000000e+00> : vector<2x8x8xf32>
    %88 = tpu.matmul %86, %87, %cst_30 {dimension_numbers = #tpu.dot_dimension_numbers<[2], [2], [1], [1], [0, 0, 0, 1, 1, 1], [0], [0]>} : vector<2x8x4xbf16>, vector<2x8x4xbf16>, vector<2x8x8xf32> -> vector<2x8x8xf32>
    "tpu.trace_stop"() : () -> ()
    %cst_31 = arith.constant 5.000000e-01 : f32
    %89 = vector.broadcast %cst_31 : f32 to vector<2x8x8xf32>
    %90 = arith.mulf %88, %89 : vector<2x8x8xf32>
    %cst_32 = arith.constant dense<0xFF800000> : vector<2x8xf32>
    %91 = vector.multi_reduction <maximumf>, %90, %cst_32 [2] : vector<2x8x8xf32> to vector<2x8xf32>
    %92 = vector.shape_cast %91 : vector<2x8xf32> to vector<2x8x1xf32>
    %93 = vector.broadcast %92 : vector<2x8x1xf32> to vector<2x8x8xf32>
    %94 = arith.subf %90, %93 : vector<2x8x8xf32>
    %95 = math.exp %94 : vector<2x8x8xf32>
    %cst_33 = arith.constant dense<0.000000e+00> : vector<2x8xf32>
    %96 = vector.multi_reduction <add>, %95, %cst_33 [2] : vector<2x8x8xf32> to vector<2x8xf32>
    %97 = vector.shape_cast %96 : vector<2x8xf32> to vector<2x8x1xf32>
    %98 = tpu.reciprocal %97 {approx = true} : vector<2x8x1xf32> -> vector<2x8x1xf32>
    %99 = vector.broadcast %98 : vector<2x8x1xf32> to vector<2x8x8xf32>
    %100 = arith.mulf %95, %99 : vector<2x8x8xf32>
    %101 = arith.truncf %100 : vector<2x8x8xf32> to vector<2x8x8xbf16>
    %102 = arith.truncf %85 : vector<2x8x4xf32> to vector<2x8x4xbf16>
    "tpu.trace_start"() <{level = 10 : i32, message = "bqk,bkd->bqd"}> : () -> ()
    %cst_34 = arith.constant dense<0.000000e+00> : vector<2x8x4xf32>
    %103 = tpu.matmul %101, %102, %cst_34 {dimension_numbers = #tpu.dot_dimension_numbers<[2], [1], [1], [2], [0, 0, 0, 1, 1, 2], [0], [0]>} : vector<2x8x8xbf16>, vector<2x8x4xbf16>, vector<2x8x4xf32> -> vector<2x8x4xf32>
    "tpu.trace_stop"() : () -> ()
    %104 = vector.shape_cast %103 : vector<2x8x4xf32> to vector<16x4xf32>
    %c0_35 = arith.constant 0 : index
    %c8 = arith.constant 8 : index
    %105 = vector.load %arg9[%c0_35, %c8] : memref<16x32xf32, #tpu.memory_space<vmem>>, vector<16x4xf32>
    tpu.vector_store %arg9[%c0_35, %c8], %104 {strides = array<i32>} : memref<16x32xf32, #tpu.memory_space<vmem>>, vector<16x4xf32>,
    %106 = vector.extract_strided_slice %27 {offsets = [0, 12], sizes = [16, 4], strides = [1, 1]} : vector<16x96xf32> to vector<16x4xf32>
    %107 = vector.shape_cast %106 : vector<16x4xf32> to vector<2x8x4xf32>
    %108 = vector.extract_strided_slice %27 {offsets = [0, 44], sizes = [16, 4], strides = [1, 1]} : vector<16x96xf32> to vector<16x4xf32>
    %109 = vector.shape_cast %108 : vector<16x4xf32> to vector<2x8x4xf32>
    %110 = vector.extract_strided_slice %27 {offsets = [0, 76], sizes = [16, 4], strides = [1, 1]} : vector<16x96xf32> to vector<16x4xf32>
    %111 = vector.shape_cast %110 : vector<16x4xf32> to vector<2x8x4xf32>
    %112 = arith.truncf %107 : vector<2x8x4xf32> to vector<2x8x4xbf16>
    %113 = arith.truncf %109 : vector<2x8x4xf32> to vector<2x8x4xbf16>
    "tpu.trace_start"() <{level = 10 : i32, message = "bqd,bkd->bqk"}> : () -> ()
    %cst_36 = arith.constant dense<0.000000e+00> : vector<2x8x8xf32>
    %114 = tpu.matmul %112, %113, %cst_36 {dimension_numbers = #tpu.dot_dimension_numbers<[2], [2], [1], [1], [0, 0, 0, 1, 1, 1], [0], [0]>} : vector<2x8x4xbf16>, vector<2x8x4xbf16>, vector<2x8x8xf32> -> vector<2x8x8xf32>
    "tpu.trace_stop"() : () -> ()
    %cst_37 = arith.constant 5.000000e-01 : f32
    %115 = vector.broadcast %cst_37 : f32 to vector<2x8x8xf32>
    %116 = arith.mulf %114, %115 : vector<2x8x8xf32>
    %cst_38 = arith.constant dense<0xFF800000> : vector<2x8xf32>
    %117 = vector.multi_reduction <maximumf>, %116, %cst_38 [2] : vector<2x8x8xf32> to vector<2x8xf32>
    %118 = vector.shape_cast %117 : vector<2x8xf32> to vector<2x8x1xf32>
    %119 = vector.broadcast %118 : vector<2x8x1xf32> to vector<2x8x8xf32>
    %120 = arith.subf %116, %119 : vector<2x8x8xf32>
    %121 = math.exp %120 : vector<2x8x8xf32>
    %cst_39 = arith.constant dense<0.000000e+00> : vector<2x8xf32>
    %122 = vector.multi_reduction <add>, %121, %cst_39 [2] : vector<2x8x8xf32> to vector<2x8xf32>
    %123 = vector.shape_cast %122 : vector<2x8xf32> to vector<2x8x1xf32>
    %124 = tpu.reciprocal %123 {approx = true} : vector<2x8x1xf32> -> vector<2x8x1xf32>
    %125 = vector.broadcast %124 : vector<2x8x1xf32> to vector<2x8x8xf32>
    %126 = arith.mulf %121, %125 : vector<2x8x8xf32>
    %127 = arith.truncf %126 : vector<2x8x8xf32> to vector<2x8x8xbf16>
    %128 = arith.truncf %111 : vector<2x8x4xf32> to vector<2x8x4xbf16>
    "tpu.trace_start"() <{level = 10 : i32, message = "bqk,bkd->bqd"}> : () -> ()
    %cst_40 = arith.constant dense<0.000000e+00> : vector<2x8x4xf32>
    %129 = tpu.matmul %127, %128, %cst_40 {dimension_numbers = #tpu.dot_dimension_numbers<[2], [1], [1], [2], [0, 0, 0, 1, 1, 2], [0], [0]>} : vector<2x8x8xbf16>, vector<2x8x4xbf16>, vector<2x8x4xf32> -> vector<2x8x4xf32>
    "tpu.trace_stop"() : () -> ()
    %130 = vector.shape_cast %129 : vector<2x8x4xf32> to vector<16x4xf32>
    %c0_41 = arith.constant 0 : index
    %c12 = arith.constant 12 : index
    %131 = vector.load %arg9[%c0_41, %c12] : memref<16x32xf32, #tpu.memory_space<vmem>>, vector<16x4xf32>
    tpu.vector_store %arg9[%c0_41, %c12], %130 {strides = array<i32>} : memref<16x32xf32, #tpu.memory_space<vmem>>, vector<16x4xf32>,
    %132 = vector.extract_strided_slice %27 {offsets = [0, 16], sizes = [16, 4], strides = [1, 1]} : vector<16x96xf32> to vector<16x4xf32>
    %133 = vector.shape_cast %132 : vector<16x4xf32> to vector<2x8x4xf32>
    %134 = vector.extract_strided_slice %27 {offsets = [0, 48], sizes = [16, 4], strides = [1, 1]} : vector<16x96xf32> to vector<16x4xf32>
    %135 = vector.shape_cast %134 : vector<16x4xf32> to vector<2x8x4xf32>
    %136 = vector.extract_strided_slice %27 {offsets = [0, 80], sizes = [16, 4], strides = [1, 1]} : vector<16x96xf32> to vector<16x4xf32>
    %137 = vector.shape_cast %136 : vector<16x4xf32> to vector<2x8x4xf32>
    %138 = arith.truncf %133 : vector<2x8x4xf32> to vector<2x8x4xbf16>
    %139 = arith.truncf %135 : vector<2x8x4xf32> to vector<2x8x4xbf16>
    "tpu.trace_start"() <{level = 10 : i32, message = "bqd,bkd->bqk"}> : () -> ()
    %cst_42 = arith.constant dense<0.000000e+00> : vector<2x8x8xf32>
    %140 = tpu.matmul %138, %139, %cst_42 {dimension_numbers = #tpu.dot_dimension_numbers<[2], [2], [1], [1], [0, 0, 0, 1, 1, 1], [0], [0]>} : vector<2x8x4xbf16>, vector<2x8x4xbf16>, vector<2x8x8xf32> -> vector<2x8x8xf32>
    "tpu.trace_stop"() : () -> ()
    %cst_43 = arith.constant 5.000000e-01 : f32
    %141 = vector.broadcast %cst_43 : f32 to vector<2x8x8xf32>
    %142 = arith.mulf %140, %141 : vector<2x8x8xf32>
    %cst_44 = arith.constant dense<0xFF800000> : vector<2x8xf32>
    %143 = vector.multi_reduction <maximumf>, %142, %cst_44 [2] : vector<2x8x8xf32> to vector<2x8xf32>
    %144 = vector.shape_cast %143 : vector<2x8xf32> to vector<2x8x1xf32>
    %145 = vector.broadcast %144 : vector<2x8x1xf32> to vector<2x8x8xf32>
    %146 = arith.subf %142, %145 : vector<2x8x8xf32>
    %147 = math.exp %146 : vector<2x8x8xf32>
    %cst_45 = arith.constant dense<0.000000e+00> : vector<2x8xf32>
    %148 = vector.multi_reduction <add>, %147, %cst_45 [2] : vector<2x8x8xf32> to vector<2x8xf32>
    %149 = vector.shape_cast %148 : vector<2x8xf32> to vector<2x8x1xf32>
    %150 = tpu.reciprocal %149 {approx = true} : vector<2x8x1xf32> -> vector<2x8x1xf32>
    %151 = vector.broadcast %150 : vector<2x8x1xf32> to vector<2x8x8xf32>
    %152 = arith.mulf %147, %151 : vector<2x8x8xf32>
    %153 = arith.truncf %152 : vector<2x8x8xf32> to vector<2x8x8xbf16>
    %154 = arith.truncf %137 : vector<2x8x4xf32> to vector<2x8x4xbf16>
    "tpu.trace_start"() <{level = 10 : i32, message = "bqk,bkd->bqd"}> : () -> ()
    %cst_46 = arith.constant dense<0.000000e+00> : vector<2x8x4xf32>
    %155 = tpu.matmul %153, %154, %cst_46 {dimension_numbers = #tpu.dot_dimension_numbers<[2], [1], [1], [2], [0, 0, 0, 1, 1, 2], [0], [0]>} : vector<2x8x8xbf16>, vector<2x8x4xbf16>, vector<2x8x4xf32> -> vector<2x8x4xf32>
    "tpu.trace_stop"() : () -> ()
    %156 = vector.shape_cast %155 : vector<2x8x4xf32> to vector<16x4xf32>
    %c0_47 = arith.constant 0 : index
    %c16 = arith.constant 16 : index
    %157 = vector.load %arg9[%c0_47, %c16] : memref<16x32xf32, #tpu.memory_space<vmem>>, vector<16x4xf32>
    tpu.vector_store %arg9[%c0_47, %c16], %156 {strides = array<i32>} : memref<16x32xf32, #tpu.memory_space<vmem>>, vector<16x4xf32>,
    %158 = vector.extract_strided_slice %27 {offsets = [0, 20], sizes = [16, 4], strides = [1, 1]} : vector<16x96xf32> to vector<16x4xf32>
    %159 = vector.shape_cast %158 : vector<16x4xf32> to vector<2x8x4xf32>
    %160 = vector.extract_strided_slice %27 {offsets = [0, 52], sizes = [16, 4], strides = [1, 1]} : vector<16x96xf32> to vector<16x4xf32>
    %161 = vector.shape_cast %160 : vector<16x4xf32> to vector<2x8x4xf32>
    %162 = vector.extract_strided_slice %27 {offsets = [0, 84], sizes = [16, 4], strides = [1, 1]} : vector<16x96xf32> to vector<16x4xf32>
    %163 = vector.shape_cast %162 : vector<16x4xf32> to vector<2x8x4xf32>
    %164 = arith.truncf %159 : vector<2x8x4xf32> to vector<2x8x4xbf16>
    %165 = arith.truncf %161 : vector<2x8x4xf32> to vector<2x8x4xbf16>
    "tpu.trace_start"() <{level = 10 : i32, message = "bqd,bkd->bqk"}> : () -> ()
    %cst_48 = arith.constant dense<0.000000e+00> : vector<2x8x8xf32>
    %166 = tpu.matmul %164, %165, %cst_48 {dimension_numbers = #tpu.dot_dimension_numbers<[2], [2], [1], [1], [0, 0, 0, 1, 1, 1], [0], [0]>} : vector<2x8x4xbf16>, vector<2x8x4xbf16>, vector<2x8x8xf32> -> vector<2x8x8xf32>
    "tpu.trace_stop"() : () -> ()
    %cst_49 = arith.constant 5.000000e-01 : f32
    %167 = vector.broadcast %cst_49 : f32 to vector<2x8x8xf32>
    %168 = arith.mulf %166, %167 : vector<2x8x8xf32>
    %cst_50 = arith.constant dense<0xFF800000> : vector<2x8xf32>
    %169 = vector.multi_reduction <maximumf>, %168, %cst_50 [2] : vector<2x8x8xf32> to vector<2x8xf32>
    %170 = vector.shape_cast %169 : vector<2x8xf32> to vector<2x8x1xf32>
    %171 = vector.broadcast %170 : vector<2x8x1xf32> to vector<2x8x8xf32>
    %172 = arith.subf %168, %171 : vector<2x8x8xf32>
    %173 = math.exp %172 : vector<2x8x8xf32>
    %cst_51 = arith.constant dense<0.000000e+00> : vector<2x8xf32>
    %174 = vector.multi_reduction <add>, %173, %cst_51 [2] : vector<2x8x8xf32> to vector<2x8xf32>
    %175 = vector.shape_cast %174 : vector<2x8xf32> to vector<2x8x1xf32>
    %176 = tpu.reciprocal %175 {approx = true} : vector<2x8x1xf32> -> vector<2x8x1xf32>
    %177 = vector.broadcast %176 : vector<2x8x1xf32> to vector<2x8x8xf32>
    %178 = arith.mulf %173, %177 : vector<2x8x8xf32>
    %179 = arith.truncf %178 : vector<2x8x8xf32> to vector<2x8x8xbf16>
    %180 = arith.truncf %163 : vector<2x8x4xf32> to vector<2x8x4xbf16>
    "tpu.trace_start"() <{level = 10 : i32, message = "bqk,bkd->bqd"}> : () -> ()
    %cst_52 = arith.constant dense<0.000000e+00> : vector<2x8x4xf32>
    %181 = tpu.matmul %179, %180, %cst_52 {dimension_numbers = #tpu.dot_dimension_numbers<[2], [1], [1], [2], [0, 0, 0, 1, 1, 2], [0], [0]>} : vector<2x8x8xbf16>, vector<2x8x4xbf16>, vector<2x8x4xf32> -> vector<2x8x4xf32>
    "tpu.trace_stop"() : () -> ()
    %182 = vector.shape_cast %181 : vector<2x8x4xf32> to vector<16x4xf32>
    %c0_53 = arith.constant 0 : index
    %c20 = arith.constant 20 : index
    %183 = vector.load %arg9[%c0_53, %c20] : memref<16x32xf32, #tpu.memory_space<vmem>>, vector<16x4xf32>
    tpu.vector_store %arg9[%c0_53, %c20], %182 {strides = array<i32>} : memref<16x32xf32, #tpu.memory_space<vmem>>, vector<16x4xf32>,
    %184 = vector.extract_strided_slice %27 {offsets = [0, 24], sizes = [16, 4], strides = [1, 1]} : vector<16x96xf32> to vector<16x4xf32>
    %185 = vector.shape_cast %184 : vector<16x4xf32> to vector<2x8x4xf32>
    %186 = vector.extract_strided_slice %27 {offsets = [0, 56], sizes = [16, 4], strides = [1, 1]} : vector<16x96xf32> to vector<16x4xf32>
    %187 = vector.shape_cast %186 : vector<16x4xf32> to vector<2x8x4xf32>
    %188 = vector.extract_strided_slice %27 {offsets = [0, 88], sizes = [16, 4], strides = [1, 1]} : vector<16x96xf32> to vector<16x4xf32>
    %189 = vector.shape_cast %188 : vector<16x4xf32> to vector<2x8x4xf32>
    %190 = arith.truncf %185 : vector<2x8x4xf32> to vector<2x8x4xbf16>
    %191 = arith.truncf %187 : vector<2x8x4xf32> to vector<2x8x4xbf16>
    "tpu.trace_start"() <{level = 10 : i32, message = "bqd,bkd->bqk"}> : () -> ()
    %cst_54 = arith.constant dense<0.000000e+00> : vector<2x8x8xf32>
    %192 = tpu.matmul %190, %191, %cst_54 {dimension_numbers = #tpu.dot_dimension_numbers<[2], [2], [1], [1], [0, 0, 0, 1, 1, 1], [0], [0]>} : vector<2x8x4xbf16>, vector<2x8x4xbf16>, vector<2x8x8xf32> -> vector<2x8x8xf32>
    "tpu.trace_stop"() : () -> ()
    %cst_55 = arith.constant 5.000000e-01 : f32
    %193 = vector.broadcast %cst_55 : f32 to vector<2x8x8xf32>
    %194 = arith.mulf %192, %193 : vector<2x8x8xf32>
    %cst_56 = arith.constant dense<0xFF800000> : vector<2x8xf32>
    %195 = vector.multi_reduction <maximumf>, %194, %cst_56 [2] : vector<2x8x8xf32> to vector<2x8xf32>
    %196 = vector.shape_cast %195 : vector<2x8xf32> to vector<2x8x1xf32>
    %197 = vector.broadcast %196 : vector<2x8x1xf32> to vector<2x8x8xf32>
    %198 = arith.subf %194, %197 : vector<2x8x8xf32>
    %199 = math.exp %198 : vector<2x8x8xf32>
    %cst_57 = arith.constant dense<0.000000e+00> : vector<2x8xf32>
    %200 = vector.multi_reduction <add>, %199, %cst_57 [2] : vector<2x8x8xf32> to vector<2x8xf32>
    %201 = vector.shape_cast %200 : vector<2x8xf32> to vector<2x8x1xf32>
    %202 = tpu.reciprocal %201 {approx = true} : vector<2x8x1xf32> -> vector<2x8x1xf32>
    %203 = vector.broadcast %202 : vector<2x8x1xf32> to vector<2x8x8xf32>
    %204 = arith.mulf %199, %203 : vector<2x8x8xf32>
    %205 = arith.truncf %204 : vector<2x8x8xf32> to vector<2x8x8xbf16>
    %206 = arith.truncf %189 : vector<2x8x4xf32> to vector<2x8x4xbf16>
    "tpu.trace_start"() <{level = 10 : i32, message = "bqk,bkd->bqd"}> : () -> ()
    %cst_58 = arith.constant dense<0.000000e+00> : vector<2x8x4xf32>
    %207 = tpu.matmul %205, %206, %cst_58 {dimension_numbers = #tpu.dot_dimension_numbers<[2], [1], [1], [2], [0, 0, 0, 1, 1, 2], [0], [0]>} : vector<2x8x8xbf16>, vector<2x8x4xbf16>, vector<2x8x4xf32> -> vector<2x8x4xf32>
    "tpu.trace_stop"() : () -> ()
    %208 = vector.shape_cast %207 : vector<2x8x4xf32> to vector<16x4xf32>
    %c0_59 = arith.constant 0 : index
    %c24 = arith.constant 24 : index
    %209 = vector.load %arg9[%c0_59, %c24] : memref<16x32xf32, #tpu.memory_space<vmem>>, vector<16x4xf32>
    tpu.vector_store %arg9[%c0_59, %c24], %208 {strides = array<i32>} : memref<16x32xf32, #tpu.memory_space<vmem>>, vector<16x4xf32>,
    %210 = vector.extract_strided_slice %27 {offsets = [0, 28], sizes = [16, 4], strides = [1, 1]} : vector<16x96xf32> to vector<16x4xf32>
    %211 = vector.shape_cast %210 : vector<16x4xf32> to vector<2x8x4xf32>
    %212 = vector.extract_strided_slice %27 {offsets = [0, 60], sizes = [16, 4], strides = [1, 1]} : vector<16x96xf32> to vector<16x4xf32>
    %213 = vector.shape_cast %212 : vector<16x4xf32> to vector<2x8x4xf32>
    %214 = vector.extract_strided_slice %27 {offsets = [0, 92], sizes = [16, 4], strides = [1, 1]} : vector<16x96xf32> to vector<16x4xf32>
    %215 = vector.shape_cast %214 : vector<16x4xf32> to vector<2x8x4xf32>
    %216 = arith.truncf %211 : vector<2x8x4xf32> to vector<2x8x4xbf16>
    %217 = arith.truncf %213 : vector<2x8x4xf32> to vector<2x8x4xbf16>
    "tpu.trace_start"() <{level = 10 : i32, message = "bqd,bkd->bqk"}> : () -> ()
    %cst_60 = arith.constant dense<0.000000e+00> : vector<2x8x8xf32>
    %218 = tpu.matmul %216, %217, %cst_60 {dimension_numbers = #tpu.dot_dimension_numbers<[2], [2], [1], [1], [0, 0, 0, 1, 1, 1], [0], [0]>} : vector<2x8x4xbf16>, vector<2x8x4xbf16>, vector<2x8x8xf32> -> vector<2x8x8xf32>
    "tpu.trace_stop"() : () -> ()
    %cst_61 = arith.constant 5.000000e-01 : f32
    %219 = vector.broadcast %cst_61 : f32 to vector<2x8x8xf32>
    %220 = arith.mulf %218, %219 : vector<2x8x8xf32>
    %cst_62 = arith.constant dense<0xFF800000> : vector<2x8xf32>
    %221 = vector.multi_reduction <maximumf>, %220, %cst_62 [2] : vector<2x8x8xf32> to vector<2x8xf32>
    %222 = vector.shape_cast %221 : vector<2x8xf32> to vector<2x8x1xf32>
    %223 = vector.broadcast %222 : vector<2x8x1xf32> to vector<2x8x8xf32>
    %224 = arith.subf %220, %223 : vector<2x8x8xf32>
    %225 = math.exp %224 : vector<2x8x8xf32>
    %cst_63 = arith.constant dense<0.000000e+00> : vector<2x8xf32>
    %226 = vector.multi_reduction <add>, %225, %cst_63 [2] : vector<2x8x8xf32> to vector<2x8xf32>
    %227 = vector.shape_cast %226 : vector<2x8xf32> to vector<2x8x1xf32>
    %228 = tpu.reciprocal %227 {approx = true} : vector<2x8x1xf32> -> vector<2x8x1xf32>
    %229 = vector.broadcast %228 : vector<2x8x1xf32> to vector<2x8x8xf32>
    %230 = arith.mulf %225, %229 : vector<2x8x8xf32>
    %231 = arith.truncf %230 : vector<2x8x8xf32> to vector<2x8x8xbf16>
    %232 = arith.truncf %215 : vector<2x8x4xf32> to vector<2x8x4xbf16>
    "tpu.trace_start"() <{level = 10 : i32, message = "bqk,bkd->bqd"}> : () -> ()
    %cst_64 = arith.constant dense<0.000000e+00> : vector<2x8x4xf32>
    %233 = tpu.matmul %231, %232, %cst_64 {dimension_numbers = #tpu.dot_dimension_numbers<[2], [1], [1], [2], [0, 0, 0, 1, 1, 2], [0], [0]>} : vector<2x8x8xbf16>, vector<2x8x4xbf16>, vector<2x8x4xf32> -> vector<2x8x4xf32>
    "tpu.trace_stop"() : () -> ()
    %234 = vector.shape_cast %233 : vector<2x8x4xf32> to vector<16x4xf32>
    %c0_65 = arith.constant 0 : index
    %c28 = arith.constant 28 : index
    %235 = vector.load %arg9[%c0_65, %c28] : memref<16x32xf32, #tpu.memory_space<vmem>>, vector<16x4xf32>
    tpu.vector_store %arg9[%c0_65, %c28], %234 {strides = array<i32>} : memref<16x32xf32, #tpu.memory_space<vmem>>, vector<16x4xf32>,
    %c0_66 = arith.constant 0 : index
    %c0_67 = arith.constant 0 : index
    %236 = vector.load %arg9[%c0_66, %c0_67] : memref<16x32xf32, #tpu.memory_space<vmem>>, vector<16x32xf32>
    %237 = arith.truncf %236 : vector<16x32xf32> to vector<16x32xbf16>
    %cst_68 = arith.constant dense<0.000000e+00> : vector<16x32xf32>
    %238 = tpu.matmul %237, %7, %cst_68 {dimension_numbers = #tpu.dot_dimension_numbers<[1], [0], [0], [1], [0, 0, 1, 1], [], []>} : vector<16x32xbf16>, vector<32x32xbf16>, vector<16x32xf32> -> vector<16x32xf32>
    %239 = vector.broadcast %18 : vector<1x32xf32> to vector<16x32xf32>
    %240 = arith.addf %238, %239 : vector<16x32xf32>
    %241 = arith.addf %1, %240 : vector<16x32xf32>
    %cst_69 = arith.constant dense<0.000000e+00> : vector<16xf32>
    %242 = vector.multi_reduction <add>, %241, %cst_69 [1] : vector<16x32xf32> to vector<16xf32>
    %243 = vector.shape_cast %242 : vector<16xf32> to vector<16x1xf32>
    %cst_70 = arith.constant 3.200000e+01 : f32
    %244 = vector.broadcast %cst_70 : f32 to vector<16x1xf32>
    %245 = arith.divf %243, %244 : vector<16x1xf32>
    %246 = vector.broadcast %245 : vector<16x1xf32> to vector<16x32xf32>
    %247 = arith.subf %241, %246 : vector<16x32xf32>
    %248 = arith.mulf %247, %247 : vector<16x32xf32>
    %cst_71 = arith.constant dense<0.000000e+00> : vector<16xf32>
    %249 = vector.multi_reduction <add>, %248, %cst_71 [1] : vector<16x32xf32> to vector<16xf32>
    %250 = vector.shape_cast %249 : vector<16xf32> to vector<16x1xf32>
    %cst_72 = arith.constant 3.200000e+01 : f32
    %251 = vector.broadcast %cst_72 : f32 to vector<16x1xf32>
    %252 = arith.divf %250, %251 : vector<16x1xf32>
    %cst_73 = arith.constant 9.99999974E-6 : f32
    %253 = vector.broadcast %cst_73 : f32 to vector<16x1xf32>
    %254 = arith.addf %252, %253 : vector<16x1xf32>
    %255 = math.rsqrt %254 : vector<16x1xf32>
    %256 = vector.broadcast %245 : vector<16x1xf32> to vector<16x32xf32>
    %257 = arith.subf %241, %256 : vector<16x32xf32>
    %258 = vector.broadcast %255 : vector<16x1xf32> to vector<16x32xf32>
    %259 = arith.mulf %257, %258 : vector<16x32xf32>
    %260 = vector.broadcast %20 : vector<1x32xf32> to vector<16x32xf32>
    %261 = arith.mulf %259, %260 : vector<16x32xf32>
    %262 = vector.broadcast %21 : vector<1x32xf32> to vector<16x32xf32>
    %263 = arith.addf %261, %262 : vector<16x32xf32>
    %264 = arith.truncf %263 : vector<16x32xf32> to vector<16x32xbf16>
    %cst_74 = arith.constant dense<0.000000e+00> : vector<16x64xf32>
    %265 = tpu.matmul %264, %10, %cst_74 {dimension_numbers = #tpu.dot_dimension_numbers<[1], [0], [0], [1], [0, 0, 1, 1], [], []>} : vector<16x32xbf16>, vector<32x64xbf16>, vector<16x64xf32> -> vector<16x64xf32>
    %266 = vector.broadcast %17 : vector<1x64xf32> to vector<16x64xf32>
    %267 = arith.addf %265, %266 : vector<16x64xf32>
    %cst_75 = arith.constant 0.000000e+00 : f32
    %268 = vector.broadcast %cst_75 : f32 to vector<16x64xf32>
    %269 = arith.maximumf %267, %268 : vector<16x64xf32>
    %270 = arith.truncf %269 : vector<16x64xf32> to vector<16x64xbf16>
    %cst_76 = arith.constant dense<0.000000e+00> : vector<16x32xf32>
    %271 = tpu.matmul %270, %13, %cst_76 {dimension_numbers = #tpu.dot_dimension_numbers<[1], [0], [0], [1], [0, 0, 1, 1], [], []>} : vector<16x64xbf16>, vector<64x32xbf16>, vector<16x32xf32> -> vector<16x32xf32>
    %272 = vector.broadcast %19 : vector<1x32xf32> to vector<16x32xf32>
    %273 = arith.addf %271, %272 : vector<16x32xf32>
    %274 = arith.addf %263, %273 : vector<16x32xf32>
    %cst_77 = arith.constant dense<0.000000e+00> : vector<16xf32>
    %275 = vector.multi_reduction <add>, %274, %cst_77 [1] : vector<16x32xf32> to vector<16xf32>
    %276 = vector.shape_cast %275 : vector<16xf32> to vector<16x1xf32>
    %cst_78 = arith.constant 3.200000e+01 : f32
    %277 = vector.broadcast %cst_78 : f32 to vector<16x1xf32>
    %278 = arith.divf %276, %277 : vector<16x1xf32>
    %279 = vector.broadcast %278 : vector<16x1xf32> to vector<16x32xf32>
    %280 = arith.subf %274, %279 : vector<16x32xf32>
    %281 = arith.mulf %280, %280 : vector<16x32xf32>
    %cst_79 = arith.constant dense<0.000000e+00> : vector<16xf32>
    %282 = vector.multi_reduction <add>, %281, %cst_79 [1] : vector<16x32xf32> to vector<16xf32>
    %283 = vector.shape_cast %282 : vector<16xf32> to vector<16x1xf32>
    %cst_80 = arith.constant 3.200000e+01 : f32
    %284 = vector.broadcast %cst_80 : f32 to vector<16x1xf32>
    %285 = arith.divf %283, %284 : vector<16x1xf32>
    %cst_81 = arith.constant 9.99999974E-6 : f32
    %286 = vector.broadcast %cst_81 : f32 to vector<16x1xf32>
    %287 = arith.addf %285, %286 : vector<16x1xf32>
    %288 = math.rsqrt %287 : vector<16x1xf32>
    %289 = vector.broadcast %278 : vector<16x1xf32> to vector<16x32xf32>
    %290 = arith.subf %274, %289 : vector<16x32xf32>
    %291 = vector.broadcast %288 : vector<16x1xf32> to vector<16x32xf32>
    %292 = arith.mulf %290, %291 : vector<16x32xf32>
    %293 = vector.broadcast %22 : vector<1x32xf32> to vector<16x32xf32>
    %294 = arith.mulf %292, %293 : vector<16x32xf32>
    %295 = vector.broadcast %23 : vector<1x32xf32> to vector<16x32xf32>
    %296 = arith.addf %294, %295 : vector<16x32xf32>
    %c1 = arith.constant 1 : index
    %c0_82 = arith.constant 0 : index
    %c0_83 = arith.constant 0 : index
    %297 = vector.load %arg1[%c1, %c0_82, %c0_83] : memref<2x32x96xf32, #tpu.memory_space<vmem>>, vector<1x32x96xf32>
    %298 = vector.shape_cast %297 : vector<1x32x96xf32> to vector<32x96xf32>
    %299 = arith.truncf %298 : vector<32x96xf32> to vector<32x96xbf16>
    %c1_84 = arith.constant 1 : index
    %c0_85 = arith.constant 0 : index
    %c0_86 = arith.constant 0 : index
    %300 = vector.load %arg2[%c1_84, %c0_85, %c0_86] : memref<2x32x32xf32, #tpu.memory_space<vmem>>, vector<1x32x32xf32>
    %301 = vector.shape_cast %300 : vector<1x32x32xf32> to vector<32x32xf32>
    %302 = arith.truncf %301 : vector<32x32xf32> to vector<32x32xbf16>
    %c1_87 = arith.constant 1 : index
    %c0_88 = arith.constant 0 : index
    %c0_89 = arith.constant 0 : index
    %303 = vector.load %arg3[%c1_87, %c0_88, %c0_89] : memref<2x32x64xf32, #tpu.memory_space<vmem>>, vector<1x32x64xf32>
    %304 = vector.shape_cast %303 : vector<1x32x64xf32> to vector<32x64xf32>
    %305 = arith.truncf %304 : vector<32x64xf32> to vector<32x64xbf16>
    %c1_90 = arith.constant 1 : index
    %c0_91 = arith.constant 0 : index
    %c0_92 = arith.constant 0 : index
    %306 = vector.load %arg4[%c1_90, %c0_91, %c0_92] : memref<2x64x32xf32, #tpu.memory_space<vmem>>, vector<1x64x32xf32>
    %307 = vector.shape_cast %306 : vector<1x64x32xf32> to vector<64x32xf32>
    %308 = arith.truncf %307 : vector<64x32xf32> to vector<64x32xbf16>
    %c1_93 = arith.constant 1 : index
    %c0_94 = arith.constant 0 : index
    %c0_95 = arith.constant 0 : index
    %309 = vector.load %arg5[%c1_93, %c0_94, %c0_95] : memref<2x8x96xf32, #tpu.memory_space<vmem>>, vector<1x8x96xf32>
    %310 = vector.shape_cast %309 : vector<1x8x96xf32> to vector<8x96xf32>
    %311 = vector.extract_strided_slice %310 {offsets = [0, 0], sizes = [1, 96], strides = [1, 1]} : vector<8x96xf32> to vector<1x96xf32>
    %312 = vector.extract_strided_slice %310 {offsets = [1, 0], sizes = [1, 64], strides = [1, 1]} : vector<8x96xf32> to vector<1x64xf32>
    %313 = vector.extract_strided_slice %310 {offsets = [2, 0], sizes = [1, 32], strides = [1, 1]} : vector<8x96xf32> to vector<1x32xf32>
    %314 = vector.extract_strided_slice %310 {offsets = [3, 0], sizes = [1, 32], strides = [1, 1]} : vector<8x96xf32> to vector<1x32xf32>
    %315 = vector.extract_strided_slice %310 {offsets = [4, 0], sizes = [1, 32], strides = [1, 1]} : vector<8x96xf32> to vector<1x32xf32>
    %316 = vector.extract_strided_slice %310 {offsets = [5, 0], sizes = [1, 32], strides = [1, 1]} : vector<8x96xf32> to vector<1x32xf32>
    %317 = vector.extract_strided_slice %310 {offsets = [6, 0], sizes = [1, 32], strides = [1, 1]} : vector<8x96xf32> to vector<1x32xf32>
    %318 = vector.extract_strided_slice %310 {offsets = [7, 0], sizes = [1, 32], strides = [1, 1]} : vector<8x96xf32> to vector<1x32xf32>
    %319 = arith.truncf %296 : vector<16x32xf32> to vector<16x32xbf16>
    %cst_96 = arith.constant dense<0.000000e+00> : vector<16x96xf32>
    %320 = tpu.matmul %319, %299, %cst_96 {dimension_numbers = #tpu.dot_dimension_numbers<[1], [0], [0], [1], [0, 0, 1, 1], [], []>} : vector<16x32xbf16>, vector<32x96xbf16>, vector<16x96xf32> -> vector<16x96xf32>
    %321 = vector.broadcast %311 : vector<1x96xf32> to vector<16x96xf32>
    %322 = arith.addf %320, %321 : vector<16x96xf32>
    %323 = vector.extract_strided_slice %322 {offsets = [0, 0], sizes = [16, 4], strides = [1, 1]} : vector<16x96xf32> to vector<16x4xf32>
    %324 = vector.shape_cast %323 : vector<16x4xf32> to vector<2x8x4xf32>
    %325 = vector.extract_strided_slice %322 {offsets = [0, 32], sizes = [16, 4], strides = [1, 1]} : vector<16x96xf32> to vector<16x4xf32>
    %326 = vector.shape_cast %325 : vector<16x4xf32> to vector<2x8x4xf32>
    %327 = vector.extract_strided_slice %322 {offsets = [0, 64], sizes = [16, 4], strides = [1, 1]} : vector<16x96xf32> to vector<16x4xf32>
    %328 = vector.shape_cast %327 : vector<16x4xf32> to vector<2x8x4xf32>
    %329 = arith.truncf %324 : vector<2x8x4xf32> to vector<2x8x4xbf16>
    %330 = arith.truncf %326 : vector<2x8x4xf32> to vector<2x8x4xbf16>
    "tpu.trace_start"() <{level = 10 : i32, message = "bqd,bkd->bqk"}> : () -> ()
    %cst_97 = arith.constant dense<0.000000e+00> : vector<2x8x8xf32>
    %331 = tpu.matmul %329, %330, %cst_97 {dimension_numbers = #tpu.dot_dimension_numbers<[2], [2], [1], [1], [0, 0, 0, 1, 1, 1], [0], [0]>} : vector<2x8x4xbf16>, vector<2x8x4xbf16>, vector<2x8x8xf32> -> vector<2x8x8xf32>
    "tpu.trace_stop"() : () -> ()
    %cst_98 = arith.constant 5.000000e-01 : f32
    %332 = vector.broadcast %cst_98 : f32 to vector<2x8x8xf32>
    %333 = arith.mulf %331, %332 : vector<2x8x8xf32>
    %cst_99 = arith.constant dense<0xFF800000> : vector<2x8xf32>
    %334 = vector.multi_reduction <maximumf>, %333, %cst_99 [2] : vector<2x8x8xf32> to vector<2x8xf32>
    %335 = vector.shape_cast %334 : vector<2x8xf32> to vector<2x8x1xf32>
    %336 = vector.broadcast %335 : vector<2x8x1xf32> to vector<2x8x8xf32>
    %337 = arith.subf %333, %336 : vector<2x8x8xf32>
    %338 = math.exp %337 : vector<2x8x8xf32>
    %cst_100 = arith.constant dense<0.000000e+00> : vector<2x8xf32>
    %339 = vector.multi_reduction <add>, %338, %cst_100 [2] : vector<2x8x8xf32> to vector<2x8xf32>
    %340 = vector.shape_cast %339 : vector<2x8xf32> to vector<2x8x1xf32>
    %341 = tpu.reciprocal %340 {approx = true} : vector<2x8x1xf32> -> vector<2x8x1xf32>
    %342 = vector.broadcast %341 : vector<2x8x1xf32> to vector<2x8x8xf32>
    %343 = arith.mulf %338, %342 : vector<2x8x8xf32>
    %344 = arith.truncf %343 : vector<2x8x8xf32> to vector<2x8x8xbf16>
    %345 = arith.truncf %328 : vector<2x8x4xf32> to vector<2x8x4xbf16>
    "tpu.trace_start"() <{level = 10 : i32, message = "bqk,bkd->bqd"}> : () -> ()
    %cst_101 = arith.constant dense<0.000000e+00> : vector<2x8x4xf32>
    %346 = tpu.matmul %344, %345, %cst_101 {dimension_numbers = #tpu.dot_dimension_numbers<[2], [1], [1], [2], [0, 0, 0, 1, 1, 2], [0], [0]>} : vector<2x8x8xbf16>, vector<2x8x4xbf16>, vector<2x8x4xf32> -> vector<2x8x4xf32>
    "tpu.trace_stop"() : () -> ()
    %347 = vector.shape_cast %346 : vector<2x8x4xf32> to vector<16x4xf32>
    %c0_102 = arith.constant 0 : index
    %c0_103 = arith.constant 0 : index
    %348 = vector.load %arg9[%c0_102, %c0_103] : memref<16x32xf32, #tpu.memory_space<vmem>>, vector<16x4xf32>
    tpu.vector_store %arg9[%c0_102, %c0_103], %347 {strides = array<i32>} : memref<16x32xf32, #tpu.memory_space<vmem>>, vector<16x4xf32>,
    %349 = vector.extract_strided_slice %322 {offsets = [0, 4], sizes = [16, 4], strides = [1, 1]} : vector<16x96xf32> to vector<16x4xf32>
    %350 = vector.shape_cast %349 : vector<16x4xf32> to vector<2x8x4xf32>
    %351 = vector.extract_strided_slice %322 {offsets = [0, 36], sizes = [16, 4], strides = [1, 1]} : vector<16x96xf32> to vector<16x4xf32>
    %352 = vector.shape_cast %351 : vector<16x4xf32> to vector<2x8x4xf32>
    %353 = vector.extract_strided_slice %322 {offsets = [0, 68], sizes = [16, 4], strides = [1, 1]} : vector<16x96xf32> to vector<16x4xf32>
    %354 = vector.shape_cast %353 : vector<16x4xf32> to vector<2x8x4xf32>
    %355 = arith.truncf %350 : vector<2x8x4xf32> to vector<2x8x4xbf16>
    %356 = arith.truncf %352 : vector<2x8x4xf32> to vector<2x8x4xbf16>
    "tpu.trace_start"() <{level = 10 : i32, message = "bqd,bkd->bqk"}> : () -> ()
    %cst_104 = arith.constant dense<0.000000e+00> : vector<2x8x8xf32>
    %357 = tpu.matmul %355, %356, %cst_104 {dimension_numbers = #tpu.dot_dimension_numbers<[2], [2], [1], [1], [0, 0, 0, 1, 1, 1], [0], [0]>} : vector<2x8x4xbf16>, vector<2x8x4xbf16>, vector<2x8x8xf32> -> vector<2x8x8xf32>
    "tpu.trace_stop"() : () -> ()
    %cst_105 = arith.constant 5.000000e-01 : f32
    %358 = vector.broadcast %cst_105 : f32 to vector<2x8x8xf32>
    %359 = arith.mulf %357, %358 : vector<2x8x8xf32>
    %cst_106 = arith.constant dense<0xFF800000> : vector<2x8xf32>
    %360 = vector.multi_reduction <maximumf>, %359, %cst_106 [2] : vector<2x8x8xf32> to vector<2x8xf32>
    %361 = vector.shape_cast %360 : vector<2x8xf32> to vector<2x8x1xf32>
    %362 = vector.broadcast %361 : vector<2x8x1xf32> to vector<2x8x8xf32>
    %363 = arith.subf %359, %362 : vector<2x8x8xf32>
    %364 = math.exp %363 : vector<2x8x8xf32>
    %cst_107 = arith.constant dense<0.000000e+00> : vector<2x8xf32>
    %365 = vector.multi_reduction <add>, %364, %cst_107 [2] : vector<2x8x8xf32> to vector<2x8xf32>
    %366 = vector.shape_cast %365 : vector<2x8xf32> to vector<2x8x1xf32>
    %367 = tpu.reciprocal %366 {approx = true} : vector<2x8x1xf32> -> vector<2x8x1xf32>
    %368 = vector.broadcast %367 : vector<2x8x1xf32> to vector<2x8x8xf32>
    %369 = arith.mulf %364, %368 : vector<2x8x8xf32>
    %370 = arith.truncf %369 : vector<2x8x8xf32> to vector<2x8x8xbf16>
    %371 = arith.truncf %354 : vector<2x8x4xf32> to vector<2x8x4xbf16>
    "tpu.trace_start"() <{level = 10 : i32, message = "bqk,bkd->bqd"}> : () -> ()
    %cst_108 = arith.constant dense<0.000000e+00> : vector<2x8x4xf32>
    %372 = tpu.matmul %370, %371, %cst_108 {dimension_numbers = #tpu.dot_dimension_numbers<[2], [1], [1], [2], [0, 0, 0, 1, 1, 2], [0], [0]>} : vector<2x8x8xbf16>, vector<2x8x4xbf16>, vector<2x8x4xf32> -> vector<2x8x4xf32>
    "tpu.trace_stop"() : () -> ()
    %373 = vector.shape_cast %372 : vector<2x8x4xf32> to vector<16x4xf32>
    %c0_109 = arith.constant 0 : index
    %c4_110 = arith.constant 4 : index
    %374 = vector.load %arg9[%c0_109, %c4_110] : memref<16x32xf32, #tpu.memory_space<vmem>>, vector<16x4xf32>
    tpu.vector_store %arg9[%c0_109, %c4_110], %373 {strides = array<i32>} : memref<16x32xf32, #tpu.memory_space<vmem>>, vector<16x4xf32>,
    %375 = vector.extract_strided_slice %322 {offsets = [0, 8], sizes = [16, 4], strides = [1, 1]} : vector<16x96xf32> to vector<16x4xf32>
    %376 = vector.shape_cast %375 : vector<16x4xf32> to vector<2x8x4xf32>
    %377 = vector.extract_strided_slice %322 {offsets = [0, 40], sizes = [16, 4], strides = [1, 1]} : vector<16x96xf32> to vector<16x4xf32>
    %378 = vector.shape_cast %377 : vector<16x4xf32> to vector<2x8x4xf32>
    %379 = vector.extract_strided_slice %322 {offsets = [0, 72], sizes = [16, 4], strides = [1, 1]} : vector<16x96xf32> to vector<16x4xf32>
    %380 = vector.shape_cast %379 : vector<16x4xf32> to vector<2x8x4xf32>
    %381 = arith.truncf %376 : vector<2x8x4xf32> to vector<2x8x4xbf16>
    %382 = arith.truncf %378 : vector<2x8x4xf32> to vector<2x8x4xbf16>
    "tpu.trace_start"() <{level = 10 : i32, message = "bqd,bkd->bqk"}> : () -> ()
    %cst_111 = arith.constant dense<0.000000e+00> : vector<2x8x8xf32>
    %383 = tpu.matmul %381, %382, %cst_111 {dimension_numbers = #tpu.dot_dimension_numbers<[2], [2], [1], [1], [0, 0, 0, 1, 1, 1], [0], [0]>} : vector<2x8x4xbf16>, vector<2x8x4xbf16>, vector<2x8x8xf32> -> vector<2x8x8xf32>
    "tpu.trace_stop"() : () -> ()
    %cst_112 = arith.constant 5.000000e-01 : f32
    %384 = vector.broadcast %cst_112 : f32 to vector<2x8x8xf32>
    %385 = arith.mulf %383, %384 : vector<2x8x8xf32>
    %cst_113 = arith.constant dense<0xFF800000> : vector<2x8xf32>
    %386 = vector.multi_reduction <maximumf>, %385, %cst_113 [2] : vector<2x8x8xf32> to vector<2x8xf32>
    %387 = vector.shape_cast %386 : vector<2x8xf32> to vector<2x8x1xf32>
    %388 = vector.broadcast %387 : vector<2x8x1xf32> to vector<2x8x8xf32>
    %389 = arith.subf %385, %388 : vector<2x8x8xf32>
    %390 = math.exp %389 : vector<2x8x8xf32>
    %cst_114 = arith.constant dense<0.000000e+00> : vector<2x8xf32>
    %391 = vector.multi_reduction <add>, %390, %cst_114 [2] : vector<2x8x8xf32> to vector<2x8xf32>
    %392 = vector.shape_cast %391 : vector<2x8xf32> to vector<2x8x1xf32>
    %393 = tpu.reciprocal %392 {approx = true} : vector<2x8x1xf32> -> vector<2x8x1xf32>
    %394 = vector.broadcast %393 : vector<2x8x1xf32> to vector<2x8x8xf32>
    %395 = arith.mulf %390, %394 : vector<2x8x8xf32>
    %396 = arith.truncf %395 : vector<2x8x8xf32> to vector<2x8x8xbf16>
    %397 = arith.truncf %380 : vector<2x8x4xf32> to vector<2x8x4xbf16>
    "tpu.trace_start"() <{level = 10 : i32, message = "bqk,bkd->bqd"}> : () -> ()
    %cst_115 = arith.constant dense<0.000000e+00> : vector<2x8x4xf32>
    %398 = tpu.matmul %396, %397, %cst_115 {dimension_numbers = #tpu.dot_dimension_numbers<[2], [1], [1], [2], [0, 0, 0, 1, 1, 2], [0], [0]>} : vector<2x8x8xbf16>, vector<2x8x4xbf16>, vector<2x8x4xf32> -> vector<2x8x4xf32>
    "tpu.trace_stop"() : () -> ()
    %399 = vector.shape_cast %398 : vector<2x8x4xf32> to vector<16x4xf32>
    %c0_116 = arith.constant 0 : index
    %c8_117 = arith.constant 8 : index
    %400 = vector.load %arg9[%c0_116, %c8_117] : memref<16x32xf32, #tpu.memory_space<vmem>>, vector<16x4xf32>
    tpu.vector_store %arg9[%c0_116, %c8_117], %399 {strides = array<i32>} : memref<16x32xf32, #tpu.memory_space<vmem>>, vector<16x4xf32>,
    %401 = vector.extract_strided_slice %322 {offsets = [0, 12], sizes = [16, 4], strides = [1, 1]} : vector<16x96xf32> to vector<16x4xf32>
    %402 = vector.shape_cast %401 : vector<16x4xf32> to vector<2x8x4xf32>
    %403 = vector.extract_strided_slice %322 {offsets = [0, 44], sizes = [16, 4], strides = [1, 1]} : vector<16x96xf32> to vector<16x4xf32>
    %404 = vector.shape_cast %403 : vector<16x4xf32> to vector<2x8x4xf32>
    %405 = vector.extract_strided_slice %322 {offsets = [0, 76], sizes = [16, 4], strides = [1, 1]} : vector<16x96xf32> to vector<16x4xf32>
    %406 = vector.shape_cast %405 : vector<16x4xf32> to vector<2x8x4xf32>
    %407 = arith.truncf %402 : vector<2x8x4xf32> to vector<2x8x4xbf16>
    %408 = arith.truncf %404 : vector<2x8x4xf32> to vector<2x8x4xbf16>
    "tpu.trace_start"() <{level = 10 : i32, message = "bqd,bkd->bqk"}> : () -> ()
    %cst_118 = arith.constant dense<0.000000e+00> : vector<2x8x8xf32>
    %409 = tpu.matmul %407, %408, %cst_118 {dimension_numbers = #tpu.dot_dimension_numbers<[2], [2], [1], [1], [0, 0, 0, 1, 1, 1], [0], [0]>} : vector<2x8x4xbf16>, vector<2x8x4xbf16>, vector<2x8x8xf32> -> vector<2x8x8xf32>
    "tpu.trace_stop"() : () -> ()
    %cst_119 = arith.constant 5.000000e-01 : f32
    %410 = vector.broadcast %cst_119 : f32 to vector<2x8x8xf32>
    %411 = arith.mulf %409, %410 : vector<2x8x8xf32>
    %cst_120 = arith.constant dense<0xFF800000> : vector<2x8xf32>
    %412 = vector.multi_reduction <maximumf>, %411, %cst_120 [2] : vector<2x8x8xf32> to vector<2x8xf32>
    %413 = vector.shape_cast %412 : vector<2x8xf32> to vector<2x8x1xf32>
    %414 = vector.broadcast %413 : vector<2x8x1xf32> to vector<2x8x8xf32>
    %415 = arith.subf %411, %414 : vector<2x8x8xf32>
    %416 = math.exp %415 : vector<2x8x8xf32>
    %cst_121 = arith.constant dense<0.000000e+00> : vector<2x8xf32>
    %417 = vector.multi_reduction <add>, %416, %cst_121 [2] : vector<2x8x8xf32> to vector<2x8xf32>
    %418 = vector.shape_cast %417 : vector<2x8xf32> to vector<2x8x1xf32>
    %419 = tpu.reciprocal %418 {approx = true} : vector<2x8x1xf32> -> vector<2x8x1xf32>
    %420 = vector.broadcast %419 : vector<2x8x1xf32> to vector<2x8x8xf32>
    %421 = arith.mulf %416, %420 : vector<2x8x8xf32>
    %422 = arith.truncf %421 : vector<2x8x8xf32> to vector<2x8x8xbf16>
    %423 = arith.truncf %406 : vector<2x8x4xf32> to vector<2x8x4xbf16>
    "tpu.trace_start"() <{level = 10 : i32, message = "bqk,bkd->bqd"}> : () -> ()
    %cst_122 = arith.constant dense<0.000000e+00> : vector<2x8x4xf32>
    %424 = tpu.matmul %422, %423, %cst_122 {dimension_numbers = #tpu.dot_dimension_numbers<[2], [1], [1], [2], [0, 0, 0, 1, 1, 2], [0], [0]>} : vector<2x8x8xbf16>, vector<2x8x4xbf16>, vector<2x8x4xf32> -> vector<2x8x4xf32>
    "tpu.trace_stop"() : () -> ()
    %425 = vector.shape_cast %424 : vector<2x8x4xf32> to vector<16x4xf32>
    %c0_123 = arith.constant 0 : index
    %c12_124 = arith.constant 12 : index
    %426 = vector.load %arg9[%c0_123, %c12_124] : memref<16x32xf32, #tpu.memory_space<vmem>>, vector<16x4xf32>
    tpu.vector_store %arg9[%c0_123, %c12_124], %425 {strides = array<i32>} : memref<16x32xf32, #tpu.memory_space<vmem>>, vector<16x4xf32>,
    %427 = vector.extract_strided_slice %322 {offsets = [0, 16], sizes = [16, 4], strides = [1, 1]} : vector<16x96xf32> to vector<16x4xf32>
    %428 = vector.shape_cast %427 : vector<16x4xf32> to vector<2x8x4xf32>
    %429 = vector.extract_strided_slice %322 {offsets = [0, 48], sizes = [16, 4], strides = [1, 1]} : vector<16x96xf32> to vector<16x4xf32>
    %430 = vector.shape_cast %429 : vector<16x4xf32> to vector<2x8x4xf32>
    %431 = vector.extract_strided_slice %322 {offsets = [0, 80], sizes = [16, 4], strides = [1, 1]} : vector<16x96xf32> to vector<16x4xf32>
    %432 = vector.shape_cast %431 : vector<16x4xf32> to vector<2x8x4xf32>
    %433 = arith.truncf %428 : vector<2x8x4xf32> to vector<2x8x4xbf16>
    %434 = arith.truncf %430 : vector<2x8x4xf32> to vector<2x8x4xbf16>
    "tpu.trace_start"() <{level = 10 : i32, message = "bqd,bkd->bqk"}> : () -> ()
    %cst_125 = arith.constant dense<0.000000e+00> : vector<2x8x8xf32>
    %435 = tpu.matmul %433, %434, %cst_125 {dimension_numbers = #tpu.dot_dimension_numbers<[2], [2], [1], [1], [0, 0, 0, 1, 1, 1], [0], [0]>} : vector<2x8x4xbf16>, vector<2x8x4xbf16>, vector<2x8x8xf32> -> vector<2x8x8xf32>
    "tpu.trace_stop"() : () -> ()
    %cst_126 = arith.constant 5.000000e-01 : f32
    %436 = vector.broadcast %cst_126 : f32 to vector<2x8x8xf32>
    %437 = arith.mulf %435, %436 : vector<2x8x8xf32>
    %cst_127 = arith.constant dense<0xFF800000> : vector<2x8xf32>
    %438 = vector.multi_reduction <maximumf>, %437, %cst_127 [2] : vector<2x8x8xf32> to vector<2x8xf32>
    %439 = vector.shape_cast %438 : vector<2x8xf32> to vector<2x8x1xf32>
    %440 = vector.broadcast %439 : vector<2x8x1xf32> to vector<2x8x8xf32>
    %441 = arith.subf %437, %440 : vector<2x8x8xf32>
    %442 = math.exp %441 : vector<2x8x8xf32>
    %cst_128 = arith.constant dense<0.000000e+00> : vector<2x8xf32>
    %443 = vector.multi_reduction <add>, %442, %cst_128 [2] : vector<2x8x8xf32> to vector<2x8xf32>
    %444 = vector.shape_cast %443 : vector<2x8xf32> to vector<2x8x1xf32>
    %445 = tpu.reciprocal %444 {approx = true} : vector<2x8x1xf32> -> vector<2x8x1xf32>
    %446 = vector.broadcast %445 : vector<2x8x1xf32> to vector<2x8x8xf32>
    %447 = arith.mulf %442, %446 : vector<2x8x8xf32>
    %448 = arith.truncf %447 : vector<2x8x8xf32> to vector<2x8x8xbf16>
    %449 = arith.truncf %432 : vector<2x8x4xf32> to vector<2x8x4xbf16>
    "tpu.trace_start"() <{level = 10 : i32, message = "bqk,bkd->bqd"}> : () -> ()
    %cst_129 = arith.constant dense<0.000000e+00> : vector<2x8x4xf32>
    %450 = tpu.matmul %448, %449, %cst_129 {dimension_numbers = #tpu.dot_dimension_numbers<[2], [1], [1], [2], [0, 0, 0, 1, 1, 2], [0], [0]>} : vector<2x8x8xbf16>, vector<2x8x4xbf16>, vector<2x8x4xf32> -> vector<2x8x4xf32>
    "tpu.trace_stop"() : () -> ()
    %451 = vector.shape_cast %450 : vector<2x8x4xf32> to vector<16x4xf32>
    %c0_130 = arith.constant 0 : index
    %c16_131 = arith.constant 16 : index
    %452 = vector.load %arg9[%c0_130, %c16_131] : memref<16x32xf32, #tpu.memory_space<vmem>>, vector<16x4xf32>
    tpu.vector_store %arg9[%c0_130, %c16_131], %451 {strides = array<i32>} : memref<16x32xf32, #tpu.memory_space<vmem>>, vector<16x4xf32>,
    %453 = vector.extract_strided_slice %322 {offsets = [0, 20], sizes = [16, 4], strides = [1, 1]} : vector<16x96xf32> to vector<16x4xf32>
    %454 = vector.shape_cast %453 : vector<16x4xf32> to vector<2x8x4xf32>
    %455 = vector.extract_strided_slice %322 {offsets = [0, 52], sizes = [16, 4], strides = [1, 1]} : vector<16x96xf32> to vector<16x4xf32>
    %456 = vector.shape_cast %455 : vector<16x4xf32> to vector<2x8x4xf32>
    %457 = vector.extract_strided_slice %322 {offsets = [0, 84], sizes = [16, 4], strides = [1, 1]} : vector<16x96xf32> to vector<16x4xf32>
    %458 = vector.shape_cast %457 : vector<16x4xf32> to vector<2x8x4xf32>
    %459 = arith.truncf %454 : vector<2x8x4xf32> to vector<2x8x4xbf16>
    %460 = arith.truncf %456 : vector<2x8x4xf32> to vector<2x8x4xbf16>
    "tpu.trace_start"() <{level = 10 : i32, message = "bqd,bkd->bqk"}> : () -> ()
    %cst_132 = arith.constant dense<0.000000e+00> : vector<2x8x8xf32>
    %461 = tpu.matmul %459, %460, %cst_132 {dimension_numbers = #tpu.dot_dimension_numbers<[2], [2], [1], [1], [0, 0, 0, 1, 1, 1], [0], [0]>} : vector<2x8x4xbf16>, vector<2x8x4xbf16>, vector<2x8x8xf32> -> vector<2x8x8xf32>
    "tpu.trace_stop"() : () -> ()
    %cst_133 = arith.constant 5.000000e-01 : f32
    %462 = vector.broadcast %cst_133 : f32 to vector<2x8x8xf32>
    %463 = arith.mulf %461, %462 : vector<2x8x8xf32>
    %cst_134 = arith.constant dense<0xFF800000> : vector<2x8xf32>
    %464 = vector.multi_reduction <maximumf>, %463, %cst_134 [2] : vector<2x8x8xf32> to vector<2x8xf32>
    %465 = vector.shape_cast %464 : vector<2x8xf32> to vector<2x8x1xf32>
    %466 = vector.broadcast %465 : vector<2x8x1xf32> to vector<2x8x8xf32>
    %467 = arith.subf %463, %466 : vector<2x8x8xf32>
    %468 = math.exp %467 : vector<2x8x8xf32>
    %cst_135 = arith.constant dense<0.000000e+00> : vector<2x8xf32>
    %469 = vector.multi_reduction <add>, %468, %cst_135 [2] : vector<2x8x8xf32> to vector<2x8xf32>
    %470 = vector.shape_cast %469 : vector<2x8xf32> to vector<2x8x1xf32>
    %471 = tpu.reciprocal %470 {approx = true} : vector<2x8x1xf32> -> vector<2x8x1xf32>
    %472 = vector.broadcast %471 : vector<2x8x1xf32> to vector<2x8x8xf32>
    %473 = arith.mulf %468, %472 : vector<2x8x8xf32>
    %474 = arith.truncf %473 : vector<2x8x8xf32> to vector<2x8x8xbf16>
    %475 = arith.truncf %458 : vector<2x8x4xf32> to vector<2x8x4xbf16>
    "tpu.trace_start"() <{level = 10 : i32, message = "bqk,bkd->bqd"}> : () -> ()
    %cst_136 = arith.constant dense<0.000000e+00> : vector<2x8x4xf32>
    %476 = tpu.matmul %474, %475, %cst_136 {dimension_numbers = #tpu.dot_dimension_numbers<[2], [1], [1], [2], [0, 0, 0, 1, 1, 2], [0], [0]>} : vector<2x8x8xbf16>, vector<2x8x4xbf16>, vector<2x8x4xf32> -> vector<2x8x4xf32>
    "tpu.trace_stop"() : () -> ()
    %477 = vector.shape_cast %476 : vector<2x8x4xf32> to vector<16x4xf32>
    %c0_137 = arith.constant 0 : index
    %c20_138 = arith.constant 20 : index
    %478 = vector.load %arg9[%c0_137, %c20_138] : memref<16x32xf32, #tpu.memory_space<vmem>>, vector<16x4xf32>
    tpu.vector_store %arg9[%c0_137, %c20_138], %477 {strides = array<i32>} : memref<16x32xf32, #tpu.memory_space<vmem>>, vector<16x4xf32>,
    %479 = vector.extract_strided_slice %322 {offsets = [0, 24], sizes = [16, 4], strides = [1, 1]} : vector<16x96xf32> to vector<16x4xf32>
    %480 = vector.shape_cast %479 : vector<16x4xf32> to vector<2x8x4xf32>
    %481 = vector.extract_strided_slice %322 {offsets = [0, 56], sizes = [16, 4], strides = [1, 1]} : vector<16x96xf32> to vector<16x4xf32>
    %482 = vector.shape_cast %481 : vector<16x4xf32> to vector<2x8x4xf32>
    %483 = vector.extract_strided_slice %322 {offsets = [0, 88], sizes = [16, 4], strides = [1, 1]} : vector<16x96xf32> to vector<16x4xf32>
    %484 = vector.shape_cast %483 : vector<16x4xf32> to vector<2x8x4xf32>
    %485 = arith.truncf %480 : vector<2x8x4xf32> to vector<2x8x4xbf16>
    %486 = arith.truncf %482 : vector<2x8x4xf32> to vector<2x8x4xbf16>
    "tpu.trace_start"() <{level = 10 : i32, message = "bqd,bkd->bqk"}> : () -> ()
    %cst_139 = arith.constant dense<0.000000e+00> : vector<2x8x8xf32>
    %487 = tpu.matmul %485, %486, %cst_139 {dimension_numbers = #tpu.dot_dimension_numbers<[2], [2], [1], [1], [0, 0, 0, 1, 1, 1], [0], [0]>} : vector<2x8x4xbf16>, vector<2x8x4xbf16>, vector<2x8x8xf32> -> vector<2x8x8xf32>
    "tpu.trace_stop"() : () -> ()
    %cst_140 = arith.constant 5.000000e-01 : f32
    %488 = vector.broadcast %cst_140 : f32 to vector<2x8x8xf32>
    %489 = arith.mulf %487, %488 : vector<2x8x8xf32>
    %cst_141 = arith.constant dense<0xFF800000> : vector<2x8xf32>
    %490 = vector.multi_reduction <maximumf>, %489, %cst_141 [2] : vector<2x8x8xf32> to vector<2x8xf32>
    %491 = vector.shape_cast %490 : vector<2x8xf32> to vector<2x8x1xf32>
    %492 = vector.broadcast %491 : vector<2x8x1xf32> to vector<2x8x8xf32>
    %493 = arith.subf %489, %492 : vector<2x8x8xf32>
    %494 = math.exp %493 : vector<2x8x8xf32>
    %cst_142 = arith.constant dense<0.000000e+00> : vector<2x8xf32>
    %495 = vector.multi_reduction <add>, %494, %cst_142 [2] : vector<2x8x8xf32> to vector<2x8xf32>
    %496 = vector.shape_cast %495 : vector<2x8xf32> to vector<2x8x1xf32>
    %497 = tpu.reciprocal %496 {approx = true} : vector<2x8x1xf32> -> vector<2x8x1xf32>
    %498 = vector.broadcast %497 : vector<2x8x1xf32> to vector<2x8x8xf32>
    %499 = arith.mulf %494, %498 : vector<2x8x8xf32>
    %500 = arith.truncf %499 : vector<2x8x8xf32> to vector<2x8x8xbf16>
    %501 = arith.truncf %484 : vector<2x8x4xf32> to vector<2x8x4xbf16>
    "tpu.trace_start"() <{level = 10 : i32, message = "bqk,bkd->bqd"}> : () -> ()
    %cst_143 = arith.constant dense<0.000000e+00> : vector<2x8x4xf32>
    %502 = tpu.matmul %500, %501, %cst_143 {dimension_numbers = #tpu.dot_dimension_numbers<[2], [1], [1], [2], [0, 0, 0, 1, 1, 2], [0], [0]>} : vector<2x8x8xbf16>, vector<2x8x4xbf16>, vector<2x8x4xf32> -> vector<2x8x4xf32>
    "tpu.trace_stop"() : () -> ()
    %503 = vector.shape_cast %502 : vector<2x8x4xf32> to vector<16x4xf32>
    %c0_144 = arith.constant 0 : index
    %c24_145 = arith.constant 24 : index
    %504 = vector.load %arg9[%c0_144, %c24_145] : memref<16x32xf32, #tpu.memory_space<vmem>>, vector<16x4xf32>
    tpu.vector_store %arg9[%c0_144, %c24_145], %503 {strides = array<i32>} : memref<16x32xf32, #tpu.memory_space<vmem>>, vector<16x4xf32>,
    %505 = vector.extract_strided_slice %322 {offsets = [0, 28], sizes = [16, 4], strides = [1, 1]} : vector<16x96xf32> to vector<16x4xf32>
    %506 = vector.shape_cast %505 : vector<16x4xf32> to vector<2x8x4xf32>
    %507 = vector.extract_strided_slice %322 {offsets = [0, 60], sizes = [16, 4], strides = [1, 1]} : vector<16x96xf32> to vector<16x4xf32>
    %508 = vector.shape_cast %507 : vector<16x4xf32> to vector<2x8x4xf32>
    %509 = vector.extract_strided_slice %322 {offsets = [0, 92], sizes = [16, 4], strides = [1, 1]} : vector<16x96xf32> to vector<16x4xf32>
    %510 = vector.shape_cast %509 : vector<16x4xf32> to vector<2x8x4xf32>
    %511 = arith.truncf %506 : vector<2x8x4xf32> to vector<2x8x4xbf16>
    %512 = arith.truncf %508 : vector<2x8x4xf32> to vector<2x8x4xbf16>
    "tpu.trace_start"() <{level = 10 : i32, message = "bqd,bkd->bqk"}> : () -> ()
    %cst_146 = arith.constant dense<0.000000e+00> : vector<2x8x8xf32>
    %513 = tpu.matmul %511, %512, %cst_146 {dimension_numbers = #tpu.dot_dimension_numbers<[2], [2], [1], [1], [0, 0, 0, 1, 1, 1], [0], [0]>} : vector<2x8x4xbf16>, vector<2x8x4xbf16>, vector<2x8x8xf32> -> vector<2x8x8xf32>
    "tpu.trace_stop"() : () -> ()
    %cst_147 = arith.constant 5.000000e-01 : f32
    %514 = vector.broadcast %cst_147 : f32 to vector<2x8x8xf32>
    %515 = arith.mulf %513, %514 : vector<2x8x8xf32>
    %cst_148 = arith.constant dense<0xFF800000> : vector<2x8xf32>
    %516 = vector.multi_reduction <maximumf>, %515, %cst_148 [2] : vector<2x8x8xf32> to vector<2x8xf32>
    %517 = vector.shape_cast %516 : vector<2x8xf32> to vector<2x8x1xf32>
    %518 = vector.broadcast %517 : vector<2x8x1xf32> to vector<2x8x8xf32>
    %519 = arith.subf %515, %518 : vector<2x8x8xf32>
    %520 = math.exp %519 : vector<2x8x8xf32>
    %cst_149 = arith.constant dense<0.000000e+00> : vector<2x8xf32>
    %521 = vector.multi_reduction <add>, %520, %cst_149 [2] : vector<2x8x8xf32> to vector<2x8xf32>
    %522 = vector.shape_cast %521 : vector<2x8xf32> to vector<2x8x1xf32>
    %523 = tpu.reciprocal %522 {approx = true} : vector<2x8x1xf32> -> vector<2x8x1xf32>
    %524 = vector.broadcast %523 : vector<2x8x1xf32> to vector<2x8x8xf32>
    %525 = arith.mulf %520, %524 : vector<2x8x8xf32>
    %526 = arith.truncf %525 : vector<2x8x8xf32> to vector<2x8x8xbf16>
    %527 = arith.truncf %510 : vector<2x8x4xf32> to vector<2x8x4xbf16>
    "tpu.trace_start"() <{level = 10 : i32, message = "bqk,bkd->bqd"}> : () -> ()
    %cst_150 = arith.constant dense<0.000000e+00> : vector<2x8x4xf32>
    %528 = tpu.matmul %526, %527, %cst_150 {dimension_numbers = #tpu.dot_dimension_numbers<[2], [1], [1], [2], [0, 0, 0, 1, 1, 2], [0], [0]>} : vector<2x8x8xbf16>, vector<2x8x4xbf16>, vector<2x8x4xf32> -> vector<2x8x4xf32>
    "tpu.trace_stop"() : () -> ()
    %529 = vector.shape_cast %528 : vector<2x8x4xf32> to vector<16x4xf32>
    %c0_151 = arith.constant 0 : index
    %c28_152 = arith.constant 28 : index
    %530 = vector.load %arg9[%c0_151, %c28_152] : memref<16x32xf32, #tpu.memory_space<vmem>>, vector<16x4xf32>
    tpu.vector_store %arg9[%c0_151, %c28_152], %529 {strides = array<i32>} : memref<16x32xf32, #tpu.memory_space<vmem>>, vector<16x4xf32>,
    %c0_153 = arith.constant 0 : index
    %c0_154 = arith.constant 0 : index
    %531 = vector.load %arg9[%c0_153, %c0_154] : memref<16x32xf32, #tpu.memory_space<vmem>>, vector<16x32xf32>
    %532 = arith.truncf %531 : vector<16x32xf32> to vector<16x32xbf16>
    %cst_155 = arith.constant dense<0.000000e+00> : vector<16x32xf32>
    %533 = tpu.matmul %532, %302, %cst_155 {dimension_numbers = #tpu.dot_dimension_numbers<[1], [0], [0], [1], [0, 0, 1, 1], [], []>} : vector<16x32xbf16>, vector<32x32xbf16>, vector<16x32xf32> -> vector<16x32xf32>
    %534 = vector.broadcast %313 : vector<1x32xf32> to vector<16x32xf32>
    %535 = arith.addf %533, %534 : vector<16x32xf32>
    %536 = arith.addf %296, %535 : vector<16x32xf32>
    %cst_156 = arith.constant dense<0.000000e+00> : vector<16xf32>
    %537 = vector.multi_reduction <add>, %536, %cst_156 [1] : vector<16x32xf32> to vector<16xf32>
    %538 = vector.shape_cast %537 : vector<16xf32> to vector<16x1xf32>
    %cst_157 = arith.constant 3.200000e+01 : f32
    %539 = vector.broadcast %cst_157 : f32 to vector<16x1xf32>
    %540 = arith.divf %538, %539 : vector<16x1xf32>
    %541 = vector.broadcast %540 : vector<16x1xf32> to vector<16x32xf32>
    %542 = arith.subf %536, %541 : vector<16x32xf32>
    %543 = arith.mulf %542, %542 : vector<16x32xf32>
    %cst_158 = arith.constant dense<0.000000e+00> : vector<16xf32>
    %544 = vector.multi_reduction <add>, %543, %cst_158 [1] : vector<16x32xf32> to vector<16xf32>
    %545 = vector.shape_cast %544 : vector<16xf32> to vector<16x1xf32>
    %cst_159 = arith.constant 3.200000e+01 : f32
    %546 = vector.broadcast %cst_159 : f32 to vector<16x1xf32>
    %547 = arith.divf %545, %546 : vector<16x1xf32>
    %cst_160 = arith.constant 9.99999974E-6 : f32
    %548 = vector.broadcast %cst_160 : f32 to vector<16x1xf32>
    %549 = arith.addf %547, %548 : vector<16x1xf32>
    %550 = math.rsqrt %549 : vector<16x1xf32>
    %551 = vector.broadcast %540 : vector<16x1xf32> to vector<16x32xf32>
    %552 = arith.subf %536, %551 : vector<16x32xf32>
    %553 = vector.broadcast %550 : vector<16x1xf32> to vector<16x32xf32>
    %554 = arith.mulf %552, %553 : vector<16x32xf32>
    %555 = vector.broadcast %315 : vector<1x32xf32> to vector<16x32xf32>
    %556 = arith.mulf %554, %555 : vector<16x32xf32>
    %557 = vector.broadcast %316 : vector<1x32xf32> to vector<16x32xf32>
    %558 = arith.addf %556, %557 : vector<16x32xf32>
    %559 = arith.truncf %558 : vector<16x32xf32> to vector<16x32xbf16>
    %cst_161 = arith.constant dense<0.000000e+00> : vector<16x64xf32>
    %560 = tpu.matmul %559, %305, %cst_161 {dimension_numbers = #tpu.dot_dimension_numbers<[1], [0], [0], [1], [0, 0, 1, 1], [], []>} : vector<16x32xbf16>, vector<32x64xbf16>, vector<16x64xf32> -> vector<16x64xf32>
    %561 = vector.broadcast %312 : vector<1x64xf32> to vector<16x64xf32>
    %562 = arith.addf %560, %561 : vector<16x64xf32>
    %cst_162 = arith.constant 0.000000e+00 : f32
    %563 = vector.broadcast %cst_162 : f32 to vector<16x64xf32>
    %564 = arith.maximumf %562, %563 : vector<16x64xf32>
    %565 = arith.truncf %564 : vector<16x64xf32> to vector<16x64xbf16>
    %cst_163 = arith.constant dense<0.000000e+00> : vector<16x32xf32>
    %566 = tpu.matmul %565, %308, %cst_163 {dimension_numbers = #tpu.dot_dimension_numbers<[1], [0], [0], [1], [0, 0, 1, 1], [], []>} : vector<16x64xbf16>, vector<64x32xbf16>, vector<16x32xf32> -> vector<16x32xf32>
    %567 = vector.broadcast %314 : vector<1x32xf32> to vector<16x32xf32>
    %568 = arith.addf %566, %567 : vector<16x32xf32>
    %569 = arith.addf %558, %568 : vector<16x32xf32>
    %cst_164 = arith.constant dense<0.000000e+00> : vector<16xf32>
    %570 = vector.multi_reduction <add>, %569, %cst_164 [1] : vector<16x32xf32> to vector<16xf32>
    %571 = vector.shape_cast %570 : vector<16xf32> to vector<16x1xf32>
    %cst_165 = arith.constant 3.200000e+01 : f32
    %572 = vector.broadcast %cst_165 : f32 to vector<16x1xf32>
    %573 = arith.divf %571, %572 : vector<16x1xf32>
    %574 = vector.broadcast %573 : vector<16x1xf32> to vector<16x32xf32>
    %575 = arith.subf %569, %574 : vector<16x32xf32>
    %576 = arith.mulf %575, %575 : vector<16x32xf32>
    %cst_166 = arith.constant dense<0.000000e+00> : vector<16xf32>
    %577 = vector.multi_reduction <add>, %576, %cst_166 [1] : vector<16x32xf32> to vector<16xf32>
    %578 = vector.shape_cast %577 : vector<16xf32> to vector<16x1xf32>
    %cst_167 = arith.constant 3.200000e+01 : f32
    %579 = vector.broadcast %cst_167 : f32 to vector<16x1xf32>
    %580 = arith.divf %578, %579 : vector<16x1xf32>
    %cst_168 = arith.constant 9.99999974E-6 : f32
    %581 = vector.broadcast %cst_168 : f32 to vector<16x1xf32>
    %582 = arith.addf %580, %581 : vector<16x1xf32>
    %583 = math.rsqrt %582 : vector<16x1xf32>
    %584 = vector.broadcast %573 : vector<16x1xf32> to vector<16x32xf32>
    %585 = arith.subf %569, %584 : vector<16x32xf32>
    %586 = vector.broadcast %583 : vector<16x1xf32> to vector<16x32xf32>
    %587 = arith.mulf %585, %586 : vector<16x32xf32>
    %588 = vector.broadcast %317 : vector<1x32xf32> to vector<16x32xf32>
    %589 = arith.mulf %587, %588 : vector<16x32xf32>
    %590 = vector.broadcast %318 : vector<1x32xf32> to vector<16x32xf32>
    %591 = arith.addf %589, %590 : vector<16x32xf32>
    %592 = vector.shape_cast %591 : vector<16x32xf32> to vector<2x8x32xf32>
    %593 = vector.extract_strided_slice %592 {offsets = [0, 7, 0], sizes = [2, 1, 32], strides = [1, 1, 1]} : vector<2x8x32xf32> to vector<2x1x32xf32>
    %594 = vector.shape_cast %593 : vector<2x1x32xf32> to vector<2x32xf32>
    %595 = arith.truncf %594 : vector<2x32xf32> to vector<2x32xbf16>
    %c0_169 = arith.constant 0 : index
    %c0_170 = arith.constant 0 : index
    %596 = vector.load %arg6[%c0_169, %c0_170] : memref<32x10xf32, #tpu.memory_space<vmem>>, vector<32x10xf32>
    %597 = arith.truncf %596 : vector<32x10xf32> to vector<32x10xbf16>
    %cst_171 = arith.constant dense<0.000000e+00> : vector<2x10xf32>
    %598 = tpu.matmul %595, %597, %cst_171 {dimension_numbers = #tpu.dot_dimension_numbers<[1], [0], [0], [1], [0, 0, 1, 1], [], []>} : vector<2x32xbf16>, vector<32x10xbf16>, vector<2x10xf32> -> vector<2x10xf32>
    %c0_172 = arith.constant 0 : index
    %c0_173 = arith.constant 0 : index
    %599 = vector.load %arg7[%c0_172, %c0_173] : memref<1x10xf32, #tpu.memory_space<vmem>>, vector<1x10xf32>
    %600 = vector.broadcast %599 : vector<1x10xf32> to vector<2x10xf32>
    %601 = arith.addf %598, %600 : vector<2x10xf32>
    %c0_174 = arith.constant 0 : index
    %c0_175 = arith.constant 0 : index
    %602 = vector.load %arg8[%c0_174, %c0_175] : memref<2x10xf32, #tpu.memory_space<vmem>>, vector<2x10xf32>
    tpu.vector_store %arg8[%c0_174, %c0_175], %601 {strides = array<i32>} : memref<2x10xf32, #tpu.memory_space<vmem>>, vector<2x10xf32>,
    return
  }
}

</mosaic_0001>

<llo_original>
// kernel: tpu_custom_call.1
$region0: #{tpu_custom_call.1}
  #allocation0 [shape = 'u32[]', space=smem, size = 0x4, offset = 0x4, fixed_abs, tag = 'smem constant byte address 0x4 - core index']
  #allocation1 [shape = 'u32[144,128]{1,0:T(1,128)}', space=vmem, size = 0x12000, scoped, tag = 'internal scratch']
  #allocation2 [shape = 'f32[16,32]{1,0:T(8,128)}', space=vmem, size = 0x2000, scoped, tag = 'scratch operand']
  %s0 = inlined_call_operand.vmem [shape: f32[2,8,32], index: 0, kind: input, shape index: {}]
  %s1 = inlined_call_operand.vmem [shape: f32[2,32,96], index: 1, kind: input, shape index: {}]
  %s2 = inlined_call_operand.vmem [shape: f32[2,32,32], index: 2, kind: input, shape index: {}]
  %s3 = inlined_call_operand.vmem [shape: f32[2,32,64], index: 3, kind: input, shape index: {}]
  %s4 = inlined_call_operand.vmem [shape: f32[2,64,32], index: 4, kind: input, shape index: {}]
  %s5 = inlined_call_operand.vmem [shape: f32[2,8,96], index: 5, kind: input, shape index: {}]
  %s6 = inlined_call_operand.vmem [shape: f32[32,10], index: 6, kind: input, shape index: {}]
  %s7 = inlined_call_operand.vmem [shape: f32[1,10], index: 7, kind: input, shape index: {}]
  %s8 = inlined_call_operand.hbm [shape: f32[2,10], index: 8, kind: output, shape index: {}]
  %s9 = sld [smem:[#allocation0]]
  $region42: #{tpu_custom_call.1} parent=0
    _
  %s11 = ssub.s32 1, %s9
  %s12 = scalar_select 0, %s11, %s9
  $region1: #{tpu_custom_call.1} parent=0
    #allocation3 [shape = 'u8[1024]{0}', space=vmem, size = 0x400, scoped, tag = 'output window, operand 0, single buffered']
    #allocation4 [shape = 's32[1]{0}', space=sflag, size = 0x4, scoped, tag = 'scoped memory for tpu_custom_call.1']
    %13 = vsyncpa [#allocation4], 0
    // Predicated region
    $region2: #{tpu_custom_call.1} parent=1 // pred_check
      _
    $region3: #{tpu_custom_call.1} parent=1 // pred_check_branch
      %15 = sbr.rel (0) target = $region5
    $region4: #{tpu_custom_call.1} parent=1 // pred_region
      _
    $region5: #{tpu_custom_call.1} parent=1 // pred_fallthru
      _
    // Predicated region
    $region6: #{tpu_custom_call.1} parent=1 // pred_check
      _
    $region7: #{tpu_custom_call.1} parent=1 // pred_check_branch
      %17 = sbr.rel (0) target = $region9
    $region8: #{tpu_custom_call.1} parent=1 // pred_region
      _
    $region9: #{tpu_custom_call.1} parent=1 // pred_fallthru
      _
    // Predicated region
    $region10: #{tpu_custom_call.1} parent=1 // pred_check
      _
    $region11: #{tpu_custom_call.1} parent=1 // pred_check_branch
      %19 = sbr.rel (0) target = $region13
    $region12: #{tpu_custom_call.1} parent=1 // pred_region
      _
    $region13: #{tpu_custom_call.1} parent=1 // pred_fallthru
      _
    // Predicated region
    $region14: #{tpu_custom_call.1} parent=1 // pred_check
      _
    $region15: #{tpu_custom_call.1} parent=1 // pred_check_branch
      %21 = sbr.rel (0) target = $region17
    $region16: #{tpu_custom_call.1} parent=1 // pred_region
      _
    $region17: #{tpu_custom_call.1} parent=1 // pred_fallthru
      _
    // Predicated region
    $region18: #{tpu_custom_call.1} parent=1 // pred_check
      _
    $region19: #{tpu_custom_call.1} parent=1 // pred_check_branch
      %23 = sbr.rel (0) target = $region21
    $region20: #{tpu_custom_call.1} parent=1 // pred_region
      _
    $region21: #{tpu_custom_call.1} parent=1 // pred_fallthru
      _
    // Predicated region
    $region22: #{tpu_custom_call.1} parent=1 // pred_check
      _
    $region23: #{tpu_custom_call.1} parent=1 // pred_check_branch
      %25 = sbr.rel (0) target = $region25
    $region24: #{tpu_custom_call.1} parent=1 // pred_region
      _
    $region25: #{tpu_custom_call.1} parent=1 // pred_fallthru
      _
    // Predicated region
    $region26: #{tpu_custom_call.1} parent=1 // pred_check
      _
    $region27: #{tpu_custom_call.1} parent=1 // pred_check_branch
      %27 = sbr.rel (0) target = $region29
    $region28: #{tpu_custom_call.1} parent=1 // pred_region
      _
    $region29: #{tpu_custom_call.1} parent=1 // pred_fallthru
      _
    // Predicated region
    $region30: #{tpu_custom_call.1} parent=1 // pred_check
      _
    $region31: #{tpu_custom_call.1} parent=1 // pred_check_branch
      %29 = sbr.rel (0) target = $region33
    $region32: #{tpu_custom_call.1} parent=1 // pred_region
      _
    $region33: #{tpu_custom_call.1} parent=1 // pred_fallthru
      _
    %v31 = vld [vmem:[%s0] sm:$0xff]
    %v32 = vld [vmem:[%s0 + $0x8] sm:$0xff]
    %v33 = vld [vmem:[%s1] sm:$0xff]
    %v34 = vld [vmem:[%s1 + $0x8] sm:$0xff]
    %v35 = vld [vmem:[%s1 + $0x10] sm:$0xff]
    %v36 = vld [vmem:[%s1 + $0x18] sm:$0xff]
    %v37 = vpack.c.bf16 %v34, %v33
    %v38 = vpack.c.bf16 %v36, %v35
    %v39 = vld [vmem:[%s2] sm:$0xff]
    %v40 = vld [vmem:[%s2 + $0x8] sm:$0xff]
    %v41 = vld [vmem:[%s2 + $0x10] sm:$0xff]
    %v42 = vld [vmem:[%s2 + $0x18] sm:$0xff]
    %v43 = vpack.c.bf16 %v40, %v39
    %v44 = vpack.c.bf16 %v42, %v41
    %v45 = vld [vmem:[%s3] sm:$0xff]
    %v46 = vld [vmem:[%s3 + $0x8] sm:$0xff]
    %v47 = vld [vmem:[%s3 + $0x10] sm:$0xff]
    %v48 = vld [vmem:[%s3 + $0x18] sm:$0xff]
    %v49 = vpack.c.bf16 %v46, %v45
    %v50 = vpack.c.bf16 %v48, %v47
    %v51 = vld [vmem:[%s4] sm:$0xff]
    %v52 = vld [vmem:[%s4 + $0x8] sm:$0xff]
    %v53 = vld [vmem:[%s4 + $0x10] sm:$0xff]
    %v54 = vld [vmem:[%s4 + $0x18] sm:$0xff]
    %v55 = vld [vmem:[%s4 + $0x20] sm:$0xff]
    %v56 = vld [vmem:[%s4 + $0x28] sm:$0xff]
    %v57 = vld [vmem:[%s4 + $0x30] sm:$0xff]
    %v58 = vld [vmem:[%s4 + $0x38] sm:$0xff]
    %v59 = vpack.c.bf16 %v52, %v51
    %v60 = vpack.c.bf16 %v54, %v53
    %v61 = vpack.c.bf16 %v56, %v55
    %v62 = vpack.c.bf16 %v58, %v57
    %v63 = vld [vmem:[%s5] sm:$0xff]
    %v64 = vpack.c.bf16 %v32, %v31
    %v65 = vlaneseq
    %v66 = vshrl.u32 %v65, 7
    %v67 = vsub.s32 0, %v66
    %v68 = vrot.slane %v63, %v67
    %vm69 = vcmask 261120
    %v71 = vsel %vm69, %v64, 0
    %73 = vmatprep.subr.bf16.mxu0 0
    %74 = vmatpush1.bf16.msra.mxu0 0
    %75 = vmatprep.subr.bf16.mxu0 0
    %76 = vmatpush1.bf16.msra.mxu0 0
    %77 = vmatprep.subr.bf16.mxu0 0
    %78 = vmatpush1.bf16.msra.mxu0 0
    %79 = vmatprep.subr.bf16.mxu0 0
    %80 = vmatpush1.bf16.msra.mxu0 0
    %81 = vmatprep.subr.bf16.mxu0 0
    %82 = vmatpush1.bf16.msra.mxu0 0
    %83 = vmatprep.subr.bf16.mxu0 0
    %84 = vmatpush1.bf16.msra.mxu0 0
    %85 = vmatprep.subr.bf16.mxu0 0
    %86 = vmatpush1.bf16.msra.mxu0 %v38
    %87 = vmatprep.subr.bf16.mxu0 0
    %88 = vmatpush1.bf16.msra.mxu0 %v37
    %89 = vmatprep.subr.bf16.mxu0 0
    %90 = vmatpush2.bf16.msra.mxu0 0
    %91 = vmatprep.subr.bf16.mxu0 0
    %92 = vmatpush2.bf16.msra.mxu0 0
    %93 = vmatprep.subr.bf16.mxu0 0
    %94 = vmatpush2.bf16.msra.mxu0 0
    %95 = vmatprep.subr.bf16.mxu0 0
    %96 = vmatpush2.bf16.msra.mxu0 0
    %97 = vmatprep.subr.bf16.mxu0 0
    %98 = vmatpush2.bf16.msra.mxu0 0
    %99 = vmatprep.subr.bf16.mxu0 0
    %100 = vmatpush2.bf16.msra.mxu0 0
    %101 = vmatprep.subr.bf16.mxu0 0
    %102 = vmatpush2.bf16.msra.mxu0 0
    %103 = vmatprep.subr.bf16.mxu0 0
    %104 = vmatpush2.bf16.msra.mxu0 0
    %105 = vmatprep.mubr.bf16.mxu0 0
    %106 = vmatmul.mubr.bf16.gmra.mxu0 %v71
    %v107 = vpop.f32.mrf.mxu0
    %v108 = vadd.f32 %v68, %v107
    %v109 = vpop.f32.mrf.mxu0
    %v110 = vpop.f32.mrf.mxu0
    %v111 = vadd.f32 %v68, %v110
    %v112 = vpop.f32.mrf.mxu0
    %113 = vdwg.mxu0
    %v114 = vpack.c.bf16 %v108, %v108
    %v115 = vpack.c.bf16 %v111, %v111
    %117 = vrot.lane.b32.xlu0 %v114, 96
    %v118 = vpop.permute.xlu0 %117
    %vm119 = vcmask 31744
    %v121 = vsel %vm119, %v114, 0
    %v124 = vsel %vm119, %v118, 0
    %126 = vmatprep.subr.bf16.mxu0 0
    %127 = vmatpush1.bf16.xpose.msra.mxu0 0
    %128 = vmatprep.subr.bf16.mxu0 0
    %129 = vmatpush1.bf16.xpose.msra.mxu0 0
    %130 = vmatprep.subr.bf16.mxu0 0
    %131 = vmatpush1.bf16.xpose.msra.mxu0 0
    %132 = vmatprep.subr.bf16.mxu0 0
    %133 = vmatpush1.bf16.xpose.msra.mxu0 0
    %134 = vmatprep.subr.bf16.mxu0 0
    %135 = vmatpush1.bf16.xpose.msra.mxu0 0
    %136 = vmatprep.subr.bf16.mxu0 0
    %137 = vmatpush1.bf16.xpose.msra.mxu0 0
    %138 = vmatprep.subr.bf16.mxu0 0
    %139 = vmatpush1.bf16.xpose.msra.mxu0 0
    %140 = vmatprep.subr.bf16.mxu0 0
    %141 = vmatpush1.bf16.xpose.msra.mxu0 %v124
    %142 = vmatprep.subr.bf16.mxu0 0
    %143 = vmatpush2.bf16.xpose.msra.mxu0 0
    %144 = vmatprep.subr.bf16.mxu0 0
    %145 = vmatpush2.bf16.xpose.msra.mxu0 0
    %146 = vmatprep.subr.bf16.mxu0 0
    %147 = vmatpush2.bf16.xpose.msra.mxu0 0
    %148 = vmatprep.subr.bf16.mxu0 0
    %149 = vmatpush2.bf16.xpose.msra.mxu0 0
    %150 = vmatprep.subr.bf16.mxu0 0
    %151 = vmatpush2.bf16.xpose.msra.mxu0 0
    %152 = vmatprep.subr.bf16.mxu0 0
    %153 = vmatpush2.bf16.xpose.msra.mxu0 0
    %154 = vmatprep.subr.bf16.mxu0 0
    %155 = vmatpush2.bf16.xpose.msra.mxu0 0
    %156 = vmatprep.subr.bf16.mxu0 0
    %157 = vmatpush2.bf16.xpose.msra.mxu0 0
    %158 = vmatprep.mubr.bf16.mxu0 0
    %159 = vmatmul.mubr.bf16.gmra.mxu0 %v121
    %v160 = vpop.f32.mrf.mxu0
    %v161 = vadd.f32 0.0, %v160
    %v162 = vpop.f32.mrf.mxu0
    %v163 = vpop.f32.mrf.mxu0
    %v164 = vpop.f32.mrf.mxu0
    %165 = vdwg.mxu0
    %167 = vrot.lane.b32.xlu0 %v115, 96
    %v168 = vpop.permute.xlu0 %167
    %v170 = vsel %vm119, %v115, 0
    %v173 = vsel %vm119, %v168, 0
    %175 = vmatprep.subr.bf16.mxu0 0
    %176 = vmatpush1.bf16.xpose.msra.mxu0 0
    %177 = vmatprep.subr.bf16.mxu0 0
    %178 = vmatpush1.bf16.xpose.msra.mxu0 0
    %179 = vmatprep.subr.bf16.mxu0 0
    %180 = vmatpush1.bf16.xpose.msra.mxu0 0
    %181 = vmatprep.subr.bf16.mxu0 0
    %182 = vmatpush1.bf16.xpose.msra.mxu0 0
    %183 = vmatprep.subr.bf16.mxu0 0
    %184 = vmatpush1.bf16.xpose.msra.mxu0 0
    %185 = vmatprep.subr.bf16.mxu0 0
    %186 = vmatpush1.bf16.xpose.msra.mxu0 0
    %187 = vmatprep.subr.bf16.mxu0 0
    %188 = vmatpush1.bf16.xpose.msra.mxu0 0
    %189 = vmatprep.subr.bf16.mxu0 0
    %190 = vmatpush1.bf16.xpose.msra.mxu0 %v173
    %191 = vmatprep.subr.bf16.mxu0 0
    %192 = vmatpush2.bf16.xpose.msra.mxu0 0
    %193 = vmatprep.subr.bf16.mxu0 0
    %194 = vmatpush2.bf16.xpose.msra.mxu0 0
    %195 = vmatprep.subr.bf16.mxu0 0
    %196 = vmatpush2.bf16.xpose.msra.mxu0 0
    %197 = vmatprep.subr.bf16.mxu0 0
    %198 = vmatpush2.bf16.xpose.msra.mxu0 0
    %199 = vmatprep.subr.bf16.mxu0 0
    %200 = vmatpush2.bf16.xpose.msra.mxu0 0
    %201 = vmatprep.subr.bf16.mxu0 0
    %202 = vmatpush2.bf16.xpose.msra.mxu0 0
    %203 = vmatprep.subr.bf16.mxu0 0
    %204 = vmatpush2.bf16.xpose.msra.mxu0 0
    %205 = vmatprep.subr.bf16.mxu0 0
    %206 = vmatpush2.bf16.xpose.msra.mxu0 0
    %207 = vmatprep.mubr.bf16.mxu0 0
    %208 = vmatmul.mubr.bf16.gmra.mxu0 %v170
    %v209 = vpop.f32.mrf.mxu0
    %v210 = vadd.f32 0.0, %v209
    %v211 = vpop.f32.mrf.mxu0
    %v212 = vpop.f32.mrf.mxu0
    %v213 = vpop.f32.mrf.mxu0
    %214 = vdwg.mxu0
    %v215 = vmul.f32 %v161, 0.5
    %v216 = vmul.f32 %v210, 0.5
    %vm217 = vcmask 64512
    %v218 = vsel %vm217, %v215, -inf
    %219 = vmax.xlane.f32.xlu0 %v218
    %v220 = vpop.xlane.xlu0 %219
    %v221 = vsel %vm217, %v216, -inf
    %222 = vmax.xlane.f32.xlu0 %v221
    %v223 = vpop.xlane.xlu0 %222
    %v224 = vsub.f32 %v215, %v220
    %v225 = vsub.f32 %v216, %v223
    %v226 = vmul.f32 %v224, 1.442695
    %v227 = vpow.pop %v226
    %v228 = vmul.f32 %v225, 1.442695
    %v229 = vpow.pop %v228
    %v230 = vsel %vm217, %v227, 0.0
    %231 = vadd.xlane.f32.xlu0 %v230
    %v232 = vpop.xlane.xlu0 %231
    %v233 = vsel %vm217, %v229, 0.0
    %234 = vadd.xlane.f32.xlu0 %v233
    %v235 = vpop.xlane.xlu0 %234
    %v236 = vrcp.pop %v232
    %v237 = vrcp.pop %v235
    %v238 = vmul.f32 %v227, %v236
    %v239 = vmul.f32 %v229, %v237
    %v240 = vpack.c.bf16 %v238, %v238
    %v241 = vpack.c.bf16 %v239, %v239
    %242 = vrot.lane.b32.xlu0 %v114, 64
    %v243 = vpop.permute.xlu0 %242
    %v245 = vsel %vm217, %v240, 0
    %vm247 = vcmask 1043456
    %v249 = vsel %vm247, %v243, 0
    %251 = vmatprep.subr.bf16.mxu0 0
    %252 = vmatpush1.bf16.msra.mxu0 0
    %253 = vmatprep.subr.bf16.mxu0 0
    %254 = vmatpush1.bf16.msra.mxu0 0
    %255 = vmatprep.subr.bf16.mxu0 0
    %256 = vmatpush1.bf16.msra.mxu0 0
    %257 = vmatprep.subr.bf16.mxu0 0
    %258 = vmatpush1.bf16.msra.mxu0 0
    %259 = vmatprep.subr.bf16.mxu0 0
    %260 = vmatpush1.bf16.msra.mxu0 0
    %261 = vmatprep.subr.bf16.mxu0 0
    %262 = vmatpush1.bf16.msra.mxu0 0
    %263 = vmatprep.subr.bf16.mxu0 0
    %264 = vmatpush1.bf16.msra.mxu0 0
    %265 = vmatprep.subr.bf16.mxu0 0
    %266 = vmatpush1.bf16.msra.mxu0 %v249
    %267 = vmatprep.subr.bf16.mxu0 0
    %268 = vmatpush2.bf16.msra.mxu0 0
    %269 = vmatprep.subr.bf16.mxu0 0
    %270 = vmatpush2.bf16.msra.mxu0 0
    %271 = vmatprep.subr.bf16.mxu0 0
    %272 = vmatpush2.bf16.msra.mxu0 0
    %273 = vmatprep.subr.bf16.mxu0 0
    %274 = vmatpush2.bf16.msra.mxu0 0
    %275 = vmatprep.subr.bf16.mxu0 0
    %276 = vmatpush2.bf16.msra.mxu0 0
    %277 = vmatprep.subr.bf16.mxu0 0
    %278 = vmatpush2.bf16.msra.mxu0 0
    %279 = vmatprep.subr.bf16.mxu0 0
    %280 = vmatpush2.bf16.msra.mxu0 0
    %281 = vmatprep.subr.bf16.mxu0 0
    %282 = vmatpush2.bf16.msra.mxu0 0
    %283 = vmatprep.mubr.bf16.mxu0 0
    %284 = vmatmul.mubr.bf16.gmra.mxu0 %v245
    %v285 = vpop.f32.mrf.mxu0
    %v286 = vadd.f32 0.0, %v285
    %v287 = vpop.f32.mrf.mxu0
    %v288 = vpop.f32.mrf.mxu0
    %v289 = vpop.f32.mrf.mxu0
    %290 = vdwg.mxu0
    %291 = vrot.lane.b32.xlu0 %v115, 64
    %v292 = vpop.permute.xlu0 %291
    %v294 = vsel %vm217, %v241, 0
    %v297 = vsel %vm247, %v292, 0
    %299 = vmatprep.subr.bf16.mxu0 0
    %300 = vmatpush1.bf16.msra.mxu0 0
    %301 = vmatprep.subr.bf16.mxu0 0
    %302 = vmatpush1.bf16.msra.mxu0 0
    %303 = vmatprep.subr.bf16.mxu0 0
    %304 = vmatpush1.bf16.msra.mxu0 0
    %305 = vmatprep.subr.bf16.mxu0 0
    %306 = vmatpush1.bf16.msra.mxu0 0
    %307 = vmatprep.subr.bf16.mxu0 0
    %308 = vmatpush1.bf16.msra.mxu0 0
    %309 = vmatprep.subr.bf16.mxu0 0
    %310 = vmatpush1.bf16.msra.mxu0 0
    %311 = vmatprep.subr.bf16.mxu0 0
    %312 = vmatpush1.bf16.msra.mxu0 0
    %313 = vmatprep.subr.bf16.mxu0 0
    %314 = vmatpush1.bf16.msra.mxu0 %v297
    %315 = vmatprep.subr.bf16.mxu0 0
    %316 = vmatpush2.bf16.msra.mxu0 0
    %317 = vmatprep.subr.bf16.mxu0 0
    %318 = vmatpush2.bf16.msra.mxu0 0
    %319 = vmatprep.subr.bf16.mxu0 0
    %320 = vmatpush2.bf16.msra.mxu0 0
    %321 = vmatprep.subr.bf16.mxu0 0
    %322 = vmatpush2.bf16.msra.mxu0 0
    %323 = vmatprep.subr.bf16.mxu0 0
    %324 = vmatpush2.bf16.msra.mxu0 0
    %325 = vmatprep.subr.bf16.mxu0 0
    %326 = vmatpush2.bf16.msra.mxu0 0
    %327 = vmatprep.subr.bf16.mxu0 0
    %328 = vmatpush2.bf16.msra.mxu0 0
    %329 = vmatprep.subr.bf16.mxu0 0
    %330 = vmatpush2.bf16.msra.mxu0 0
    %331 = vmatprep.mubr.bf16.mxu0 0
    %332 = vmatmul.mubr.bf16.gmra.mxu0 %v294
    %v333 = vpop.f32.mrf.mxu0
    %v334 = vadd.f32 0.0, %v333
    %v335 = vpop.f32.mrf.mxu0
    %v336 = vpop.f32.mrf.mxu0
    %v337 = vpop.f32.mrf.mxu0
    %338 = vdwg.mxu0
    %339 = vst.msk [vmem:[#allocation2] sm:$0xff] %vm119, %v286
    %340 = vst.msk [vmem:[#allocation2 + $0x8] sm:$0xff] %vm119, %v334
    %341 = vrot.lane.b32.xlu0 %v114, 124
    %v342 = vpop.permute.xlu0 %341
    %343 = vrot.lane.b32.xlu0 %v114, 92
    %v344 = vpop.permute.xlu0 %343
    %v346 = vsel %vm119, %v342, 0
    %v349 = vsel %vm119, %v344, 0
    %351 = vmatprep.subr.bf16.mxu0 0
    %352 = vmatpush1.bf16.xpose.msra.mxu0 0
    %353 = vmatprep.subr.bf16.mxu0 0
    %354 = vmatpush1.bf16.xpose.msra.mxu0 0
    %355 = vmatprep.subr.bf16.mxu0 0
    %356 = vmatpush1.bf16.xpose.msra.mxu0 0
    %357 = vmatprep.subr.bf16.mxu0 0
    %358 = vmatpush1.bf16.xpose.msra.mxu0 0
    %359 = vmatprep.subr.bf16.mxu0 0
    %360 = vmatpush1.bf16.xpose.msra.mxu0 0
    %361 = vmatprep.subr.bf16.mxu0 0
    %362 = vmatpush1.bf16.xpose.msra.mxu0 0
    %363 = vmatprep.subr.bf16.mxu0 0
    %364 = vmatpush1.bf16.xpose.msra.mxu0 0
    %365 = vmatprep.subr.bf16.mxu0 0
    %366 = vmatpush1.bf16.xpose.msra.mxu0 %v349
    %367 = vmatprep.subr.bf16.mxu0 0
    %368 = vmatpush2.bf16.xpose.msra.mxu0 0
    %369 = vmatprep.subr.bf16.mxu0 0
    %370 = vmatpush2.bf16.xpose.msra.mxu0 0
    %371 = vmatprep.subr.bf16.mxu0 0
    %372 = vmatpush2.bf16.xpose.msra.mxu0 0
    %373 = vmatprep.subr.bf16.mxu0 0
    %374 = vmatpush2.bf16.xpose.msra.mxu0 0
    %375 = vmatprep.subr.bf16.mxu0 0
    %376 = vmatpush2.bf16.xpose.msra.mxu0 0
    %377 = vmatprep.subr.bf16.mxu0 0
    %378 = vmatpush2.bf16.xpose.msra.mxu0 0
    %379 = vmatprep.subr.bf16.mxu0 0
    %380 = vmatpush2.bf16.xpose.msra.mxu0 0
    %381 = vmatprep.subr.bf16.mxu0 0
    %382 = vmatpush2.bf16.xpose.msra.mxu0 0
    %383 = vmatprep.mubr.bf16.mxu0 0
    %384 = vmatmul.mubr.bf16.gmra.mxu0 %v346
    %v385 = vpop.f32.mrf.mxu0
    %v386 = vadd.f32 0.0, %v385
    %v387 = vpop.f32.mrf.mxu0
    %v388 = vpop.f32.mrf.mxu0
    %v389 = vpop.f32.mrf.mxu0
    %390 = vdwg.mxu0
    %391 = vrot.lane.b32.xlu0 %v115, 124
    %v392 = vpop.permute.xlu0 %391
    %393 = vrot.lane.b32.xlu0 %v115, 92
    %v394 = vpop.permute.xlu0 %393
    %v396 = vsel %vm119, %v392, 0
    %v399 = vsel %vm119, %v394, 0
    %401 = vmatprep.subr.bf16.mxu0 0
    %402 = vmatpush1.bf16.xpose.msra.mxu0 0
    %403 = vmatprep.subr.bf16.mxu0 0
    %404 = vmatpush1.bf16.xpose.msra.mxu0 0
    %405 = vmatprep.subr.bf16.mxu0 0
    %406 = vmatpush1.bf16.xpose.msra.mxu0 0
    %407 = vmatprep.subr.bf16.mxu0 0
    %408 = vmatpush1.bf16.xpose.msra.mxu0 0
    %409 = vmatprep.subr.bf16.mxu0 0
    %410 = vmatpush1.bf16.xpose.msra.mxu0 0
    %411 = vmatprep.subr.bf16.mxu0 0
    %412 = vmatpush1.bf16.xpose.msra.mxu0 0
    %413 = vmatprep.subr.bf16.mxu0 0
    %414 = vmatpush1.bf16.xpose.msra.mxu0 0
    %415 = vmatprep.subr.bf16.mxu0 0
    %416 = vmatpush1.bf16.xpose.msra.mxu0 %v399
    %417 = vmatprep.subr.bf16.mxu0 0
    %418 = vmatpush2.bf16.xpose.msra.mxu0 0
    %419 = vmatprep.subr.bf16.mxu0 0
    %420 = vmatpush2.bf16.xpose.msra.mxu0 0
    %421 = vmatprep.subr.bf16.mxu0 0
    %422 = vmatpush2.bf16.xpose.msra.mxu0 0
    %423 = vmatprep.subr.bf16.mxu0 0
    %424 = vmatpush2.bf16.xpose.msra.mxu0 0
    %425 = vmatprep.subr.bf16.mxu0 0
    %426 = vmatpush2.bf16.xpose.msra.mxu0 0
    %427 = vmatprep.subr.bf16.mxu0 0
    %428 = vmatpush2.bf16.xpose.msra.mxu0 0
    %429 = vmatprep.subr.bf16.mxu0 0
    %430 = vmatpush2.bf16.xpose.msra.mxu0 0
    %431 = vmatprep.subr.bf16.mxu0 0
    %432 = vmatpush2.bf16.xpose.msra.mxu0 0
    %433 = vmatprep.mubr.bf16.mxu0 0
    %434 = vmatmul.mubr.bf16.gmra.mxu0 %v396
    %v435 = vpop.f32.mrf.mxu0
    %v436 = vadd.f32 0.0, %v435
    %v437 = vpop.f32.mrf.mxu0
    %v438 = vpop.f32.mrf.mxu0
    %v439 = vpop.f32.mrf.mxu0
    %440 = vdwg.mxu0
    %v441 = vmul.f32 %v386, 0.5
    %v442 = vmul.f32 %v436, 0.5
    %v443 = vsel %vm217, %v441, -inf
    %444 = vmax.xlane.f32.xlu0 %v443
    %v445 = vpop.xlane.xlu0 %444
    %v446 = vsel %vm217, %v442, -inf
    %447 = vmax.xlane.f32.xlu0 %v446
    %v448 = vpop.xlane.xlu0 %447
    %v449 = vsub.f32 %v441, %v445
    %v450 = vsub.f32 %v442, %v448
    %v451 = vmul.f32 %v449, 1.442695
    %v452 = vpow.pop %v451
    %v453 = vmul.f32 %v450, 1.442695
    %v454 = vpow.pop %v453
    %v455 = vsel %vm217, %v452, 0.0
    %456 = vadd.xlane.f32.xlu0 %v455
    %v457 = vpop.xlane.xlu0 %456
    %v458 = vsel %vm217, %v454, 0.0
    %459 = vadd.xlane.f32.xlu0 %v458
    %v460 = vpop.xlane.xlu0 %459
    %v461 = vrcp.pop %v457
    %v462 = vrcp.pop %v460
    %v463 = vmul.f32 %v452, %v461
    %v464 = vmul.f32 %v454, %v462
    %v465 = vpack.c.bf16 %v463, %v463
    %v466 = vpack.c.bf16 %v464, %v464
    %467 = vrot.lane.b32.xlu0 %v114, 60
    %v468 = vpop.permute.xlu0 %467
    %v470 = vsel %vm217, %v465, 0
    %v473 = vsel %vm247, %v468, 0
    %475 = vmatprep.subr.bf16.mxu0 0
    %476 = vmatpush1.bf16.msra.mxu0 0
    %477 = vmatprep.subr.bf16.mxu0 0
    %478 = vmatpush1.bf16.msra.mxu0 0
    %479 = vmatprep.subr.bf16.mxu0 0
    %480 = vmatpush1.bf16.msra.mxu0 0
    %481 = vmatprep.subr.bf16.mxu0 0
    %482 = vmatpush1.bf16.msra.mxu0 0
    %483 = vmatprep.subr.bf16.mxu0 0
    %484 = vmatpush1.bf16.msra.mxu0 0
    %485 = vmatprep.subr.bf16.mxu0 0
    %486 = vmatpush1.bf16.msra.mxu0 0
    %487 = vmatprep.subr.bf16.mxu0 0
    %488 = vmatpush1.bf16.msra.mxu0 0
    %489 = vmatprep.subr.bf16.mxu0 0
    %490 = vmatpush1.bf16.msra.mxu0 %v473
    %491 = vmatprep.subr.bf16.mxu0 0
    %492 = vmatpush2.bf16.msra.mxu0 0
    %493 = vmatprep.subr.bf16.mxu0 0
    %494 = vmatpush2.bf16.msra.mxu0 0
    %495 = vmatprep.subr.bf16.mxu0 0
    %496 = vmatpush2.bf16.msra.mxu0 0
    %497 = vmatprep.subr.bf16.mxu0 0
    %498 = vmatpush2.bf16.msra.mxu0 0
    %499 = vmatprep.subr.bf16.mxu0 0
    %500 = vmatpush2.bf16.msra.mxu0 0
    %501 = vmatprep.subr.bf16.mxu0 0
    %502 = vmatpush2.bf16.msra.mxu0 0
    %503 = vmatprep.subr.bf16.mxu0 0
    %504 = vmatpush2.bf16.msra.mxu0 0
    %505 = vmatprep.subr.bf16.mxu0 0
    %506 = vmatpush2.bf16.msra.mxu0 0
    %507 = vmatprep.mubr.bf16.mxu0 0
    %508 = vmatmul.mubr.bf16.gmra.mxu0 %v470
    %v509 = vpop.f32.mrf.mxu0
    %v510 = vadd.f32 0.0, %v509
    %v511 = vpop.f32.mrf.mxu0
    %v512 = vpop.f32.mrf.mxu0
    %v513 = vpop.f32.mrf.mxu0
    %514 = vdwg.mxu0
    %515 = vrot.lane.b32.xlu0 %v115, 60
    %v516 = vpop.permute.xlu0 %515
    %v518 = vsel %vm217, %v466, 0
    %v521 = vsel %vm247, %v516, 0
    %523 = vmatprep.subr.bf16.mxu0 0
    %524 = vmatpush1.bf16.msra.mxu0 0
    %525 = vmatprep.subr.bf16.mxu0 0
    %526 = vmatpush1.bf16.msra.mxu0 0
    %527 = vmatprep.subr.bf16.mxu0 0
    %528 = vmatpush1.bf16.msra.mxu0 0
    %529 = vmatprep.subr.bf16.mxu0 0
    %530 = vmatpush1.bf16.msra.mxu0 0
    %531 = vmatprep.subr.bf16.mxu0 0
    %532 = vmatpush1.bf16.msra.mxu0 0
    %533 = vmatprep.subr.bf16.mxu0 0
    %534 = vmatpush1.bf16.msra.mxu0 0
    %535 = vmatprep.subr.bf16.mxu0 0
    %536 = vmatpush1.bf16.msra.mxu0 0
    %537 = vmatprep.subr.bf16.mxu0 0
    %538 = vmatpush1.bf16.msra.mxu0 %v521
    %539 = vmatprep.subr.bf16.mxu0 0
    %540 = vmatpush2.bf16.msra.mxu0 0
    %541 = vmatprep.subr.bf16.mxu0 0
    %542 = vmatpush2.bf16.msra.mxu0 0
    %543 = vmatprep.subr.bf16.mxu0 0
    %544 = vmatpush2.bf16.msra.mxu0 0
    %545 = vmatprep.subr.bf16.mxu0 0
    %546 = vmatpush2.bf16.msra.mxu0 0
    %547 = vmatprep.subr.bf16.mxu0 0
    %548 = vmatpush2.bf16.msra.mxu0 0
    %549 = vmatprep.subr.bf16.mxu0 0
    %550 = vmatpush2.bf16.msra.mxu0 0
    %551 = vmatprep.subr.bf16.mxu0 0
    %552 = vmatpush2.bf16.msra.mxu0 0
    %553 = vmatprep.subr.bf16.mxu0 0
    %554 = vmatpush2.bf16.msra.mxu0 0
    %555 = vmatprep.mubr.bf16.mxu0 0
    %556 = vmatmul.mubr.bf16.gmra.mxu0 %v518
    %v557 = vpop.f32.mrf.mxu0
    %v558 = vadd.f32 0.0, %v557
    %v559 = vpop.f32.mrf.mxu0
    %v560 = vpop.f32.mrf.mxu0
    %v561 = vpop.f32.mrf.mxu0
    %562 = vdwg.mxu0
    %565 = vrot.lane.b32.xlu0 %v510, 4
    %v566 = vpop.permute.xlu0 %565
    %567 = vrot.lane.b32.xlu0 %v558, 4
    %v568 = vpop.permute.xlu0 %567
    %vm571 = vcmask 64544
    %572 = vst.msk [vmem:[#allocation2] sm:$0xff] %vm571, %v566
    %573 = vst.msk [vmem:[#allocation2 + $0x8] sm:$0xff] %vm571, %v568
    %574 = vrot.lane.b32.xlu0 %v114, 120
    %v575 = vpop.permute.xlu0 %574
    %576 = vrot.lane.b32.xlu0 %v114, 88
    %v577 = vpop.permute.xlu0 %576
    %v579 = vsel %vm119, %v575, 0
    %v582 = vsel %vm119, %v577, 0
    %584 = vmatprep.subr.bf16.mxu0 0
    %585 = vmatpush1.bf16.xpose.msra.mxu0 0
    %586 = vmatprep.subr.bf16.mxu0 0
    %587 = vmatpush1.bf16.xpose.msra.mxu0 0
    %588 = vmatprep.subr.bf16.mxu0 0
    %589 = vmatpush1.bf16.xpose.msra.mxu0 0
    %590 = vmatprep.subr.bf16.mxu0 0
    %591 = vmatpush1.bf16.xpose.msra.mxu0 0
    %592 = vmatprep.subr.bf16.mxu0 0
    %593 = vmatpush1.bf16.xpose.msra.mxu0 0
    %594 = vmatprep.subr.bf16.mxu0 0
    %595 = vmatpush1.bf16.xpose.msra.mxu0 0
    %596 = vmatprep.subr.bf16.mxu0 0
    %597 = vmatpush1.bf16.xpose.msra.mxu0 0
    %598 = vmatprep.subr.bf16.mxu0 0
    %599 = vmatpush1.bf16.xpose.msra.mxu0 %v582
    %600 = vmatprep.subr.bf16.mxu0 0
    %601 = vmatpush2.bf16.xpose.msra.mxu0 0
    %602 = vmatprep.subr.bf16.mxu0 0
    %603 = vmatpush2.bf16.xpose.msra.mxu0 0
    %604 = vmatprep.subr.bf16.mxu0 0
    %605 = vmatpush2.bf16.xpose.msra.mxu0 0
    %606 = vmatprep.subr.bf16.mxu0 0
    %607 = vmatpush2.bf16.xpose.msra.mxu0 0
    %608 = vmatprep.subr.bf16.mxu0 0
    %609 = vmatpush2.bf16.xpose.msra.mxu0 0
    %610 = vmatprep.subr.bf16.mxu0 0
    %611 = vmatpush2.bf16.xpose.msra.mxu0 0
    %612 = vmatprep.subr.bf16.mxu0 0
    %613 = vmatpush2.bf16.xpose.msra.mxu0 0
    %614 = vmatprep.subr.bf16.mxu0 0
    %615 = vmatpush2.bf16.xpose.msra.mxu0 0
    %616 = vmatprep.mubr.bf16.mxu0 0
    %617 = vmatmul.mubr.bf16.gmra.mxu0 %v579
    %v618 = vpop.f32.mrf.mxu0
    %v619 = vadd.f32 0.0, %v618
    %v620 = vpop.f32.mrf.mxu0
    %v621 = vpop.f32.mrf.mxu0
    %v622 = vpop.f32.mrf.mxu0
    %623 = vdwg.mxu0
    %624 = vrot.lane.b32.xlu0 %v115, 120
    %v625 = vpop.permute.xlu0 %624
    %626 = vrot.lane.b32.xlu0 %v115, 88
    %v627 = vpop.permute.xlu0 %626
    %v629 = vsel %vm119, %v625, 0
    %v632 = vsel %vm119, %v627, 0
    %634 = vmatprep.subr.bf16.mxu0 0
    %635 = vmatpush1.bf16.xpose.msra.mxu0 0
    %636 = vmatprep.subr.bf16.mxu0 0
    %637 = vmatpush1.bf16.xpose.msra.mxu0 0
    %638 = vmatprep.subr.bf16.mxu0 0
    %639 = vmatpush1.bf16.xpose.msra.mxu0 0
    %640 = vmatprep.subr.bf16.mxu0 0
    %641 = vmatpush1.bf16.xpose.msra.mxu0 0
    %642 = vmatprep.subr.bf16.mxu0 0
    %643 = vmatpush1.bf16.xpose.msra.mxu0 0
    %644 = vmatprep.subr.bf16.mxu0 0
    %645 = vmatpush1.bf16.xpose.msra.mxu0 0
    %646 = vmatprep.subr.bf16.mxu0 0
    %647 = vmatpush1.bf16.xpose.msra.mxu0 0
    %648 = vmatprep.subr.bf16.mxu0 0
    %649 = vmatpush1.bf16.xpose.msra.mxu0 %v632
    %650 = vmatprep.subr.bf16.mxu0 0
    %651 = vmatpush2.bf16.xpose.msra.mxu0 0
    %652 = vmatprep.subr.bf16.mxu0 0
    %653 = vmatpush2.bf16.xpose.msra.mxu0 0
    %654 = vmatprep.subr.bf16.mxu0 0
    %655 = vmatpush2.bf16.xpose.msra.mxu0 0
    %656 = vmatprep.subr.bf16.mxu0 0
    %657 = vmatpush2.bf16.xpose.msra.mxu0 0
    %658 = vmatprep.subr.bf16.mxu0 0
    %659 = vmatpush2.bf16.xpose.msra.mxu0 0
    %660 = vmatprep.subr.bf16.mxu0 0
    %661 = vmatpush2.bf16.xpose.msra.mxu0 0
    %662 = vmatprep.subr.bf16.mxu0 0
    %663 = vmatpush2.bf16.xpose.msra.mxu0 0
    %664 = vmatprep.subr.bf16.mxu0 0
    %665 = vmatpush2.bf16.xpose.msra.mxu0 0
    %666 = vmatprep.mubr.bf16.mxu0 0
    %667 = vmatmul.mubr.bf16.gmra.mxu0 %v629
    %v668 = vpop.f32.mrf.mxu0
    %v669 = vadd.f32 0.0, %v668
    %v670 = vpop.f32.mrf.mxu0
    %v671 = vpop.f32.mrf.mxu0
    %v672 = vpop.f32.mrf.mxu0
    %673 = vdwg.mxu0
    %v674 = vmul.f32 %v619, 0.5
    %v675 = vmul.f32 %v669, 0.5
    %v676 = vsel %vm217, %v674, -inf
    %677 = vmax.xlane.f32.xlu0 %v676
    %v678 = vpop.xlane.xlu0 %677
    %v679 = vsel %vm217, %v675, -inf
    %680 = vmax.xlane.f32.xlu0 %v679
    %v681 = vpop.xlane.xlu0 %680
    %v682 = vsub.f32 %v674, %v678
    %v683 = vsub.f32 %v675, %v681
    %v684 = vmul.f32 %v682, 1.442695
    %v685 = vpow.pop %v684
    %v686 = vmul.f32 %v683, 1.442695
    %v687 = vpow.pop %v686
    %v688 = vsel %vm217, %v685, 0.0
    %689 = vadd.xlane.f32.xlu0 %v688
    %v690 = vpop.xlane.xlu0 %689
    %v691 = vsel %vm217, %v687, 0.0
    %692 = vadd.xlane.f32.xlu0 %v691
    %v693 = vpop.xlane.xlu0 %692
    %v694 = vrcp.pop %v690
    %v695 = vrcp.pop %v693
    %v696 = vmul.f32 %v685, %v694
    %v697 = vmul.f32 %v687, %v695
    %v698 = vpack.c.bf16 %v696, %v696
    %v699 = vpack.c.bf16 %v697, %v697
    %700 = vrot.lane.b32.xlu0 %v114, 56
    %v701 = vpop.permute.xlu0 %700
    %v703 = vsel %vm217, %v698, 0
    %v706 = vsel %vm247, %v701, 0
    %708 = vmatprep.subr.bf16.mxu0 0
    %709 = vmatpush1.bf16.msra.mxu0 0
    %710 = vmatprep.subr.bf16.mxu0 0
    %711 = vmatpush1.bf16.msra.mxu0 0
    %712 = vmatprep.subr.bf16.mxu0 0
    %713 = vmatpush1.bf16.msra.mxu0 0
    %714 = vmatprep.subr.bf16.mxu0 0
    %715 = vmatpush1.bf16.msra.mxu0 0
    %716 = vmatprep.subr.bf16.mxu0 0
    %717 = vmatpush1.bf16.msra.mxu0 0
    %718 = vmatprep.subr.bf16.mxu0 0
    %719 = vmatpush1.bf16.msra.mxu0 0
    %720 = vmatprep.subr.bf16.mxu0 0
    %721 = vmatpush1.bf16.msra.mxu0 0
    %722 = vmatprep.subr.bf16.mxu0 0
    %723 = vmatpush1.bf16.msra.mxu0 %v706
    %724 = vmatprep.subr.bf16.mxu0 0
    %725 = vmatpush2.bf16.msra.mxu0 0
    %726 = vmatprep.subr.bf16.mxu0 0
    %727 = vmatpush2.bf16.msra.mxu0 0
    %728 = vmatprep.subr.bf16.mxu0 0
    %729 = vmatpush2.bf16.msra.mxu0 0
    %730 = vmatprep.subr.bf16.mxu0 0
    %731 = vmatpush2.bf16.msra.mxu0 0
    %732 = vmatprep.subr.bf16.mxu0 0
    %733 = vmatpush2.bf16.msra.mxu0 0
    %734 = vmatprep.subr.bf16.mxu0 0
    %735 = vmatpush2.bf16.msra.mxu0 0
    %736 = vmatprep.subr.bf16.mxu0 0
    %737 = vmatpush2.bf16.msra.mxu0 0
    %738 = vmatprep.subr.bf16.mxu0 0
    %739 = vmatpush2.bf16.msra.mxu0 0
    %740 = vmatprep.mubr.bf16.mxu0 0
    %741 = vmatmul.mubr.bf16.gmra.mxu0 %v703
    %v742 = vpop.f32.mrf.mxu0
    %v743 = vadd.f32 0.0, %v742
    %v744 = vpop.f32.mrf.mxu0
    %v745 = vpop.f32.mrf.mxu0
    %v746 = vpop.f32.mrf.mxu0
    %747 = vdwg.mxu0
    %748 = vrot.lane.b32.xlu0 %v115, 56
    %v749 = vpop.permute.xlu0 %748
    %v751 = vsel %vm217, %v699, 0
    %v754 = vsel %vm247, %v749, 0
    %756 = vmatprep.subr.bf16.mxu0 0
    %757 = vmatpush1.bf16.msra.mxu0 0
    %758 = vmatprep.subr.bf16.mxu0 0
    %759 = vmatpush1.bf16.msra.mxu0 0
    %760 = vmatprep.subr.bf16.mxu0 0
    %761 = vmatpush1.bf16.msra.mxu0 0
    %762 = vmatprep.subr.bf16.mxu0 0
    %763 = vmatpush1.bf16.msra.mxu0 0
    %764 = vmatprep.subr.bf16.mxu0 0
    %765 = vmatpush1.bf16.msra.mxu0 0
    %766 = vmatprep.subr.bf16.mxu0 0
    %767 = vmatpush1.bf16.msra.mxu0 0
    %768 = vmatprep.subr.bf16.mxu0 0
    %769 = vmatpush1.bf16.msra.mxu0 0
    %770 = vmatprep.subr.bf16.mxu0 0
    %771 = vmatpush1.bf16.msra.mxu0 %v754
    %772 = vmatprep.subr.bf16.mxu0 0
    %773 = vmatpush2.bf16.msra.mxu0 0
    %774 = vmatprep.subr.bf16.mxu0 0
    %775 = vmatpush2.bf16.msra.mxu0 0
    %776 = vmatprep.subr.bf16.mxu0 0
    %777 = vmatpush2.bf16.msra.mxu0 0
    %778 = vmatprep.subr.bf16.mxu0 0
    %779 = vmatpush2.bf16.msra.mxu0 0
    %780 = vmatprep.subr.bf16.mxu0 0
    %781 = vmatpush2.bf16.msra.mxu0 0
    %782 = vmatprep.subr.bf16.mxu0 0
    %783 = vmatpush2.bf16.msra.mxu0 0
    %784 = vmatprep.subr.bf16.mxu0 0
    %785 = vmatpush2.bf16.msra.mxu0 0
    %786 = vmatprep.subr.bf16.mxu0 0
    %787 = vmatpush2.bf16.msra.mxu0 0
    %788 = vmatprep.mubr.bf16.mxu0 0
    %789 = vmatmul.mubr.bf16.gmra.mxu0 %v751
    %v790 = vpop.f32.mrf.mxu0
    %v791 = vadd.f32 0.0, %v790
    %v792 = vpop.f32.mrf.mxu0
    %v793 = vpop.f32.mrf.mxu0
    %v794 = vpop.f32.mrf.mxu0
    %795 = vdwg.mxu0
    %798 = vrot.lane.b32.xlu0 %v743, 8
    %v799 = vpop.permute.xlu0 %798
    %800 = vrot.lane.b32.xlu0 %v791, 8
    %v801 = vpop.permute.xlu0 %800
    %vm804 = vcmask 97344
    %805 = vst.msk [vmem:[#allocation2] sm:$0xff] %vm804, %v799
    %806 = vst.msk [vmem:[#allocation2 + $0x8] sm:$0xff] %vm804, %v801
    %807 = vrot.lane.b32.xlu0 %v114, 116
    %v808 = vpop.permute.xlu0 %807
    %809 = vrot.lane.b32.xlu0 %v114, 84
    %v810 = vpop.permute.xlu0 %809
    %v812 = vsel %vm119, %v808, 0
    %v815 = vsel %vm119, %v810, 0
    %817 = vmatprep.subr.bf16.mxu0 0
    %818 = vmatpush1.bf16.xpose.msra.mxu0 0
    %819 = vmatprep.subr.bf16.mxu0 0
    %820 = vmatpush1.bf16.xpose.msra.mxu0 0
    %821 = vmatprep.subr.bf16.mxu0 0
    %822 = vmatpush1.bf16.xpose.msra.mxu0 0
    %823 = vmatprep.subr.bf16.mxu0 0
    %824 = vmatpush1.bf16.xpose.msra.mxu0 0
    %825 = vmatprep.subr.bf16.mxu0 0
    %826 = vmatpush1.bf16.xpose.msra.mxu0 0
    %827 = vmatprep.subr.bf16.mxu0 0
    %828 = vmatpush1.bf16.xpose.msra.mxu0 0
    %829 = vmatprep.subr.bf16.mxu0 0
    %830 = vmatpush1.bf16.xpose.msra.mxu0 0
    %831 = vmatprep.subr.bf16.mxu0 0
    %832 = vmatpush1.bf16.xpose.msra.mxu0 %v815
    %833 = vmatprep.subr.bf16.mxu0 0
    %834 = vmatpush2.bf16.xpose.msra.mxu0 0
    %835 = vmatprep.subr.bf16.mxu0 0
    %836 = vmatpush2.bf16.xpose.msra.mxu0 0
    %837 = vmatprep.subr.bf16.mxu0 0
    %838 = vmatpush2.bf16.xpose.msra.mxu0 0
    %839 = vmatprep.subr.bf16.mxu0 0
    %840 = vmatpush2.bf16.xpose.msra.mxu0 0
    %841 = vmatprep.subr.bf16.mxu0 0
    %842 = vmatpush2.bf16.xpose.msra.mxu0 0
    %843 = vmatprep.subr.bf16.mxu0 0
    %844 = vmatpush2.bf16.xpose.msra.mxu0 0
    %845 = vmatprep.subr.bf16.mxu0 0
    %846 = vmatpush2.bf16.xpose.msra.mxu0 0
    %847 = vmatprep.subr.bf16.mxu0 0
    %848 = vmatpush2.bf16.xpose.msra.mxu0 0
    %849 = vmatprep.mubr.bf16.mxu0 0
    %850 = vmatmul.mubr.bf16.gmra.mxu0 %v812
    %v851 = vpop.f32.mrf.mxu0
    %v852 = vadd.f32 0.0, %v851
    %v853 = vpop.f32.mrf.mxu0
    %v854 = vpop.f32.mrf.mxu0
    %v855 = vpop.f32.mrf.mxu0
    %856 = vdwg.mxu0
    %857 = vrot.lane.b32.xlu0 %v115, 116
    %v858 = vpop.permute.xlu0 %857
    %859 = vrot.lane.b32.xlu0 %v115, 84
    %v860 = vpop.permute.xlu0 %859
    %v862 = vsel %vm119, %v858, 0
    %v865 = vsel %vm119, %v860, 0
    %867 = vmatprep.subr.bf16.mxu0 0
    %868 = vmatpush1.bf16.xpose.msra.mxu0 0
    %869 = vmatprep.subr.bf16.mxu0 0
    %870 = vmatpush1.bf16.xpose.msra.mxu0 0
    %871 = vmatprep.subr.bf16.mxu0 0
    %872 = vmatpush1.bf16.xpose.msra.mxu0 0
    %873 = vmatprep.subr.bf16.mxu0 0
    %874 = vmatpush1.bf16.xpose.msra.mxu0 0
    %875 = vmatprep.subr.bf16.mxu0 0
    %876 = vmatpush1.bf16.xpose.msra.mxu0 0
    %877 = vmatprep.subr.bf16.mxu0 0
    %878 = vmatpush1.bf16.xpose.msra.mxu0 0
    %879 = vmatprep.subr.bf16.mxu0 0
    %880 = vmatpush1.bf16.xpose.msra.mxu0 0
    %881 = vmatprep.subr.bf16.mxu0 0
    %882 = vmatpush1.bf16.xpose.msra.mxu0 %v865
    %883 = vmatprep.subr.bf16.mxu0 0
    %884 = vmatpush2.bf16.xpose.msra.mxu0 0
    %885 = vmatprep.subr.bf16.mxu0 0
    %886 = vmatpush2.bf16.xpose.msra.mxu0 0
    %887 = vmatprep.subr.bf16.mxu0 0
    %888 = vmatpush2.bf16.xpose.msra.mxu0 0
    %889 = vmatprep.subr.bf16.mxu0 0
    %890 = vmatpush2.bf16.xpose.msra.mxu0 0
    %891 = vmatprep.subr.bf16.mxu0 0
    %892 = vmatpush2.bf16.xpose.msra.mxu0 0
    %893 = vmatprep.subr.bf16.mxu0 0
    %894 = vmatpush2.bf16.xpose.msra.mxu0 0
    %895 = vmatprep.subr.bf16.mxu0 0
    %896 = vmatpush2.bf16.xpose.msra.mxu0 0
    %897 = vmatprep.subr.bf16.mxu0 0
    %898 = vmatpush2.bf16.xpose.msra.mxu0 0
    %899 = vmatprep.mubr.bf16.mxu0 0
    %900 = vmatmul.mubr.bf16.gmra.mxu0 %v862
    %v901 = vpop.f32.mrf.mxu0
    %v902 = vadd.f32 0.0, %v901
    %v903 = vpop.f32.mrf.mxu0
    %v904 = vpop.f32.mrf.mxu0
    %v905 = vpop.f32.mrf.mxu0
    %906 = vdwg.mxu0
    %v907 = vmul.f32 %v852, 0.5
    %v908 = vmul.f32 %v902, 0.5
    %v909 = vsel %vm217, %v907, -inf
    %910 = vmax.xlane.f32.xlu0 %v909
    %v911 = vpop.xlane.xlu0 %910
    %v912 = vsel %vm217, %v908, -inf
    %913 = vmax.xlane.f32.xlu0 %v912
    %v914 = vpop.xlane.xlu0 %913
    %v915 = vsub.f32 %v907, %v911
    %v916 = vsub.f32 %v908, %v914
    %v917 = vmul.f32 %v915, 1.442695
    %v918 = vpow.pop %v917
    %v919 = vmul.f32 %v916, 1.442695
    %v920 = vpow.pop %v919
    %v921 = vsel %vm217, %v918, 0.0
    %922 = vadd.xlane.f32.xlu0 %v921
    %v923 = vpop.xlane.xlu0 %922
    %v924 = vsel %vm217, %v920, 0.0
    %925 = vadd.xlane.f32.xlu0 %v924
    %v926 = vpop.xlane.xlu0 %925
    %v927 = vrcp.pop %v923
    %v928 = vrcp.pop %v926
    %v929 = vmul.f32 %v918, %v927
    %v930 = vmul.f32 %v920, %v928
    %v931 = vpack.c.bf16 %v929, %v929
    %v932 = vpack.c.bf16 %v930, %v930
    %933 = vrot.lane.b32.xlu0 %v114, 52
    %v934 = vpop.permute.xlu0 %933
    %v936 = vsel %vm217, %v931, 0
    %v939 = vsel %vm247, %v934, 0
    %941 = vmatprep.subr.bf16.mxu0 0
    %942 = vmatpush1.bf16.msra.mxu0 0
    %943 = vmatprep.subr.bf16.mxu0 0
    %944 = vmatpush1.bf16.msra.mxu0 0
    %945 = vmatprep.subr.bf16.mxu0 0
    %946 = vmatpush1.bf16.msra.mxu0 0
    %947 = vmatprep.subr.bf16.mxu0 0
    %948 = vmatpush1.bf16.msra.mxu0 0
    %949 = vmatprep.subr.bf16.mxu0 0
    %950 = vmatpush1.bf16.msra.mxu0 0
    %951 = vmatprep.subr.bf16.mxu0 0
    %952 = vmatpush1.bf16.msra.mxu0 0
    %953 = vmatprep.subr.bf16.mxu0 0
    %954 = vmatpush1.bf16.msra.mxu0 0
    %955 = vmatprep.subr.bf16.mxu0 0
    %956 = vmatpush1.bf16.msra.mxu0 %v939
    %957 = vmatprep.subr.bf16.mxu0 0
    %958 = vmatpush2.bf16.msra.mxu0 0
    %959 = vmatprep.subr.bf16.mxu0 0
    %960 = vmatpush2.bf16.msra.mxu0 0
    %961 = vmatprep.subr.bf16.mxu0 0
    %962 = vmatpush2.bf16.msra.mxu0 0
    %963 = vmatprep.subr.bf16.mxu0 0
    %964 = vmatpush2.bf16.msra.mxu0 0
    %965 = vmatprep.subr.bf16.mxu0 0
    %966 = vmatpush2.bf16.msra.mxu0 0
    %967 = vmatprep.subr.bf16.mxu0 0
    %968 = vmatpush2.bf16.msra.mxu0 0
    %969 = vmatprep.subr.bf16.mxu0 0
    %970 = vmatpush2.bf16.msra.mxu0 0
    %971 = vmatprep.subr.bf16.mxu0 0
    %972 = vmatpush2.bf16.msra.mxu0 0
    %973 = vmatprep.mubr.bf16.mxu0 0
    %974 = vmatmul.mubr.bf16.gmra.mxu0 %v936
    %v975 = vpop.f32.mrf.mxu0
    %v976 = vadd.f32 0.0, %v975
    %v977 = vpop.f32.mrf.mxu0
    %v978 = vpop.f32.mrf.mxu0
    %v979 = vpop.f32.mrf.mxu0
    %980 = vdwg.mxu0
    %981 = vrot.lane.b32.xlu0 %v115, 52
    %v982 = vpop.permute.xlu0 %981
    %v984 = vsel %vm217, %v932, 0
    %v987 = vsel %vm247, %v982, 0
    %989 = vmatprep.subr.bf16.mxu0 0
    %990 = vmatpush1.bf16.msra.mxu0 0
    %991 = vmatprep.subr.bf16.mxu0 0
    %992 = vmatpush1.bf16.msra.mxu0 0
    %993 = vmatprep.subr.bf16.mxu0 0
    %994 = vmatpush1.bf16.msra.mxu0 0
    %995 = vmatprep.subr.bf16.mxu0 0
    %996 = vmatpush1.bf16.msra.mxu0 0
    %997 = vmatprep.subr.bf16.mxu0 0
    %998 = vmatpush1.bf16.msra.mxu0 0
    %999 = vmatprep.subr.bf16.mxu0 0
    %1000 = vmatpush1.bf16.msra.mxu0 0
    %1001 = vmatprep.subr.bf16.mxu0 0
    %1002 = vmatpush1.bf16.msra.mxu0 0
    %1003 = vmatprep.subr.bf16.mxu0 0
    %1004 = vmatpush1.bf16.msra.mxu0 %v987
    %1005 = vmatprep.subr.bf16.mxu0 0
    %1006 = vmatpush2.bf16.msra.mxu0 0
    %1007 = vmatprep.subr.bf16.mxu0 0
    %1008 = vmatpush2.bf16.msra.mxu0 0
    %1009 = vmatprep.subr.bf16.mxu0 0
    %1010 = vmatpush2.bf16.msra.mxu0 0
    %1011 = vmatprep.subr.bf16.mxu0 0
    %1012 = vmatpush2.bf16.msra.mxu0 0
    %1013 = vmatprep.subr.bf16.mxu0 0
    %1014 = vmatpush2.bf16.msra.mxu0 0
    %1015 = vmatprep.subr.bf16.mxu0 0
    %1016 = vmatpush2.bf16.msra.mxu0 0
    %1017 = vmatprep.subr.bf16.mxu0 0
    %1018 = vmatpush2.bf16.msra.mxu0 0
    %1019 = vmatprep.subr.bf16.mxu0 0
    %1020 = vmatpush2.bf16.msra.mxu0 0
    %1021 = vmatprep.mubr.bf16.mxu0 0
    %1022 = vmatmul.mubr.bf16.gmra.mxu0 %v984
    %v1023 = vpop.f32.mrf.mxu0
    %v1024 = vadd.f32 0.0, %v1023
    %v1025 = vpop.f32.mrf.mxu0
    %v1026 = vpop.f32.mrf.mxu0
    %v1027 = vpop.f32.mrf.mxu0
    %1028 = vdwg.mxu0
    %1031 = vrot.lane.b32.xlu0 %v976, 12
    %v1032 = vpop.permute.xlu0 %1031
    %1033 = vrot.lane.b32.xlu0 %v1024, 12
    %v1034 = vpop.permute.xlu0 %1033
    %vm1037 = vcmask 130144
    %1038 = vst.msk [vmem:[#allocation2] sm:$0xff] %vm1037, %v1032
    %1039 = vst.msk [vmem:[#allocation2 + $0x8] sm:$0xff] %vm1037, %v1034
    %1040 = vrot.lane.b32.xlu0 %v114, 112
    %v1041 = vpop.permute.xlu0 %1040
    %1042 = vrot.lane.b32.xlu0 %v114, 80
    %v1043 = vpop.permute.xlu0 %1042
    %v1045 = vsel %vm119, %v1041, 0
    %v1048 = vsel %vm119, %v1043, 0
    %1050 = vmatprep.subr.bf16.mxu0 0
    %1051 = vmatpush1.bf16.xpose.msra.mxu0 0
    %1052 = vmatprep.subr.bf16.mxu0 0
    %1053 = vmatpush1.bf16.xpose.msra.mxu0 0
    %1054 = vmatprep.subr.bf16.mxu0 0
    %1055 = vmatpush1.bf16.xpose.msra.mxu0 0
    %1056 = vmatprep.subr.bf16.mxu0 0
    %1057 = vmatpush1.bf16.xpose.msra.mxu0 0
    %1058 = vmatprep.subr.bf16.mxu0 0
    %1059 = vmatpush1.bf16.xpose.msra.mxu0 0
    %1060 = vmatprep.subr.bf16.mxu0 0
    %1061 = vmatpush1.bf16.xpose.msra.mxu0 0
    %1062 = vmatprep.subr.bf16.mxu0 0
    %1063 = vmatpush1.bf16.xpose.msra.mxu0 0
    %1064 = vmatprep.subr.bf16.mxu0 0
    %1065 = vmatpush1.bf16.xpose.msra.mxu0 %v1048
    %1066 = vmatprep.subr.bf16.mxu0 0
    %1067 = vmatpush2.bf16.xpose.msra.mxu0 0
    %1068 = vmatprep.subr.bf16.mxu0 0
    %1069 = vmatpush2.bf16.xpose.msra.mxu0 0
    %1070 = vmatprep.subr.bf16.mxu0 0
    %1071 = vmatpush2.bf16.xpose.msra.mxu0 0
    %1072 = vmatprep.subr.bf16.mxu0 0
    %1073 = vmatpush2.bf16.xpose.msra.mxu0 0
    %1074 = vmatprep.subr.bf16.mxu0 0
    %1075 = vmatpush2.bf16.xpose.msra.mxu0 0
    %1076 = vmatprep.subr.bf16.mxu0 0
    %1077 = vmatpush2.bf16.xpose.msra.mxu0 0
    %1078 = vmatprep.subr.bf16.mxu0 0
    %1079 = vmatpush2.bf16.xpose.msra.mxu0 0
    %1080 = vmatprep.subr.bf16.mxu0 0
    %1081 = vmatpush2.bf16.xpose.msra.mxu0 0
    %1082 = vmatprep.mubr.bf16.mxu0 0
    %1083 = vmatmul.mubr.bf16.gmra.mxu0 %v1045
    %v1084 = vpop.f32.mrf.mxu0
    %v1085 = vadd.f32 0.0, %v1084
    %v1086 = vpop.f32.mrf.mxu0
    %v1087 = vpop.f32.mrf.mxu0
    %v1088 = vpop.f32.mrf.mxu0
    %1089 = vdwg.mxu0
    %1090 = vrot.lane.b32.xlu0 %v115, 112
    %v1091 = vpop.permute.xlu0 %1090
    %1092 = vrot.lane.b32.xlu0 %v115, 80
    %v1093 = vpop.permute.xlu0 %1092
    %v1095 = vsel %vm119, %v1091, 0
    %v1098 = vsel %vm119, %v1093, 0
    %1100 = vmatprep.subr.bf16.mxu0 0
    %1101 = vmatpush1.bf16.xpose.msra.mxu0 0
    %1102 = vmatprep.subr.bf16.mxu0 0
    %1103 = vmatpush1.bf16.xpose.msra.mxu0 0
    %1104 = vmatprep.subr.bf16.mxu0 0
    %1105 = vmatpush1.bf16.xpose.msra.mxu0 0
    %1106 = vmatprep.subr.bf16.mxu0 0
    %1107 = vmatpush1.bf16.xpose.msra.mxu0 0
    %1108 = vmatprep.subr.bf16.mxu0 0
    %1109 = vmatpush1.bf16.xpose.msra.mxu0 0
    %1110 = vmatprep.subr.bf16.mxu0 0
    %1111 = vmatpush1.bf16.xpose.msra.mxu0 0
    %1112 = vmatprep.subr.bf16.mxu0 0
    %1113 = vmatpush1.bf16.xpose.msra.mxu0 0
    %1114 = vmatprep.subr.bf16.mxu0 0
    %1115 = vmatpush1.bf16.xpose.msra.mxu0 %v1098
    %1116 = vmatprep.subr.bf16.mxu0 0
    %1117 = vmatpush2.bf16.xpose.msra.mxu0 0
    %1118 = vmatprep.subr.bf16.mxu0 0
    %1119 = vmatpush2.bf16.xpose.msra.mxu0 0
    %1120 = vmatprep.subr.bf16.mxu0 0
    %1121 = vmatpush2.bf16.xpose.msra.mxu0 0
    %1122 = vmatprep.subr.bf16.mxu0 0
    %1123 = vmatpush2.bf16.xpose.msra.mxu0 0
    %1124 = vmatprep.subr.bf16.mxu0 0
    %1125 = vmatpush2.bf16.xpose.msra.mxu0 0
    %1126 = vmatprep.subr.bf16.mxu0 0
    %1127 = vmatpush2.bf16.xpose.msra.mxu0 0
    %1128 = vmatprep.subr.bf16.mxu0 0
    %1129 = vmatpush2.bf16.xpose.msra.mxu0 0
    %1130 = vmatprep.subr.bf16.mxu0 0
    %1131 = vmatpush2.bf16.xpose.msra.mxu0 0
    %1132 = vmatprep.mubr.bf16.mxu0 0
    %1133 = vmatmul.mubr.bf16.gmra.mxu0 %v1095
    %v1134 = vpop.f32.mrf.mxu0
    %v1135 = vadd.f32 0.0, %v1134
    %v1136 = vpop.f32.mrf.mxu0
    %v1137 = vpop.f32.mrf.mxu0
    %v1138 = vpop.f32.mrf.mxu0
    %1139 = vdwg.mxu0
    %v1140 = vmul.f32 %v1085, 0.5
    %v1141 = vmul.f32 %v1135, 0.5
    %v1142 = vsel %vm217, %v1140, -inf
    %1143 = vmax.xlane.f32.xlu0 %v1142
    %v1144 = vpop.xlane.xlu0 %1143
    %v1145 = vsel %vm217, %v1141, -inf
    %1146 = vmax.xlane.f32.xlu0 %v1145
    %v1147 = vpop.xlane.xlu0 %1146
    %v1148 = vsub.f32 %v1140, %v1144
    %v1149 = vsub.f32 %v1141, %v1147
    %v1150 = vmul.f32 %v1148, 1.442695
    %v1151 = vpow.pop %v1150
    %v1152 = vmul.f32 %v1149, 1.442695
    %v1153 = vpow.pop %v1152
    %v1154 = vsel %vm217, %v1151, 0.0
    %1155 = vadd.xlane.f32.xlu0 %v1154
    %v1156 = vpop.xlane.xlu0 %1155
    %v1157 = vsel %vm217, %v1153, 0.0
    %1158 = vadd.xlane.f32.xlu0 %v1157
    %v1159 = vpop.xlane.xlu0 %1158
    %v1160 = vrcp.pop %v1156
    %v1161 = vrcp.pop %v1159
    %v1162 = vmul.f32 %v1151, %v1160
    %v1163 = vmul.f32 %v1153, %v1161
    %v1164 = vpack.c.bf16 %v1162, %v1162
    %v1165 = vpack.c.bf16 %v1163, %v1163
    %1166 = vrot.lane.b32.xlu0 %v114, 48
    %v1167 = vpop.permute.xlu0 %1166
    %v1169 = vsel %vm217, %v1164, 0
    %v1172 = vsel %vm247, %v1167, 0
    %1174 = vmatprep.subr.bf16.mxu0 0
    %1175 = vmatpush1.bf16.msra.mxu0 0
    %1176 = vmatprep.subr.bf16.mxu0 0
    %1177 = vmatpush1.bf16.msra.mxu0 0
    %1178 = vmatprep.subr.bf16.mxu0 0
    %1179 = vmatpush1.bf16.msra.mxu0 0
    %1180 = vmatprep.subr.bf16.mxu0 0
    %1181 = vmatpush1.bf16.msra.mxu0 0
    %1182 = vmatprep.subr.bf16.mxu0 0
    %1183 = vmatpush1.bf16.msra.mxu0 0
    %1184 = vmatprep.subr.bf16.mxu0 0
    %1185 = vmatpush1.bf16.msra.mxu0 0
    %1186 = vmatprep.subr.bf16.mxu0 0
    %1187 = vmatpush1.bf16.msra.mxu0 0
    %1188 = vmatprep.subr.bf16.mxu0 0
    %1189 = vmatpush1.bf16.msra.mxu0 %v1172
    %1190 = vmatprep.subr.bf16.mxu0 0
    %1191 = vmatpush2.bf16.msra.mxu0 0
    %1192 = vmatprep.subr.bf16.mxu0 0
    %1193 = vmatpush2.bf16.msra.mxu0 0
    %1194 = vmatprep.subr.bf16.mxu0 0
    %1195 = vmatpush2.bf16.msra.mxu0 0
    %1196 = vmatprep.subr.bf16.mxu0 0
    %1197 = vmatpush2.bf16.msra.mxu0 0
    %1198 = vmatprep.subr.bf16.mxu0 0
    %1199 = vmatpush2.bf16.msra.mxu0 0
    %1200 = vmatprep.subr.bf16.mxu0 0
    %1201 = vmatpush2.bf16.msra.mxu0 0
    %1202 = vmatprep.subr.bf16.mxu0 0
    %1203 = vmatpush2.bf16.msra.mxu0 0
    %1204 = vmatprep.subr.bf16.mxu0 0
    %1205 = vmatpush2.bf16.msra.mxu0 0
    %1206 = vmatprep.mubr.bf16.mxu0 0
    %1207 = vmatmul.mubr.bf16.gmra.mxu0 %v1169
    %v1208 = vpop.f32.mrf.mxu0
    %v1209 = vadd.f32 0.0, %v1208
    %v1210 = vpop.f32.mrf.mxu0
    %v1211 = vpop.f32.mrf.mxu0
    %v1212 = vpop.f32.mrf.mxu0
    %1213 = vdwg.mxu0
    %1214 = vrot.lane.b32.xlu0 %v115, 48
    %v1215 = vpop.permute.xlu0 %1214
    %v1217 = vsel %vm217, %v1165, 0
    %v1220 = vsel %vm247, %v1215, 0
    %1222 = vmatprep.subr.bf16.mxu0 0
    %1223 = vmatpush1.bf16.msra.mxu0 0
    %1224 = vmatprep.subr.bf16.mxu0 0
    %1225 = vmatpush1.bf16.msra.mxu0 0
    %1226 = vmatprep.subr.bf16.mxu0 0
    %1227 = vmatpush1.bf16.msra.mxu0 0
    %1228 = vmatprep.subr.bf16.mxu0 0
    %1229 = vmatpush1.bf16.msra.mxu0 0
    %1230 = vmatprep.subr.bf16.mxu0 0
    %1231 = vmatpush1.bf16.msra.mxu0 0
    %1232 = vmatprep.subr.bf16.mxu0 0
    %1233 = vmatpush1.bf16.msra.mxu0 0
    %1234 = vmatprep.subr.bf16.mxu0 0
    %1235 = vmatpush1.bf16.msra.mxu0 0
    %1236 = vmatprep.subr.bf16.mxu0 0
    %1237 = vmatpush1.bf16.msra.mxu0 %v1220
    %1238 = vmatprep.subr.bf16.mxu0 0
    %1239 = vmatpush2.bf16.msra.mxu0 0
    %1240 = vmatprep.subr.bf16.mxu0 0
    %1241 = vmatpush2.bf16.msra.mxu0 0
    %1242 = vmatprep.subr.bf16.mxu0 0
    %1243 = vmatpush2.bf16.msra.mxu0 0
    %1244 = vmatprep.subr.bf16.mxu0 0
    %1245 = vmatpush2.bf16.msra.mxu0 0
    %1246 = vmatprep.subr.bf16.mxu0 0
    %1247 = vmatpush2.bf16.msra.mxu0 0
    %1248 = vmatprep.subr.bf16.mxu0 0
    %1249 = vmatpush2.bf16.msra.mxu0 0
    %1250 = vmatprep.subr.bf16.mxu0 0
    %1251 = vmatpush2.bf16.msra.mxu0 0
    %1252 = vmatprep.subr.bf16.mxu0 0
    %1253 = vmatpush2.bf16.msra.mxu0 0
    %1254 = vmatprep.mubr.bf16.mxu0 0
    %1255 = vmatmul.mubr.bf16.gmra.mxu0 %v1217
    %v1256 = vpop.f32.mrf.mxu0
    %v1257 = vadd.f32 0.0, %v1256
    %v1258 = vpop.f32.mrf.mxu0
    %v1259 = vpop.f32.mrf.mxu0
    %v1260 = vpop.f32.mrf.mxu0
    %1261 = vdwg.mxu0
    %1264 = vrot.lane.b32.xlu0 %v1209, 16
    %v1265 = vpop.permute.xlu0 %1264
    %1266 = vrot.lane.b32.xlu0 %v1257, 16
    %v1267 = vpop.permute.xlu0 %1266
    %vm1270 = vcmask 162944
    %1271 = vst.msk [vmem:[#allocation2] sm:$0xff] %vm1270, %v1265
    %1272 = vst.msk [vmem:[#allocation2 + $0x8] sm:$0xff] %vm1270, %v1267
    %1273 = vrot.lane.b32.xlu0 %v114, 108
    %v1274 = vpop.permute.xlu0 %1273
    %1275 = vrot.lane.b32.xlu0 %v114, 76
    %v1276 = vpop.permute.xlu0 %1275
    %v1278 = vsel %vm119, %v1274, 0
    %v1281 = vsel %vm119, %v1276, 0
    %1283 = vmatprep.subr.bf16.mxu0 0
    %1284 = vmatpush1.bf16.xpose.msra.mxu0 0
    %1285 = vmatprep.subr.bf16.mxu0 0
    %1286 = vmatpush1.bf16.xpose.msra.mxu0 0
    %1287 = vmatprep.subr.bf16.mxu0 0
    %1288 = vmatpush1.bf16.xpose.msra.mxu0 0
    %1289 = vmatprep.subr.bf16.mxu0 0
    %1290 = vmatpush1.bf16.xpose.msra.mxu0 0
    %1291 = vmatprep.subr.bf16.mxu0 0
    %1292 = vmatpush1.bf16.xpose.msra.mxu0 0
    %1293 = vmatprep.subr.bf16.mxu0 0
    %1294 = vmatpush1.bf16.xpose.msra.mxu0 0
    %1295 = vmatprep.subr.bf16.mxu0 0
    %1296 = vmatpush1.bf16.xpose.msra.mxu0 0
    %1297 = vmatprep.subr.bf16.mxu0 0
    %1298 = vmatpush1.bf16.xpose.msra.mxu0 %v1281
    %1299 = vmatprep.subr.bf16.mxu0 0
    %1300 = vmatpush2.bf16.xpose.msra.mxu0 0
    %1301 = vmatprep.subr.bf16.mxu0 0
    %1302 = vmatpush2.bf16.xpose.msra.mxu0 0
    %1303 = vmatprep.subr.bf16.mxu0 0
    %1304 = vmatpush2.bf16.xpose.msra.mxu0 0
    %1305 = vmatprep.subr.bf16.mxu0 0
    %1306 = vmatpush2.bf16.xpose.msra.mxu0 0
    %1307 = vmatprep.subr.bf16.mxu0 0
    %1308 = vmatpush2.bf16.xpose.msra.mxu0 0
    %1309 = vmatprep.subr.bf16.mxu0 0
    %1310 = vmatpush2.bf16.xpose.msra.mxu0 0
    %1311 = vmatprep.subr.bf16.mxu0 0
    %1312 = vmatpush2.bf16.xpose.msra.mxu0 0
    %1313 = vmatprep.subr.bf16.mxu0 0
    %1314 = vmatpush2.bf16.xpose.msra.mxu0 0
    %1315 = vmatprep.mubr.bf16.mxu0 0
    %1316 = vmatmul.mubr.bf16.gmra.mxu0 %v1278
    %v1317 = vpop.f32.mrf.mxu0
    %v1318 = vadd.f32 0.0, %v1317
    %v1319 = vpop.f32.mrf.mxu0
    %v1320 = vpop.f32.mrf.mxu0
    %v1321 = vpop.f32.mrf.mxu0
    %1322 = vdwg.mxu0
    %1323 = vrot.lane.b32.xlu0 %v115, 108
    %v1324 = vpop.permute.xlu0 %1323
    %1325 = vrot.lane.b32.xlu0 %v115, 76
    %v1326 = vpop.permute.xlu0 %1325
    %v1328 = vsel %vm119, %v1324, 0
    %v1331 = vsel %vm119, %v1326, 0
    %1333 = vmatprep.subr.bf16.mxu0 0
    %1334 = vmatpush1.bf16.xpose.msra.mxu0 0
    %1335 = vmatprep.subr.bf16.mxu0 0
    %1336 = vmatpush1.bf16.xpose.msra.mxu0 0
    %1337 = vmatprep.subr.bf16.mxu0 0
    %1338 = vmatpush1.bf16.xpose.msra.mxu0 0
    %1339 = vmatprep.subr.bf16.mxu0 0
    %1340 = vmatpush1.bf16.xpose.msra.mxu0 0
    %1341 = vmatprep.subr.bf16.mxu0 0
    %1342 = vmatpush1.bf16.xpose.msra.mxu0 0
    %1343 = vmatprep.subr.bf16.mxu0 0
    %1344 = vmatpush1.bf16.xpose.msra.mxu0 0
    %1345 = vmatprep.subr.bf16.mxu0 0
    %1346 = vmatpush1.bf16.xpose.msra.mxu0 0
    %1347 = vmatprep.subr.bf16.mxu0 0
    %1348 = vmatpush1.bf16.xpose.msra.mxu0 %v1331
    %1349 = vmatprep.subr.bf16.mxu0 0
    %1350 = vmatpush2.bf16.xpose.msra.mxu0 0
    %1351 = vmatprep.subr.bf16.mxu0 0
    %1352 = vmatpush2.bf16.xpose.msra.mxu0 0
    %1353 = vmatprep.subr.bf16.mxu0 0
    %1354 = vmatpush2.bf16.xpose.msra.mxu0 0
    %1355 = vmatprep.subr.bf16.mxu0 0
    %1356 = vmatpush2.bf16.xpose.msra.mxu0 0
    %1357 = vmatprep.subr.bf16.mxu0 0
    %1358 = vmatpush2.bf16.xpose.msra.mxu0 0
    %1359 = vmatprep.subr.bf16.mxu0 0
    %1360 = vmatpush2.bf16.xpose.msra.mxu0 0
    %1361 = vmatprep.subr.bf16.mxu0 0
    %1362 = vmatpush2.bf16.xpose.msra.mxu0 0
    %1363 = vmatprep.subr.bf16.mxu0 0
    %1364 = vmatpush2.bf16.xpose.msra.mxu0 0
    %1365 = vmatprep.mubr.bf16.mxu0 0
    %1366 = vmatmul.mubr.bf16.gmra.mxu0 %v1328
    %v1367 = vpop.f32.mrf.mxu0
    %v1368 = vadd.f32 0.0, %v1367
    %v1369 = vpop.f32.mrf.mxu0
    %v1370 = vpop.f32.mrf.mxu0
    %v1371 = vpop.f32.mrf.mxu0
    %1372 = vdwg.mxu0
    %v1373 = vmul.f32 %v1318, 0.5
    %v1374 = vmul.f32 %v1368, 0.5
    %v1375 = vsel %vm217, %v1373, -inf
    %1376 = vmax.xlane.f32.xlu0 %v1375
    %v1377 = vpop.xlane.xlu0 %1376
    %v1378 = vsel %vm217, %v1374, -inf
    %1379 = vmax.xlane.f32.xlu0 %v1378
    %v1380 = vpop.xlane.xlu0 %1379
    %v1381 = vsub.f32 %v1373, %v1377
    %v1382 = vsub.f32 %v1374, %v1380
    %v1383 = vmul.f32 %v1381, 1.442695
    %v1384 = vpow.pop %v1383
    %v1385 = vmul.f32 %v1382, 1.442695
    %v1386 = vpow.pop %v1385
    %v1387 = vsel %vm217, %v1384, 0.0
    %1388 = vadd.xlane.f32.xlu0 %v1387
    %v1389 = vpop.xlane.xlu0 %1388
    %v1390 = vsel %vm217, %v1386, 0.0
    %1391 = vadd.xlane.f32.xlu0 %v1390
    %v1392 = vpop.xlane.xlu0 %1391
    %v1393 = vrcp.pop %v1389
    %v1394 = vrcp.pop %v1392
    %v1395 = vmul.f32 %v1384, %v1393
    %v1396 = vmul.f32 %v1386, %v1394
    %v1397 = vpack.c.bf16 %v1395, %v1395
    %v1398 = vpack.c.bf16 %v1396, %v1396
    %1399 = vrot.lane.b32.xlu0 %v114, 44
    %v1400 = vpop.permute.xlu0 %1399
    %v1402 = vsel %vm217, %v1397, 0
    %v1405 = vsel %vm247, %v1400, 0
    %1407 = vmatprep.subr.bf16.mxu0 0
    %1408 = vmatpush1.bf16.msra.mxu0 0
    %1409 = vmatprep.subr.bf16.mxu0 0
    %1410 = vmatpush1.bf16.msra.mxu0 0
    %1411 = vmatprep.subr.bf16.mxu0 0
    %1412 = vmatpush1.bf16.msra.mxu0 0
    %1413 = vmatprep.subr.bf16.mxu0 0
    %1414 = vmatpush1.bf16.msra.mxu0 0
    %1415 = vmatprep.subr.bf16.mxu0 0
    %1416 = vmatpush1.bf16.msra.mxu0 0
    %1417 = vmatprep.subr.bf16.mxu0 0
    %1418 = vmatpush1.bf16.msra.mxu0 0
    %1419 = vmatprep.subr.bf16.mxu0 0
    %1420 = vmatpush1.bf16.msra.mxu0 0
    %1421 = vmatprep.subr.bf16.mxu0 0
    %1422 = vmatpush1.bf16.msra.mxu0 %v1405
    %1423 = vmatprep.subr.bf16.mxu0 0
    %1424 = vmatpush2.bf16.msra.mxu0 0
    %1425 = vmatprep.subr.bf16.mxu0 0
    %1426 = vmatpush2.bf16.msra.mxu0 0
    %1427 = vmatprep.subr.bf16.mxu0 0
    %1428 = vmatpush2.bf16.msra.mxu0 0
    %1429 = vmatprep.subr.bf16.mxu0 0
    %1430 = vmatpush2.bf16.msra.mxu0 0
    %1431 = vmatprep.subr.bf16.mxu0 0
    %1432 = vmatpush2.bf16.msra.mxu0 0
    %1433 = vmatprep.subr.bf16.mxu0 0
    %1434 = vmatpush2.bf16.msra.mxu0 0
    %1435 = vmatprep.subr.bf16.mxu0 0
    %1436 = vmatpush2.bf16.msra.mxu0 0
    %1437 = vmatprep.subr.bf16.mxu0 0
    %1438 = vmatpush2.bf16.msra.mxu0 0
    %1439 = vmatprep.mubr.bf16.mxu0 0
    %1440 = vmatmul.mubr.bf16.gmra.mxu0 %v1402
    %v1441 = vpop.f32.mrf.mxu0
    %v1442 = vadd.f32 0.0, %v1441
    %v1443 = vpop.f32.mrf.mxu0
    %v1444 = vpop.f32.mrf.mxu0
    %v1445 = vpop.f32.mrf.mxu0
    %1446 = vdwg.mxu0
    %1447 = vrot.lane.b32.xlu0 %v115, 44
    %v1448 = vpop.permute.xlu0 %1447
    %v1450 = vsel %vm217, %v1398, 0
    %v1453 = vsel %vm247, %v1448, 0
    %1455 = vmatprep.subr.bf16.mxu0 0
    %1456 = vmatpush1.bf16.msra.mxu0 0
    %1457 = vmatprep.subr.bf16.mxu0 0
    %1458 = vmatpush1.bf16.msra.mxu0 0
    %1459 = vmatprep.subr.bf16.mxu0 0
    %1460 = vmatpush1.bf16.msra.mxu0 0
    %1461 = vmatprep.subr.bf16.mxu0 0
    %1462 = vmatpush1.bf16.msra.mxu0 0
    %1463 = vmatprep.subr.bf16.mxu0 0
    %1464 = vmatpush1.bf16.msra.mxu0 0
    %1465 = vmatprep.subr.bf16.mxu0 0
    %1466 = vmatpush1.bf16.msra.mxu0 0
    %1467 = vmatprep.subr.bf16.mxu0 0
    %1468 = vmatpush1.bf16.msra.mxu0 0
    %1469 = vmatprep.subr.bf16.mxu0 0
    %1470 = vmatpush1.bf16.msra.mxu0 %v1453
    %1471 = vmatprep.subr.bf16.mxu0 0
    %1472 = vmatpush2.bf16.msra.mxu0 0
    %1473 = vmatprep.subr.bf16.mxu0 0
    %1474 = vmatpush2.bf16.msra.mxu0 0
    %1475 = vmatprep.subr.bf16.mxu0 0
    %1476 = vmatpush2.bf16.msra.mxu0 0
    %1477 = vmatprep.subr.bf16.mxu0 0
    %1478 = vmatpush2.bf16.msra.mxu0 0
    %1479 = vmatprep.subr.bf16.mxu0 0
    %1480 = vmatpush2.bf16.msra.mxu0 0
    %1481 = vmatprep.subr.bf16.mxu0 0
    %1482 = vmatpush2.bf16.msra.mxu0 0
    %1483 = vmatprep.subr.bf16.mxu0 0
    %1484 = vmatpush2.bf16.msra.mxu0 0
    %1485 = vmatprep.subr.bf16.mxu0 0
    %1486 = vmatpush2.bf16.msra.mxu0 0
    %1487 = vmatprep.mubr.bf16.mxu0 0
    %1488 = vmatmul.mubr.bf16.gmra.mxu0 %v1450
    %v1489 = vpop.f32.mrf.mxu0
    %v1490 = vadd.f32 0.0, %v1489
    %v1491 = vpop.f32.mrf.mxu0
    %v1492 = vpop.f32.mrf.mxu0
    %v1493 = vpop.f32.mrf.mxu0
    %1494 = vdwg.mxu0
    %1497 = vrot.lane.b32.xlu0 %v1442, 20
    %v1498 = vpop.permute.xlu0 %1497
    %1499 = vrot.lane.b32.xlu0 %v1490, 20
    %v1500 = vpop.permute.xlu0 %1499
    %vm1503 = vcmask 195744
    %1504 = vst.msk [vmem:[#allocation2] sm:$0xff] %vm1503, %v1498
    %1505 = vst.msk [vmem:[#allocation2 + $0x8] sm:$0xff] %vm1503, %v1500
    %1506 = vrot.lane.b32.xlu0 %v114, 104
    %v1507 = vpop.permute.xlu0 %1506
    %1508 = vrot.lane.b32.xlu0 %v114, 72
    %v1509 = vpop.permute.xlu0 %1508
    %v1511 = vsel %vm119, %v1507, 0
    %v1514 = vsel %vm119, %v1509, 0
    %1516 = vmatprep.subr.bf16.mxu0 0
    %1517 = vmatpush1.bf16.xpose.msra.mxu0 0
    %1518 = vmatprep.subr.bf16.mxu0 0
    %1519 = vmatpush1.bf16.xpose.msra.mxu0 0
    %1520 = vmatprep.subr.bf16.mxu0 0
    %1521 = vmatpush1.bf16.xpose.msra.mxu0 0
    %1522 = vmatprep.subr.bf16.mxu0 0
    %1523 = vmatpush1.bf16.xpose.msra.mxu0 0
    %1524 = vmatprep.subr.bf16.mxu0 0
    %1525 = vmatpush1.bf16.xpose.msra.mxu0 0
    %1526 = vmatprep.subr.bf16.mxu0 0
    %1527 = vmatpush1.bf16.xpose.msra.mxu0 0
    %1528 = vmatprep.subr.bf16.mxu0 0
    %1529 = vmatpush1.bf16.xpose.msra.mxu0 0
    %1530 = vmatprep.subr.bf16.mxu0 0
    %1531 = vmatpush1.bf16.xpose.msra.mxu0 %v1514
    %1532 = vmatprep.subr.bf16.mxu0 0
    %1533 = vmatpush2.bf16.xpose.msra.mxu0 0
    %1534 = vmatprep.subr.bf16.mxu0 0
    %1535 = vmatpush2.bf16.xpose.msra.mxu0 0
    %1536 = vmatprep.subr.bf16.mxu0 0
    %1537 = vmatpush2.bf16.xpose.msra.mxu0 0
    %1538 = vmatprep.subr.bf16.mxu0 0
    %1539 = vmatpush2.bf16.xpose.msra.mxu0 0
    %1540 = vmatprep.subr.bf16.mxu0 0
    %1541 = vmatpush2.bf16.xpose.msra.mxu0 0
    %1542 = vmatprep.subr.bf16.mxu0 0
    %1543 = vmatpush2.bf16.xpose.msra.mxu0 0
    %1544 = vmatprep.subr.bf16.mxu0 0
    %1545 = vmatpush2.bf16.xpose.msra.mxu0 0
    %1546 = vmatprep.subr.bf16.mxu0 0
    %1547 = vmatpush2.bf16.xpose.msra.mxu0 0
    %1548 = vmatprep.mubr.bf16.mxu0 0
    %1549 = vmatmul.mubr.bf16.gmra.mxu0 %v1511
    %v1550 = vpop.f32.mrf.mxu0
    %v1551 = vadd.f32 0.0, %v1550
    %v1552 = vpop.f32.mrf.mxu0
    %v1553 = vpop.f32.mrf.mxu0
    %v1554 = vpop.f32.mrf.mxu0
    %1555 = vdwg.mxu0
    %1556 = vrot.lane.b32.xlu0 %v115, 104
    %v1557 = vpop.permute.xlu0 %1556
    %1558 = vrot.lane.b32.xlu0 %v115, 72
    %v1559 = vpop.permute.xlu0 %1558
    %v1561 = vsel %vm119, %v1557, 0
    %v1564 = vsel %vm119, %v1559, 0
    %1566 = vmatprep.subr.bf16.mxu0 0
    %1567 = vmatpush1.bf16.xpose.msra.mxu0 0
    %1568 = vmatprep.subr.bf16.mxu0 0
    %1569 = vmatpush1.bf16.xpose.msra.mxu0 0
    %1570 = vmatprep.subr.bf16.mxu0 0
    %1571 = vmatpush1.bf16.xpose.msra.mxu0 0
    %1572 = vmatprep.subr.bf16.mxu0 0
    %1573 = vmatpush1.bf16.xpose.msra.mxu0 0
    %1574 = vmatprep.subr.bf16.mxu0 0
    %1575 = vmatpush1.bf16.xpose.msra.mxu0 0
    %1576 = vmatprep.subr.bf16.mxu0 0
    %1577 = vmatpush1.bf16.xpose.msra.mxu0 0
    %1578 = vmatprep.subr.bf16.mxu0 0
    %1579 = vmatpush1.bf16.xpose.msra.mxu0 0
    %1580 = vmatprep.subr.bf16.mxu0 0
    %1581 = vmatpush1.bf16.xpose.msra.mxu0 %v1564
    %1582 = vmatprep.subr.bf16.mxu0 0
    %1583 = vmatpush2.bf16.xpose.msra.mxu0 0
    %1584 = vmatprep.subr.bf16.mxu0 0
    %1585 = vmatpush2.bf16.xpose.msra.mxu0 0
    %1586 = vmatprep.subr.bf16.mxu0 0
    %1587 = vmatpush2.bf16.xpose.msra.mxu0 0
    %1588 = vmatprep.subr.bf16.mxu0 0
    %1589 = vmatpush2.bf16.xpose.msra.mxu0 0
    %1590 = vmatprep.subr.bf16.mxu0 0
    %1591 = vmatpush2.bf16.xpose.msra.mxu0 0
    %1592 = vmatprep.subr.bf16.mxu0 0
    %1593 = vmatpush2.bf16.xpose.msra.mxu0 0
    %1594 = vmatprep.subr.bf16.mxu0 0
    %1595 = vmatpush2.bf16.xpose.msra.mxu0 0
    %1596 = vmatprep.subr.bf16.mxu0 0
    %1597 = vmatpush2.bf16.xpose.msra.mxu0 0
    %1598 = vmatprep.mubr.bf16.mxu0 0
    %1599 = vmatmul.mubr.bf16.gmra.mxu0 %v1561
    %v1600 = vpop.f32.mrf.mxu0
    %v1601 = vadd.f32 0.0, %v1600
    %v1602 = vpop.f32.mrf.mxu0
    %v1603 = vpop.f32.mrf.mxu0
    %v1604 = vpop.f32.mrf.mxu0
    %1605 = vdwg.mxu0
    %v1606 = vmul.f32 %v1551, 0.5
    %v1607 = vmul.f32 %v1601, 0.5
    %v1608 = vsel %vm217, %v1606, -inf
    %1609 = vmax.xlane.f32.xlu0 %v1608
    %v1610 = vpop.xlane.xlu0 %1609
    %v1611 = vsel %vm217, %v1607, -inf
    %1612 = vmax.xlane.f32.xlu0 %v1611
    %v1613 = vpop.xlane.xlu0 %1612
    %v1614 = vsub.f32 %v1606, %v1610
    %v1615 = vsub.f32 %v1607, %v1613
    %v1616 = vmul.f32 %v1614, 1.442695
    %v1617 = vpow.pop %v1616
    %v1618 = vmul.f32 %v1615, 1.442695
    %v1619 = vpow.pop %v1618
    %v1620 = vsel %vm217, %v1617, 0.0
    %1621 = vadd.xlane.f32.xlu0 %v1620
    %v1622 = vpop.xlane.xlu0 %1621
    %v1623 = vsel %vm217, %v1619, 0.0
    %1624 = vadd.xlane.f32.xlu0 %v1623
    %v1625 = vpop.xlane.xlu0 %1624
    %v1626 = vrcp.pop %v1622
    %v1627 = vrcp.pop %v1625
    %v1628 = vmul.f32 %v1617, %v1626
    %v1629 = vmul.f32 %v1619, %v1627
    %v1630 = vpack.c.bf16 %v1628, %v1628
    %v1631 = vpack.c.bf16 %v1629, %v1629
    %1632 = vrot.lane.b32.xlu0 %v114, 40
    %v1633 = vpop.permute.xlu0 %1632
    %v1635 = vsel %vm217, %v1630, 0
    %v1638 = vsel %vm247, %v1633, 0
    %1640 = vmatprep.subr.bf16.mxu0 0
    %1641 = vmatpush1.bf16.msra.mxu0 0
    %1642 = vmatprep.subr.bf16.mxu0 0
    %1643 = vmatpush1.bf16.msra.mxu0 0
    %1644 = vmatprep.subr.bf16.mxu0 0
    %1645 = vmatpush1.bf16.msra.mxu0 0
    %1646 = vmatprep.subr.bf16.mxu0 0
    %1647 = vmatpush1.bf16.msra.mxu0 0
    %1648 = vmatprep.subr.bf16.mxu0 0
    %1649 = vmatpush1.bf16.msra.mxu0 0
    %1650 = vmatprep.subr.bf16.mxu0 0
    %1651 = vmatpush1.bf16.msra.mxu0 0
    %1652 = vmatprep.subr.bf16.mxu0 0
    %1653 = vmatpush1.bf16.msra.mxu0 0
    %1654 = vmatprep.subr.bf16.mxu0 0
    %1655 = vmatpush1.bf16.msra.mxu0 %v1638
    %1656 = vmatprep.subr.bf16.mxu0 0
    %1657 = vmatpush2.bf16.msra.mxu0 0
    %1658 = vmatprep.subr.bf16.mxu0 0
    %1659 = vmatpush2.bf16.msra.mxu0 0
    %1660 = vmatprep.subr.bf16.mxu0 0
    %1661 = vmatpush2.bf16.msra.mxu0 0
    %1662 = vmatprep.subr.bf16.mxu0 0
    %1663 = vmatpush2.bf16.msra.mxu0 0
    %1664 = vmatprep.subr.bf16.mxu0 0
    %1665 = vmatpush2.bf16.msra.mxu0 0
    %1666 = vmatprep.subr.bf16.mxu0 0
    %1667 = vmatpush2.bf16.msra.mxu0 0
    %1668 = vmatprep.subr.bf16.mxu0 0
    %1669 = vmatpush2.bf16.msra.mxu0 0
    %1670 = vmatprep.subr.bf16.mxu0 0
    %1671 = vmatpush2.bf16.msra.mxu0 0
    %1672 = vmatprep.mubr.bf16.mxu0 0
    %1673 = vmatmul.mubr.bf16.gmra.mxu0 %v1635
    %v1674 = vpop.f32.mrf.mxu0
    %v1675 = vadd.f32 0.0, %v1674
    %v1676 = vpop.f32.mrf.mxu0
    %v1677 = vpop.f32.mrf.mxu0
    %v1678 = vpop.f32.mrf.mxu0
    %1679 = vdwg.mxu0
    %1680 = vrot.lane.b32.xlu0 %v115, 40
    %v1681 = vpop.permute.xlu0 %1680
    %v1683 = vsel %vm217, %v1631, 0
    %v1686 = vsel %vm247, %v1681, 0
    %1688 = vmatprep.subr.bf16.mxu0 0
    %1689 = vmatpush1.bf16.msra.mxu0 0
    %1690 = vmatprep.subr.bf16.mxu0 0
    %1691 = vmatpush1.bf16.msra.mxu0 0
    %1692 = vmatprep.subr.bf16.mxu0 0
    %1693 = vmatpush1.bf16.msra.mxu0 0
    %1694 = vmatprep.subr.bf16.mxu0 0
    %1695 = vmatpush1.bf16.msra.mxu0 0
    %1696 = vmatprep.subr.bf16.mxu0 0
    %1697 = vmatpush1.bf16.msra.mxu0 0
    %1698 = vmatprep.subr.bf16.mxu0 0
    %1699 = vmatpush1.bf16.msra.mxu0 0
    %1700 = vmatprep.subr.bf16.mxu0 0
    %1701 = vmatpush1.bf16.msra.mxu0 0
    %1702 = vmatprep.subr.bf16.mxu0 0
    %1703 = vmatpush1.bf16.msra.mxu0 %v1686
    %1704 = vmatprep.subr.bf16.mxu0 0
    %1705 = vmatpush2.bf16.msra.mxu0 0
    %1706 = vmatprep.subr.bf16.mxu0 0
    %1707 = vmatpush2.bf16.msra.mxu0 0
    %1708 = vmatprep.subr.bf16.mxu0 0
    %1709 = vmatpush2.bf16.msra.mxu0 0
    %1710 = vmatprep.subr.bf16.mxu0 0
    %1711 = vmatpush2.bf16.msra.mxu0 0
    %1712 = vmatprep.subr.bf16.mxu0 0
    %1713 = vmatpush2.bf16.msra.mxu0 0
    %1714 = vmatprep.subr.bf16.mxu0 0
    %1715 = vmatpush2.bf16.msra.mxu0 0
    %1716 = vmatprep.subr.bf16.mxu0 0
    %1717 = vmatpush2.bf16.msra.mxu0 0
    %1718 = vmatprep.subr.bf16.mxu0 0
    %1719 = vmatpush2.bf16.msra.mxu0 0
    %1720 = vmatprep.mubr.bf16.mxu0 0
    %1721 = vmatmul.mubr.bf16.gmra.mxu0 %v1683
    %v1722 = vpop.f32.mrf.mxu0
    %v1723 = vadd.f32 0.0, %v1722
    %v1724 = vpop.f32.mrf.mxu0
    %v1725 = vpop.f32.mrf.mxu0
    %v1726 = vpop.f32.mrf.mxu0
    %1727 = vdwg.mxu0
    %1730 = vrot.lane.b32.xlu0 %v1675, 24
    %v1731 = vpop.permute.xlu0 %1730
    %1732 = vrot.lane.b32.xlu0 %v1723, 24
    %v1733 = vpop.permute.xlu0 %1732
    %vm1736 = vcmask 228544
    %1737 = vst.msk [vmem:[#allocation2] sm:$0xff] %vm1736, %v1731
    %1738 = vst.msk [vmem:[#allocation2 + $0x8] sm:$0xff] %vm1736, %v1733
    %1739 = vrot.lane.b32.xlu0 %v114, 100
    %v1740 = vpop.permute.xlu0 %1739
    %1741 = vrot.lane.b32.xlu0 %v114, 68
    %v1742 = vpop.permute.xlu0 %1741
    %v1744 = vsel %vm119, %v1740, 0
    %v1747 = vsel %vm119, %v1742, 0
    %1749 = vmatprep.subr.bf16.mxu0 0
    %1750 = vmatpush1.bf16.xpose.msra.mxu0 0
    %1751 = vmatprep.subr.bf16.mxu0 0
    %1752 = vmatpush1.bf16.xpose.msra.mxu0 0
    %1753 = vmatprep.subr.bf16.mxu0 0
    %1754 = vmatpush1.bf16.xpose.msra.mxu0 0
    %1755 = vmatprep.subr.bf16.mxu0 0
    %1756 = vmatpush1.bf16.xpose.msra.mxu0 0
    %1757 = vmatprep.subr.bf16.mxu0 0
    %1758 = vmatpush1.bf16.xpose.msra.mxu0 0
    %1759 = vmatprep.subr.bf16.mxu0 0
    %1760 = vmatpush1.bf16.xpose.msra.mxu0 0
    %1761 = vmatprep.subr.bf16.mxu0 0
    %1762 = vmatpush1.bf16.xpose.msra.mxu0 0
    %1763 = vmatprep.subr.bf16.mxu0 0
    %1764 = vmatpush1.bf16.xpose.msra.mxu0 %v1747
    %1765 = vmatprep.subr.bf16.mxu0 0
    %1766 = vmatpush2.bf16.xpose.msra.mxu0 0
    %1767 = vmatprep.subr.bf16.mxu0 0
    %1768 = vmatpush2.bf16.xpose.msra.mxu0 0
    %1769 = vmatprep.subr.bf16.mxu0 0
    %1770 = vmatpush2.bf16.xpose.msra.mxu0 0
    %1771 = vmatprep.subr.bf16.mxu0 0
    %1772 = vmatpush2.bf16.xpose.msra.mxu0 0
    %1773 = vmatprep.subr.bf16.mxu0 0
    %1774 = vmatpush2.bf16.xpose.msra.mxu0 0
    %1775 = vmatprep.subr.bf16.mxu0 0
    %1776 = vmatpush2.bf16.xpose.msra.mxu0 0
    %1777 = vmatprep.subr.bf16.mxu0 0
    %1778 = vmatpush2.bf16.xpose.msra.mxu0 0
    %1779 = vmatprep.subr.bf16.mxu0 0
    %1780 = vmatpush2.bf16.xpose.msra.mxu0 0
    %1781 = vmatprep.mubr.bf16.mxu0 0
    %1782 = vmatmul.mubr.bf16.gmra.mxu0 %v1744
    %v1783 = vpop.f32.mrf.mxu0
    %v1784 = vadd.f32 0.0, %v1783
    %v1785 = vpop.f32.mrf.mxu0
    %v1786 = vpop.f32.mrf.mxu0
    %v1787 = vpop.f32.mrf.mxu0
    %1788 = vdwg.mxu0
    %1789 = vrot.lane.b32.xlu0 %v115, 100
    %v1790 = vpop.permute.xlu0 %1789
    %1791 = vrot.lane.b32.xlu0 %v115, 68
    %v1792 = vpop.permute.xlu0 %1791
    %v1794 = vsel %vm119, %v1790, 0
    %v1797 = vsel %vm119, %v1792, 0
    %1799 = vmatprep.subr.bf16.mxu0 0
    %1800 = vmatpush1.bf16.xpose.msra.mxu0 0
    %1801 = vmatprep.subr.bf16.mxu0 0
    %1802 = vmatpush1.bf16.xpose.msra.mxu0 0
    %1803 = vmatprep.subr.bf16.mxu0 0
    %1804 = vmatpush1.bf16.xpose.msra.mxu0 0
    %1805 = vmatprep.subr.bf16.mxu0 0
    %1806 = vmatpush1.bf16.xpose.msra.mxu0 0
    %1807 = vmatprep.subr.bf16.mxu0 0
    %1808 = vmatpush1.bf16.xpose.msra.mxu0 0
    %1809 = vmatprep.subr.bf16.mxu0 0
    %1810 = vmatpush1.bf16.xpose.msra.mxu0 0
    %1811 = vmatprep.subr.bf16.mxu0 0
    %1812 = vmatpush1.bf16.xpose.msra.mxu0 0
    %1813 = vmatprep.subr.bf16.mxu0 0
    %1814 = vmatpush1.bf16.xpose.msra.mxu0 %v1797
    %1815 = vmatprep.subr.bf16.mxu0 0
    %1816 = vmatpush2.bf16.xpose.msra.mxu0 0
    %1817 = vmatprep.subr.bf16.mxu0 0
    %1818 = vmatpush2.bf16.xpose.msra.mxu0 0
    %1819 = vmatprep.subr.bf16.mxu0 0
    %1820 = vmatpush2.bf16.xpose.msra.mxu0 0
    %1821 = vmatprep.subr.bf16.mxu0 0
    %1822 = vmatpush2.bf16.xpose.msra.mxu0 0
    %1823 = vmatprep.subr.bf16.mxu0 0
    %1824 = vmatpush2.bf16.xpose.msra.mxu0 0
    %1825 = vmatprep.subr.bf16.mxu0 0
    %1826 = vmatpush2.bf16.xpose.msra.mxu0 0
    %1827 = vmatprep.subr.bf16.mxu0 0
    %1828 = vmatpush2.bf16.xpose.msra.mxu0 0
    %1829 = vmatprep.subr.bf16.mxu0 0
    %1830 = vmatpush2.bf16.xpose.msra.mxu0 0
    %1831 = vmatprep.mubr.bf16.mxu0 0
    %1832 = vmatmul.mubr.bf16.gmra.mxu0 %v1794
    %v1833 = vpop.f32.mrf.mxu0
    %v1834 = vadd.f32 0.0, %v1833
    %v1835 = vpop.f32.mrf.mxu0
    %v1836 = vpop.f32.mrf.mxu0
    %v1837 = vpop.f32.mrf.mxu0
    %1838 = vdwg.mxu0
    %v1839 = vmul.f32 %v1784, 0.5
    %v1840 = vmul.f32 %v1834, 0.5
    %v1841 = vsel %vm217, %v1839, -inf
    %1842 = vmax.xlane.f32.xlu0 %v1841
    %v1843 = vpop.xlane.xlu0 %1842
    %v1844 = vsel %vm217, %v1840, -inf
    %1845 = vmax.xlane.f32.xlu0 %v1844
    %v1846 = vpop.xlane.xlu0 %1845
    %v1847 = vsub.f32 %v1839, %v1843
    %v1848 = vsub.f32 %v1840, %v1846
    %v1849 = vmul.f32 %v1847, 1.442695
    %v1850 = vpow.pop %v1849
    %v1851 = vmul.f32 %v1848, 1.442695
    %v1852 = vpow.pop %v1851
    %v1853 = vsel %vm217, %v1850, 0.0
    %1854 = vadd.xlane.f32.xlu0 %v1853
    %v1855 = vpop.xlane.xlu0 %1854
    %v1856 = vsel %vm217, %v1852, 0.0
    %1857 = vadd.xlane.f32.xlu0 %v1856
    %v1858 = vpop.xlane.xlu0 %1857
    %v1859 = vrcp.pop %v1855
    %v1860 = vrcp.pop %v1858
    %v1861 = vmul.f32 %v1850, %v1859
    %v1862 = vmul.f32 %v1852, %v1860
    %v1863 = vpack.c.bf16 %v1861, %v1861
    %v1864 = vpack.c.bf16 %v1862, %v1862
    %1865 = vrot.lane.b32.xlu0 %v114, 36
    %v1866 = vpop.permute.xlu0 %1865
    %v1868 = vsel %vm217, %v1863, 0
    %v1871 = vsel %vm247, %v1866, 0
    %1873 = vmatprep.subr.bf16.mxu0 0
    %1874 = vmatpush1.bf16.msra.mxu0 0
    %1875 = vmatprep.subr.bf16.mxu0 0
    %1876 = vmatpush1.bf16.msra.mxu0 0
    %1877 = vmatprep.subr.bf16.mxu0 0
    %1878 = vmatpush1.bf16.msra.mxu0 0
    %1879 = vmatprep.subr.bf16.mxu0 0
    %1880 = vmatpush1.bf16.msra.mxu0 0
    %1881 = vmatprep.subr.bf16.mxu0 0
    %1882 = vmatpush1.bf16.msra.mxu0 0
    %1883 = vmatprep.subr.bf16.mxu0 0
    %1884 = vmatpush1.bf16.msra.mxu0 0
    %1885 = vmatprep.subr.bf16.mxu0 0
    %1886 = vmatpush1.bf16.msra.mxu0 0
    %1887 = vmatprep.subr.bf16.mxu0 0
    %1888 = vmatpush1.bf16.msra.mxu0 %v1871
    %1889 = vmatprep.subr.bf16.mxu0 0
    %1890 = vmatpush2.bf16.msra.mxu0 0
    %1891 = vmatprep.subr.bf16.mxu0 0
    %1892 = vmatpush2.bf16.msra.mxu0 0
    %1893 = vmatprep.subr.bf16.mxu0 0
    %1894 = vmatpush2.bf16.msra.mxu0 0
    %1895 = vmatprep.subr.bf16.mxu0 0
    %1896 = vmatpush2.bf16.msra.mxu0 0
    %1897 = vmatprep.subr.bf16.mxu0 0
    %1898 = vmatpush2.bf16.msra.mxu0 0
    %1899 = vmatprep.subr.bf16.mxu0 0
    %1900 = vmatpush2.bf16.msra.mxu0 0
    %1901 = vmatprep.subr.bf16.mxu0 0
    %1902 = vmatpush2.bf16.msra.mxu0 0
    %1903 = vmatprep.subr.bf16.mxu0 0
    %1904 = vmatpush2.bf16.msra.mxu0 0
    %1905 = vmatprep.mubr.bf16.mxu0 0
    %1906 = vmatmul.mubr.bf16.gmra.mxu0 %v1868
    %v1907 = vpop.f32.mrf.mxu0
    %v1908 = vadd.f32 0.0, %v1907
    %v1909 = vpop.f32.mrf.mxu0
    %v1910 = vpop.f32.mrf.mxu0
    %v1911 = vpop.f32.mrf.mxu0
    %1912 = vdwg.mxu0
    %1913 = vrot.lane.b32.xlu0 %v115, 36
    %v1914 = vpop.permute.xlu0 %1913
    %v1916 = vsel %vm217, %v1864, 0
    %v1919 = vsel %vm247, %v1914, 0
    %1921 = vmatprep.subr.bf16.mxu0 0
    %1922 = vmatpush1.bf16.msra.mxu0 0
    %1923 = vmatprep.subr.bf16.mxu0 0
    %1924 = vmatpush1.bf16.msra.mxu0 0
    %1925 = vmatprep.subr.bf16.mxu0 0
    %1926 = vmatpush1.bf16.msra.mxu0 0
    %1927 = vmatprep.subr.bf16.mxu0 0
    %1928 = vmatpush1.bf16.msra.mxu0 0
    %1929 = vmatprep.subr.bf16.mxu0 0
    %1930 = vmatpush1.bf16.msra.mxu0 0
    %1931 = vmatprep.subr.bf16.mxu0 0
    %1932 = vmatpush1.bf16.msra.mxu0 0
    %1933 = vmatprep.subr.bf16.mxu0 0
    %1934 = vmatpush1.bf16.msra.mxu0 0
    %1935 = vmatprep.subr.bf16.mxu0 0
    %1936 = vmatpush1.bf16.msra.mxu0 %v1919
    %1937 = vmatprep.subr.bf16.mxu0 0
    %1938 = vmatpush2.bf16.msra.mxu0 0
    %1939 = vmatprep.subr.bf16.mxu0 0
    %1940 = vmatpush2.bf16.msra.mxu0 0
    %1941 = vmatprep.subr.bf16.mxu0 0
    %1942 = vmatpush2.bf16.msra.mxu0 0
    %1943 = vmatprep.subr.bf16.mxu0 0
    %1944 = vmatpush2.bf16.msra.mxu0 0
    %1945 = vmatprep.subr.bf16.mxu0 0
    %1946 = vmatpush2.bf16.msra.mxu0 0
    %1947 = vmatprep.subr.bf16.mxu0 0
    %1948 = vmatpush2.bf16.msra.mxu0 0
    %1949 = vmatprep.subr.bf16.mxu0 0
    %1950 = vmatpush2.bf16.msra.mxu0 0
    %1951 = vmatprep.subr.bf16.mxu0 0
    %1952 = vmatpush2.bf16.msra.mxu0 0
    %1953 = vmatprep.mubr.bf16.mxu0 0
    %1954 = vmatmul.mubr.bf16.gmra.mxu0 %v1916
    %v1955 = vpop.f32.mrf.mxu0
    %v1956 = vadd.f32 0.0, %v1955
    %v1957 = vpop.f32.mrf.mxu0
    %v1958 = vpop.f32.mrf.mxu0
    %v1959 = vpop.f32.mrf.mxu0
    %1960 = vdwg.mxu0
    %1963 = vrot.lane.b32.xlu0 %v1908, 28
    %v1964 = vpop.permute.xlu0 %1963
    %1965 = vrot.lane.b32.xlu0 %v1956, 28
    %v1966 = vpop.permute.xlu0 %1965
    %vm1969 = vcmask 261344
    %1970 = vst.msk [vmem:[#allocation2] sm:$0xff] %vm1969, %v1964
    %1971 = vst.msk [vmem:[#allocation2 + $0x8] sm:$0xff] %vm1969, %v1966
    %v1972 = vld [vmem:[#allocation2] sm:$0xff]
    %v1973 = vld [vmem:[#allocation2 + $0x8] sm:$0xff]
    %v1974 = vpack.c.bf16 %v1973, %v1972
    %v1975 = vlaneseq
    %v1976 = vshrl.u32 %v1975, 7
    %v1977 = vsub.s32 2, %v1976
    %v1978 = vrot.slane %v63, %v1977
    %v1980 = vsel %vm69, %v1974, 0
    %1982 = vmatprep.subr.bf16.mxu0 0
    %1983 = vmatpush1.bf16.msra.mxu0 0
    %1984 = vmatprep.subr.bf16.mxu0 0
    %1985 = vmatpush1.bf16.msra.mxu0 0
    %1986 = vmatprep.subr.bf16.mxu0 0
    %1987 = vmatpush1.bf16.msra.mxu0 0
    %1988 = vmatprep.subr.bf16.mxu0 0
    %1989 = vmatpush1.bf16.msra.mxu0 0
    %1990 = vmatprep.subr.bf16.mxu0 0
    %1991 = vmatpush1.bf16.msra.mxu0 0
    %1992 = vmatprep.subr.bf16.mxu0 0
    %1993 = vmatpush1.bf16.msra.mxu0 0
    %1994 = vmatprep.subr.bf16.mxu0 0
    %1995 = vmatpush1.bf16.msra.mxu0 %v44
    %1996 = vmatprep.subr.bf16.mxu0 0
    %1997 = vmatpush1.bf16.msra.mxu0 %v43
    %1998 = vmatprep.subr.bf16.mxu0 0
    %1999 = vmatpush2.bf16.msra.mxu0 0
    %2000 = vmatprep.subr.bf16.mxu0 0
    %2001 = vmatpush2.bf16.msra.mxu0 0
    %2002 = vmatprep.subr.bf16.mxu0 0
    %2003 = vmatpush2.bf16.msra.mxu0 0
    %2004 = vmatprep.subr.bf16.mxu0 0
    %2005 = vmatpush2.bf16.msra.mxu0 0
    %2006 = vmatprep.subr.bf16.mxu0 0
    %2007 = vmatpush2.bf16.msra.mxu0 0
    %2008 = vmatprep.subr.bf16.mxu0 0
    %2009 = vmatpush2.bf16.msra.mxu0 0
    %2010 = vmatprep.subr.bf16.mxu0 0
    %2011 = vmatpush2.bf16.msra.mxu0 0
    %2012 = vmatprep.subr.bf16.mxu0 0
    %2013 = vmatpush2.bf16.msra.mxu0 0
    %2014 = vmatprep.mubr.bf16.mxu0 0
    %2015 = vmatmul.mubr.bf16.gmra.mxu0 %v1980
    %v2016 = vpop.f32.mrf.mxu0
    %v2017 = vadd.f32 %v1978, %v2016
    %v2018 = vpop.f32.mrf.mxu0
    %v2019 = vpop.f32.mrf.mxu0
    %v2020 = vadd.f32 %v1978, %v2019
    %v2021 = vpop.f32.mrf.mxu0
    %2022 = vdwg.mxu0
    %v2023 = vadd.f32 %v31, %v2017
    %v2024 = vadd.f32 %v32, %v2020
    %v2025 = vsel %vm69, %v2023, 0.0
    %2026 = vadd.xlane.f32.xlu0 %v2025
    %v2027 = vpop.xlane.xlu0 %2026
    %v2028 = vsel %vm69, %v2024, 0.0
    %2029 = vadd.xlane.f32.xlu0 %v2028
    %v2030 = vpop.xlane.xlu0 %2029
    %v2031 = vrcp.pop 32.0
    %v2032 = vmul.f32 %v2027, %v2031
    %v2033 = vmul.f32 %v2030, %v2031
    %v2034 = vsub.f32 %v2023, %v2032
    %v2035 = vsub.f32 %v2024, %v2033
    %v2036 = vmul.f32 %v2034, %v2034
    %v2037 = vmul.f32 %v2035, %v2035
    %v2038 = vsel %vm69, %v2036, 0.0
    %2039 = vadd.xlane.f32.xlu0 %v2038
    %v2040 = vpop.xlane.xlu0 %2039
    %v2041 = vsel %vm69, %v2037, 0.0
    %2042 = vadd.xlane.f32.xlu0 %v2041
    %v2043 = vpop.xlane.xlu0 %2042
    %v2044 = vmul.f32 %v2040, %v2031
    %v2045 = vmul.f32 %v2043, %v2031
    %v2046 = vadd.f32 %v2044, 1e-05
    %v2047 = vadd.f32 %v2045, 1e-05
    %v2048 = vrsqrt.pop %v2046
    %v2049 = vrsqrt.pop %v2047
    %v2050 = vmul.f32 %v2034, %v2048
    %v2051 = vmul.f32 %v2035, %v2049
    %v2052 = vlaneseq
    %v2053 = vshrl.u32 %v2052, 7
    %v2054 = vsub.s32 4, %v2053
    %v2055 = vrot.slane %v63, %v2054
    %v2056 = vmul.f32 %v2050, %v2055
    %v2057 = vmul.f32 %v2051, %v2055
    %v2058 = vlaneseq
    %v2059 = vshrl.u32 %v2058, 7
    %v2060 = vsub.s32 5, %v2059
    %v2061 = vrot.slane %v63, %v2060
    %v2062 = vadd.f32 %v2056, %v2061
    %v2063 = vadd.f32 %v2057, %v2061
    %v2064 = vpack.c.bf16 %v2063, %v2062
    %v2065 = vlaneseq
    %v2066 = vshrl.u32 %v2065, 7
    %v2067 = vsub.s32 1, %v2066
    %v2068 = vrot.slane %v63, %v2067
    %v2070 = vsel %vm69, %v2064, 0
    %2072 = vmatprep.subr.bf16.mxu0 0
    %2073 = vmatpush1.bf16.msra.mxu0 0
    %2074 = vmatprep.subr.bf16.mxu0 0
    %2075 = vmatpush1.bf16.msra.mxu0 0
    %2076 = vmatprep.subr.bf16.mxu0 0
    %2077 = vmatpush1.bf16.msra.mxu0 0
    %2078 = vmatprep.subr.bf16.mxu0 0
    %2079 = vmatpush1.bf16.msra.mxu0 0
    %2080 = vmatprep.subr.bf16.mxu0 0
    %2081 = vmatpush1.bf16.msra.mxu0 0
    %2082 = vmatprep.subr.bf16.mxu0 0
    %2083 = vmatpush1.bf16.msra.mxu0 0
    %2084 = vmatprep.subr.bf16.mxu0 0
    %2085 = vmatpush1.bf16.msra.mxu0 %v50
    %2086 = vmatprep.subr.bf16.mxu0 0
    %2087 = vmatpush1.bf16.msra.mxu0 %v49
    %2088 = vmatprep.subr.bf16.mxu0 0
    %2089 = vmatpush2.bf16.msra.mxu0 0
    %2090 = vmatprep.subr.bf16.mxu0 0
    %2091 = vmatpush2.bf16.msra.mxu0 0
    %2092 = vmatprep.subr.bf16.mxu0 0
    %2093 = vmatpush2.bf16.msra.mxu0 0
    %2094 = vmatprep.subr.bf16.mxu0 0
    %2095 = vmatpush2.bf16.msra.mxu0 0
    %2096 = vmatprep.subr.bf16.mxu0 0
    %2097 = vmatpush2.bf16.msra.mxu0 0
    %2098 = vmatprep.subr.bf16.mxu0 0
    %2099 = vmatpush2.bf16.msra.mxu0 0
    %2100 = vmatprep.subr.bf16.mxu0 0
    %2101 = vmatpush2.bf16.msra.mxu0 0
    %2102 = vmatprep.subr.bf16.mxu0 0
    %2103 = vmatpush2.bf16.msra.mxu0 0
    %2104 = vmatprep.mubr.bf16.mxu0 0
    %2105 = vmatmul.mubr.bf16.gmra.mxu0 %v2070
    %v2106 = vpop.f32.mrf.mxu0
    %v2107 = vadd.f32 %v2068, %v2106
    %v2108 = vpop.f32.mrf.mxu0
    %v2109 = vpop.f32.mrf.mxu0
    %v2110 = vadd.f32 %v2068, %v2109
    %v2111 = vpop.f32.mrf.mxu0
    %2112 = vdwg.mxu0
    %v2113 = vmax.f32 %v2107, 0.0
    %v2114 = vmax.f32 %v2110, 0.0
    %v2115 = vpack.c.bf16 %v2114, %v2113
    %v2116 = vlaneseq
    %v2117 = vshrl.u32 %v2116, 7
    %v2118 = vsub.s32 3, %v2117
    %v2119 = vrot.slane %v63, %v2118
    %vm2120 = vcmask 523264
    %v2122 = vsel %vm2120, %v2115, 0
    %2124 = vmatprep.subr.bf16.mxu0 0
    %2125 = vmatpush1.bf16.msra.mxu0 0
    %2126 = vmatprep.subr.bf16.mxu0 0
    %2127 = vmatpush1.bf16.msra.mxu0 0
    %2128 = vmatprep.subr.bf16.mxu0 0
    %2129 = vmatpush1.bf16.msra.mxu0 0
    %2130 = vmatprep.subr.bf16.mxu0 0
    %2131 = vmatpush1.bf16.msra.mxu0 0
    %2132 = vmatprep.subr.bf16.mxu0 0
    %2133 = vmatpush1.bf16.msra.mxu0 %v62
    %2134 = vmatprep.subr.bf16.mxu0 0
    %2135 = vmatpush1.bf16.msra.mxu0 %v61
    %2136 = vmatprep.subr.bf16.mxu0 0
    %2137 = vmatpush1.bf16.msra.mxu0 %v60
    %2138 = vmatprep.subr.bf16.mxu0 0
    %2139 = vmatpush1.bf16.msra.mxu0 %v59
    %2140 = vmatprep.subr.bf16.mxu0 0
    %2141 = vmatpush2.bf16.msra.mxu0 0
    %2142 = vmatprep.subr.bf16.mxu0 0
    %2143 = vmatpush2.bf16.msra.mxu0 0
    %2144 = vmatprep.subr.bf16.mxu0 0
    %2145 = vmatpush2.bf16.msra.mxu0 0
    %2146 = vmatprep.subr.bf16.mxu0 0
    %2147 = vmatpush2.bf16.msra.mxu0 0
    %2148 = vmatprep.subr.bf16.mxu0 0
    %2149 = vmatpush2.bf16.msra.mxu0 0
    %2150 = vmatprep.subr.bf16.mxu0 0
    %2151 = vmatpush2.bf16.msra.mxu0 0
    %2152 = vmatprep.subr.bf16.mxu0 0
    %2153 = vmatpush2.bf16.msra.mxu0 0
    %2154 = vmatprep.subr.bf16.mxu0 0
    %2155 = vmatpush2.bf16.msra.mxu0 0
    %2156 = vmatprep.mubr.bf16.mxu0 0
    %2157 = vmatmul.mubr.bf16.gmra.mxu0 %v2122
    %v2158 = vpop.f32.mrf.mxu0
    %v2159 = vadd.f32 %v2119, %v2158
    %v2160 = vpop.f32.mrf.mxu0
    %v2161 = vpop.f32.mrf.mxu0
    %v2162 = vadd.f32 %v2119, %v2161
    %v2163 = vpop.f32.mrf.mxu0
    %2164 = vdwg.mxu0
    %v2165 = vadd.f32 %v2062, %v2159
    %v2166 = vadd.f32 %v2063, %v2162
    %v2167 = vsel %vm69, %v2165, 0.0
    %2168 = vadd.xlane.f32.xlu0 %v2167
    %v2169 = vpop.xlane.xlu0 %2168
    %v2170 = vsel %vm69, %v2166, 0.0
    %2171 = vadd.xlane.f32.xlu0 %v2170
    %v2172 = vpop.xlane.xlu0 %2171
    %v2173 = vmul.f32 %v2169, %v2031
    %v2174 = vmul.f32 %v2172, %v2031
    %v2175 = vsub.f32 %v2165, %v2173
    %v2176 = vsub.f32 %v2166, %v2174
    %v2177 = vmul.f32 %v2175, %v2175
    %v2178 = vmul.f32 %v2176, %v2176
    %v2179 = vsel %vm69, %v2177, 0.0
    %2180 = vadd.xlane.f32.xlu0 %v2179
    %v2181 = vpop.xlane.xlu0 %2180
    %v2182 = vsel %vm69, %v2178, 0.0
    %2183 = vadd.xlane.f32.xlu0 %v2182
    %v2184 = vpop.xlane.xlu0 %2183
    %v2185 = vmul.f32 %v2181, %v2031
    %v2186 = vmul.f32 %v2184, %v2031
    %v2187 = vadd.f32 %v2185, 1e-05
    %v2188 = vadd.f32 %v2186, 1e-05
    %v2189 = vrsqrt.pop %v2187
    %v2190 = vrsqrt.pop %v2188
    %v2191 = vmul.f32 %v2175, %v2189
    %v2192 = vmul.f32 %v2176, %v2190
    %v2193 = vlaneseq
    %v2194 = vshrl.u32 %v2193, 7
    %v2195 = vsub.s32 6, %v2194
    %v2196 = vrot.slane %v63, %v2195
    %v2197 = vmul.f32 %v2191, %v2196
    %v2198 = vmul.f32 %v2192, %v2196
    %v2199 = vlaneseq
    %v2200 = vshrl.u32 %v2199, 7
    %v2201 = vsub.s32 7, %v2200
    %v2202 = vrot.slane %v63, %v2201
    %v2203 = vadd.f32 %v2197, %v2202
    %v2204 = vadd.f32 %v2198, %v2202
    %s2205 = scalar_lea.vmem %s1, 32
    %v2206 = vld [vmem:[%s2205] sm:$0xff]
    %v2207 = vld [vmem:[%s2205 + $0x8] sm:$0xff]
    %v2208 = vld [vmem:[%s2205 + $0x10] sm:$0xff]
    %v2209 = vld [vmem:[%s2205 + $0x18] sm:$0xff]
    %v2210 = vpack.c.bf16 %v2207, %v2206
    %v2211 = vpack.c.bf16 %v2209, %v2208
    %s2212 = scalar_lea.vmem %s2, 32
    %v2213 = vld [vmem:[%s2212] sm:$0xff]
    %v2214 = vld [vmem:[%s2212 + $0x8] sm:$0xff]
    %v2215 = vld [vmem:[%s2212 + $0x10] sm:$0xff]
    %v2216 = vld [vmem:[%s2212 + $0x18] sm:$0xff]
    %v2217 = vpack.c.bf16 %v2214, %v2213
    %v2218 = vpack.c.bf16 %v2216, %v2215
    %s2219 = scalar_lea.vmem %s3, 32
    %v2220 = vld [vmem:[%s2219] sm:$0xff]
    %v2221 = vld [vmem:[%s2219 + $0x8] sm:$0xff]
    %v2222 = vld [vmem:[%s2219 + $0x10] sm:$0xff]
    %v2223 = vld [vmem:[%s2219 + $0x18] sm:$0xff]
    %v2224 = vpack.c.bf16 %v2221, %v2220
    %v2225 = vpack.c.bf16 %v2223, %v2222
    %s2226 = scalar_lea.vmem %s4, 64
    %v2227 = vld [vmem:[%s2226] sm:$0xff]
    %v2228 = vld [vmem:[%s2226 + $0x8] sm:$0xff]
    %v2229 = vld [vmem:[%s2226 + $0x10] sm:$0xff]
    %v2230 = vld [vmem:[%s2226 + $0x18] sm:$0xff]
    %v2231 = vld [vmem:[%s2226 + $0x20] sm:$0xff]
    %v2232 = vld [vmem:[%s2226 + $0x28] sm:$0xff]
    %v2233 = vld [vmem:[%s2226 + $0x30] sm:$0xff]
    %v2234 = vld [vmem:[%s2226 + $0x38] sm:$0xff]
    %v2235 = vpack.c.bf16 %v2228, %v2227
    %v2236 = vpack.c.bf16 %v2230, %v2229
    %v2237 = vpack.c.bf16 %v2232, %v2231
    %v2238 = vpack.c.bf16 %v2234, %v2233
    %s2239 = scalar_lea.vmem %s5, 8
    %v2240 = vld [vmem:[%s2239] sm:$0xff]
    %v2241 = vpack.c.bf16 %v2204, %v2203
    %v2242 = vlaneseq
    %v2243 = vshrl.u32 %v2242, 7
    %v2244 = vsub.s32 0, %v2243
    %v2245 = vrot.slane %v2240, %v2244
    %v2247 = vsel %vm69, %v2241, 0
    %2249 = vmatprep.subr.bf16.mxu0 0
    %2250 = vmatpush1.bf16.msra.mxu0 0
    %2251 = vmatprep.subr.bf16.mxu0 0
    %2252 = vmatpush1.bf16.msra.mxu0 0
    %2253 = vmatprep.subr.bf16.mxu0 0
    %2254 = vmatpush1.bf16.msra.mxu0 0
    %2255 = vmatprep.subr.bf16.mxu0 0
    %2256 = vmatpush1.bf16.msra.mxu0 0
    %2257 = vmatprep.subr.bf16.mxu0 0
    %2258 = vmatpush1.bf16.msra.mxu0 0
    %2259 = vmatprep.subr.bf16.mxu0 0
    %2260 = vmatpush1.bf16.msra.mxu0 0
    %2261 = vmatprep.subr.bf16.mxu0 0
    %2262 = vmatpush1.bf16.msra.mxu0 %v2211
    %2263 = vmatprep.subr.bf16.mxu0 0
    %2264 = vmatpush1.bf16.msra.mxu0 %v2210
    %2265 = vmatprep.subr.bf16.mxu0 0
    %2266 = vmatpush2.bf16.msra.mxu0 0
    %2267 = vmatprep.subr.bf16.mxu0 0
    %2268 = vmatpush2.bf16.msra.mxu0 0
    %2269 = vmatprep.subr.bf16.mxu0 0
    %2270 = vmatpush2.bf16.msra.mxu0 0
    %2271 = vmatprep.subr.bf16.mxu0 0
    %2272 = vmatpush2.bf16.msra.mxu0 0
    %2273 = vmatprep.subr.bf16.mxu0 0
    %2274 = vmatpush2.bf16.msra.mxu0 0
    %2275 = vmatprep.subr.bf16.mxu0 0
    %2276 = vmatpush2.bf16.msra.mxu0 0
    %2277 = vmatprep.subr.bf16.mxu0 0
    %2278 = vmatpush2.bf16.msra.mxu0 0
    %2279 = vmatprep.subr.bf16.mxu0 0
    %2280 = vmatpush2.bf16.msra.mxu0 0
    %2281 = vmatprep.mubr.bf16.mxu0 0
    %2282 = vmatmul.mubr.bf16.gmra.mxu0 %v2247
    %v2283 = vpop.f32.mrf.mxu0
    %v2284 = vadd.f32 %v2245, %v2283
    %v2285 = vpop.f32.mrf.mxu0
    %v2286 = vpop.f32.mrf.mxu0
    %v2287 = vadd.f32 %v2245, %v2286
    %v2288 = vpop.f32.mrf.mxu0
    %2289 = vdwg.mxu0
    %v2290 = vpack.c.bf16 %v2284, %v2284
    %v2291 = vpack.c.bf16 %v2287, %v2287
    %2293 = vrot.lane.b32.xlu0 %v2290, 96
    %v2294 = vpop.permute.xlu0 %2293
    %v2296 = vsel %vm119, %v2290, 0
    %v2299 = vsel %vm119, %v2294, 0
    %2301 = vmatprep.subr.bf16.mxu0 0
    %2302 = vmatpush1.bf16.xpose.msra.mxu0 0
    %2303 = vmatprep.subr.bf16.mxu0 0
    %2304 = vmatpush1.bf16.xpose.msra.mxu0 0
    %2305 = vmatprep.subr.bf16.mxu0 0
    %2306 = vmatpush1.bf16.xpose.msra.mxu0 0
    %2307 = vmatprep.subr.bf16.mxu0 0
    %2308 = vmatpush1.bf16.xpose.msra.mxu0 0
    %2309 = vmatprep.subr.bf16.mxu0 0
    %2310 = vmatpush1.bf16.xpose.msra.mxu0 0
    %2311 = vmatprep.subr.bf16.mxu0 0
    %2312 = vmatpush1.bf16.xpose.msra.mxu0 0
    %2313 = vmatprep.subr.bf16.mxu0 0
    %2314 = vmatpush1.bf16.xpose.msra.mxu0 0
    %2315 = vmatprep.subr.bf16.mxu0 0
    %2316 = vmatpush1.bf16.xpose.msra.mxu0 %v2299
    %2317 = vmatprep.subr.bf16.mxu0 0
    %2318 = vmatpush2.bf16.xpose.msra.mxu0 0
    %2319 = vmatprep.subr.bf16.mxu0 0
    %2320 = vmatpush2.bf16.xpose.msra.mxu0 0
    %2321 = vmatprep.subr.bf16.mxu0 0
    %2322 = vmatpush2.bf16.xpose.msra.mxu0 0
    %2323 = vmatprep.subr.bf16.mxu0 0
    %2324 = vmatpush2.bf16.xpose.msra.mxu0 0
    %2325 = vmatprep.subr.bf16.mxu0 0
    %2326 = vmatpush2.bf16.xpose.msra.mxu0 0
    %2327 = vmatprep.subr.bf16.mxu0 0
    %2328 = vmatpush2.bf16.xpose.msra.mxu0 0
    %2329 = vmatprep.subr.bf16.mxu0 0
    %2330 = vmatpush2.bf16.xpose.msra.mxu0 0
    %2331 = vmatprep.subr.bf16.mxu0 0
    %2332 = vmatpush2.bf16.xpose.msra.mxu0 0
    %2333 = vmatprep.mubr.bf16.mxu0 0
    %2334 = vmatmul.mubr.bf16.gmra.mxu0 %v2296
    %v2335 = vpop.f32.mrf.mxu0
    %v2336 = vadd.f32 0.0, %v2335
    %v2337 = vpop.f32.mrf.mxu0
    %v2338 = vpop.f32.mrf.mxu0
    %v2339 = vpop.f32.mrf.mxu0
    %2340 = vdwg.mxu0
    %2342 = vrot.lane.b32.xlu0 %v2291, 96
    %v2343 = vpop.permute.xlu0 %2342
    %v2345 = vsel %vm119, %v2291, 0
    %v2348 = vsel %vm119, %v2343, 0
    %2350 = vmatprep.subr.bf16.mxu0 0
    %2351 = vmatpush1.bf16.xpose.msra.mxu0 0
    %2352 = vmatprep.subr.bf16.mxu0 0
    %2353 = vmatpush1.bf16.xpose.msra.mxu0 0
    %2354 = vmatprep.subr.bf16.mxu0 0
    %2355 = vmatpush1.bf16.xpose.msra.mxu0 0
    %2356 = vmatprep.subr.bf16.mxu0 0
    %2357 = vmatpush1.bf16.xpose.msra.mxu0 0
    %2358 = vmatprep.subr.bf16.mxu0 0
    %2359 = vmatpush1.bf16.xpose.msra.mxu0 0
    %2360 = vmatprep.subr.bf16.mxu0 0
    %2361 = vmatpush1.bf16.xpose.msra.mxu0 0
    %2362 = vmatprep.subr.bf16.mxu0 0
    %2363 = vmatpush1.bf16.xpose.msra.mxu0 0
    %2364 = vmatprep.subr.bf16.mxu0 0
    %2365 = vmatpush1.bf16.xpose.msra.mxu0 %v2348
    %2366 = vmatprep.subr.bf16.mxu0 0
    %2367 = vmatpush2.bf16.xpose.msra.mxu0 0
    %2368 = vmatprep.subr.bf16.mxu0 0
    %2369 = vmatpush2.bf16.xpose.msra.mxu0 0
    %2370 = vmatprep.subr.bf16.mxu0 0
    %2371 = vmatpush2.bf16.xpose.msra.mxu0 0
    %2372 = vmatprep.subr.bf16.mxu0 0
    %2373 = vmatpush2.bf16.xpose.msra.mxu0 0
    %2374 = vmatprep.subr.bf16.mxu0 0
    %2375 = vmatpush2.bf16.xpose.msra.mxu0 0
    %2376 = vmatprep.subr.bf16.mxu0 0
    %2377 = vmatpush2.bf16.xpose.msra.mxu0 0
    %2378 = vmatprep.subr.bf16.mxu0 0
    %2379 = vmatpush2.bf16.xpose.msra.mxu0 0
    %2380 = vmatprep.subr.bf16.mxu0 0
    %2381 = vmatpush2.bf16.xpose.msra.mxu0 0
    %2382 = vmatprep.mubr.bf16.mxu0 0
    %2383 = vmatmul.mubr.bf16.gmra.mxu0 %v2345
    %v2384 = vpop.f32.mrf.mxu0
    %v2385 = vadd.f32 0.0, %v2384
    %v2386 = vpop.f32.mrf.mxu0
    %v2387 = vpop.f32.mrf.mxu0
    %v2388 = vpop.f32.mrf.mxu0
    %2389 = vdwg.mxu0
    %v2390 = vmul.f32 %v2336, 0.5
    %v2391 = vmul.f32 %v2385, 0.5
    %v2392 = vsel %vm217, %v2390, -inf
    %2393 = vmax.xlane.f32.xlu0 %v2392
    %v2394 = vpop.xlane.xlu0 %2393
    %v2395 = vsel %vm217, %v2391, -inf
    %2396 = vmax.xlane.f32.xlu0 %v2395
    %v2397 = vpop.xlane.xlu0 %2396
    %v2398 = vsub.f32 %v2390, %v2394
    %v2399 = vsub.f32 %v2391, %v2397
    %v2400 = vmul.f32 %v2398, 1.442695
    %v2401 = vpow.pop %v2400
    %v2402 = vmul.f32 %v2399, 1.442695
    %v2403 = vpow.pop %v2402
    %v2404 = vsel %vm217, %v2401, 0.0
    %2405 = vadd.xlane.f32.xlu0 %v2404
    %v2406 = vpop.xlane.xlu0 %2405
    %v2407 = vsel %vm217, %v2403, 0.0
    %2408 = vadd.xlane.f32.xlu0 %v2407
    %v2409 = vpop.xlane.xlu0 %2408
    %v2410 = vrcp.pop %v2406
    %v2411 = vrcp.pop %v2409
    %v2412 = vmul.f32 %v2401, %v2410
    %v2413 = vmul.f32 %v2403, %v2411
    %v2414 = vpack.c.bf16 %v2412, %v2412
    %v2415 = vpack.c.bf16 %v2413, %v2413
    %2416 = vrot.lane.b32.xlu0 %v2290, 64
    %v2417 = vpop.permute.xlu0 %2416
    %v2419 = vsel %vm217, %v2414, 0
    %v2422 = vsel %vm247, %v2417, 0
    %2424 = vmatprep.subr.bf16.mxu0 0
    %2425 = vmatpush1.bf16.msra.mxu0 0
    %2426 = vmatprep.subr.bf16.mxu0 0
    %2427 = vmatpush1.bf16.msra.mxu0 0
    %2428 = vmatprep.subr.bf16.mxu0 0
    %2429 = vmatpush1.bf16.msra.mxu0 0
    %2430 = vmatprep.subr.bf16.mxu0 0
    %2431 = vmatpush1.bf16.msra.mxu0 0
    %2432 = vmatprep.subr.bf16.mxu0 0
    %2433 = vmatpush1.bf16.msra.mxu0 0
    %2434 = vmatprep.subr.bf16.mxu0 0
    %2435 = vmatpush1.bf16.msra.mxu0 0
    %2436 = vmatprep.subr.bf16.mxu0 0
    %2437 = vmatpush1.bf16.msra.mxu0 0
    %2438 = vmatprep.subr.bf16.mxu0 0
    %2439 = vmatpush1.bf16.msra.mxu0 %v2422
    %2440 = vmatprep.subr.bf16.mxu0 0
    %2441 = vmatpush2.bf16.msra.mxu0 0
    %2442 = vmatprep.subr.bf16.mxu0 0
    %2443 = vmatpush2.bf16.msra.mxu0 0
    %2444 = vmatprep.subr.bf16.mxu0 0
    %2445 = vmatpush2.bf16.msra.mxu0 0
    %2446 = vmatprep.subr.bf16.mxu0 0
    %2447 = vmatpush2.bf16.msra.mxu0 0
    %2448 = vmatprep.subr.bf16.mxu0 0
    %2449 = vmatpush2.bf16.msra.mxu0 0
    %2450 = vmatprep.subr.bf16.mxu0 0
    %2451 = vmatpush2.bf16.msra.mxu0 0
    %2452 = vmatprep.subr.bf16.mxu0 0
    %2453 = vmatpush2.bf16.msra.mxu0 0
    %2454 = vmatprep.subr.bf16.mxu0 0
    %2455 = vmatpush2.bf16.msra.mxu0 0
    %2456 = vmatprep.mubr.bf16.mxu0 0
    %2457 = vmatmul.mubr.bf16.gmra.mxu0 %v2419
    %v2458 = vpop.f32.mrf.mxu0
    %v2459 = vadd.f32 0.0, %v2458
    %v2460 = vpop.f32.mrf.mxu0
    %v2461 = vpop.f32.mrf.mxu0
    %v2462 = vpop.f32.mrf.mxu0
    %2463 = vdwg.mxu0
    %2464 = vrot.lane.b32.xlu0 %v2291, 64
    %v2465 = vpop.permute.xlu0 %2464
    %v2467 = vsel %vm217, %v2415, 0
    %v2470 = vsel %vm247, %v2465, 0
    %2472 = vmatprep.subr.bf16.mxu0 0
    %2473 = vmatpush1.bf16.msra.mxu0 0
    %2474 = vmatprep.subr.bf16.mxu0 0
    %2475 = vmatpush1.bf16.msra.mxu0 0
    %2476 = vmatprep.subr.bf16.mxu0 0
    %2477 = vmatpush1.bf16.msra.mxu0 0
    %2478 = vmatprep.subr.bf16.mxu0 0
    %2479 = vmatpush1.bf16.msra.mxu0 0
    %2480 = vmatprep.subr.bf16.mxu0 0
    %2481 = vmatpush1.bf16.msra.mxu0 0
    %2482 = vmatprep.subr.bf16.mxu0 0
    %2483 = vmatpush1.bf16.msra.mxu0 0
    %2484 = vmatprep.subr.bf16.mxu0 0
    %2485 = vmatpush1.bf16.msra.mxu0 0
    %2486 = vmatprep.subr.bf16.mxu0 0
    %2487 = vmatpush1.bf16.msra.mxu0 %v2470
    %2488 = vmatprep.subr.bf16.mxu0 0
    %2489 = vmatpush2.bf16.msra.mxu0 0
    %2490 = vmatprep.subr.bf16.mxu0 0
    %2491 = vmatpush2.bf16.msra.mxu0 0
    %2492 = vmatprep.subr.bf16.mxu0 0
    %2493 = vmatpush2.bf16.msra.mxu0 0
    %2494 = vmatprep.subr.bf16.mxu0 0
    %2495 = vmatpush2.bf16.msra.mxu0 0
    %2496 = vmatprep.subr.bf16.mxu0 0
    %2497 = vmatpush2.bf16.msra.mxu0 0
    %2498 = vmatprep.subr.bf16.mxu0 0
    %2499 = vmatpush2.bf16.msra.mxu0 0
    %2500 = vmatprep.subr.bf16.mxu0 0
    %2501 = vmatpush2.bf16.msra.mxu0 0
    %2502 = vmatprep.subr.bf16.mxu0 0
    %2503 = vmatpush2.bf16.msra.mxu0 0
    %2504 = vmatprep.mubr.bf16.mxu0 0
    %2505 = vmatmul.mubr.bf16.gmra.mxu0 %v2467
    %v2506 = vpop.f32.mrf.mxu0
    %v2507 = vadd.f32 0.0, %v2506
    %v2508 = vpop.f32.mrf.mxu0
    %v2509 = vpop.f32.mrf.mxu0
    %v2510 = vpop.f32.mrf.mxu0
    %2511 = vdwg.mxu0
    %2512 = vst.msk [vmem:[#allocation2] sm:$0xff] %vm119, %v2459
    %2513 = vst.msk [vmem:[#allocation2 + $0x8] sm:$0xff] %vm119, %v2507
    %2514 = vrot.lane.b32.xlu0 %v2290, 124
    %v2515 = vpop.permute.xlu0 %2514
    %2516 = vrot.lane.b32.xlu0 %v2290, 92
    %v2517 = vpop.permute.xlu0 %2516
    %v2519 = vsel %vm119, %v2515, 0
    %v2522 = vsel %vm119, %v2517, 0
    %2524 = vmatprep.subr.bf16.mxu0 0
    %2525 = vmatpush1.bf16.xpose.msra.mxu0 0
    %2526 = vmatprep.subr.bf16.mxu0 0
    %2527 = vmatpush1.bf16.xpose.msra.mxu0 0
    %2528 = vmatprep.subr.bf16.mxu0 0
    %2529 = vmatpush1.bf16.xpose.msra.mxu0 0
    %2530 = vmatprep.subr.bf16.mxu0 0
    %2531 = vmatpush1.bf16.xpose.msra.mxu0 0
    %2532 = vmatprep.subr.bf16.mxu0 0
    %2533 = vmatpush1.bf16.xpose.msra.mxu0 0
    %2534 = vmatprep.subr.bf16.mxu0 0
    %2535 = vmatpush1.bf16.xpose.msra.mxu0 0
    %2536 = vmatprep.subr.bf16.mxu0 0
    %2537 = vmatpush1.bf16.xpose.msra.mxu0 0
    %2538 = vmatprep.subr.bf16.mxu0 0
    %2539 = vmatpush1.bf16.xpose.msra.mxu0 %v2522
    %2540 = vmatprep.subr.bf16.mxu0 0
    %2541 = vmatpush2.bf16.xpose.msra.mxu0 0
    %2542 = vmatprep.subr.bf16.mxu0 0
    %2543 = vmatpush2.bf16.xpose.msra.mxu0 0
    %2544 = vmatprep.subr.bf16.mxu0 0
    %2545 = vmatpush2.bf16.xpose.msra.mxu0 0
    %2546 = vmatprep.subr.bf16.mxu0 0
    %2547 = vmatpush2.bf16.xpose.msra.mxu0 0
    %2548 = vmatprep.subr.bf16.mxu0 0
    %2549 = vmatpush2.bf16.xpose.msra.mxu0 0
    %2550 = vmatprep.subr.bf16.mxu0 0
    %2551 = vmatpush2.bf16.xpose.msra.mxu0 0
    %2552 = vmatprep.subr.bf16.mxu0 0
    %2553 = vmatpush2.bf16.xpose.msra.mxu0 0
    %2554 = vmatprep.subr.bf16.mxu0 0
    %2555 = vmatpush2.bf16.xpose.msra.mxu0 0
    %2556 = vmatprep.mubr.bf16.mxu0 0
    %2557 = vmatmul.mubr.bf16.gmra.mxu0 %v2519
    %v2558 = vpop.f32.mrf.mxu0
    %v2559 = vadd.f32 0.0, %v2558
    %v2560 = vpop.f32.mrf.mxu0
    %v2561 = vpop.f32.mrf.mxu0
    %v2562 = vpop.f32.mrf.mxu0
    %2563 = vdwg.mxu0
    %2564 = vrot.lane.b32.xlu0 %v2291, 124
    %v2565 = vpop.permute.xlu0 %2564
    %2566 = vrot.lane.b32.xlu0 %v2291, 92
    %v2567 = vpop.permute.xlu0 %2566
    %v2569 = vsel %vm119, %v2565, 0
    %v2572 = vsel %vm119, %v2567, 0
    %2574 = vmatprep.subr.bf16.mxu0 0
    %2575 = vmatpush1.bf16.xpose.msra.mxu0 0
    %2576 = vmatprep.subr.bf16.mxu0 0
    %2577 = vmatpush1.bf16.xpose.msra.mxu0 0
    %2578 = vmatprep.subr.bf16.mxu0 0
    %2579 = vmatpush1.bf16.xpose.msra.mxu0 0
    %2580 = vmatprep.subr.bf16.mxu0 0
    %2581 = vmatpush1.bf16.xpose.msra.mxu0 0
    %2582 = vmatprep.subr.bf16.mxu0 0
    %2583 = vmatpush1.bf16.xpose.msra.mxu0 0
    %2584 = vmatprep.subr.bf16.mxu0 0
    %2585 = vmatpush1.bf16.xpose.msra.mxu0 0
    %2586 = vmatprep.subr.bf16.mxu0 0
    %2587 = vmatpush1.bf16.xpose.msra.mxu0 0
    %2588 = vmatprep.subr.bf16.mxu0 0
    %2589 = vmatpush1.bf16.xpose.msra.mxu0 %v2572
    %2590 = vmatprep.subr.bf16.mxu0 0
    %2591 = vmatpush2.bf16.xpose.msra.mxu0 0
    %2592 = vmatprep.subr.bf16.mxu0 0
    %2593 = vmatpush2.bf16.xpose.msra.mxu0 0
    %2594 = vmatprep.subr.bf16.mxu0 0
    %2595 = vmatpush2.bf16.xpose.msra.mxu0 0
    %2596 = vmatprep.subr.bf16.mxu0 0
    %2597 = vmatpush2.bf16.xpose.msra.mxu0 0
    %2598 = vmatprep.subr.bf16.mxu0 0
    %2599 = vmatpush2.bf16.xpose.msra.mxu0 0
    %2600 = vmatprep.subr.bf16.mxu0 0
    %2601 = vmatpush2.bf16.xpose.msra.mxu0 0
    %2602 = vmatprep.subr.bf16.mxu0 0
    %2603 = vmatpush2.bf16.xpose.msra.mxu0 0
    %2604 = vmatprep.subr.bf16.mxu0 0
    %2605 = vmatpush2.bf16.xpose.msra.mxu0 0
    %2606 = vmatprep.mubr.bf16.mxu0 0
    %2607 = vmatmul.mubr.bf16.gmra.mxu0 %v2569
    %v2608 = vpop.f32.mrf.mxu0
    %v2609 = vadd.f32 0.0, %v2608
    %v2610 = vpop.f32.mrf.mxu0
    %v2611 = vpop.f32.mrf.mxu0
    %v2612 = vpop.f32.mrf.mxu0
    %2613 = vdwg.mxu0
    %v2614 = vmul.f32 %v2559, 0.5
    %v2615 = vmul.f32 %v2609, 0.5
    %v2616 = vsel %vm217, %v2614, -inf
    %2617 = vmax.xlane.f32.xlu0 %v2616
    %v2618 = vpop.xlane.xlu0 %2617
    %v2619 = vsel %vm217, %v2615, -inf
    %2620 = vmax.xlane.f32.xlu0 %v2619
    %v2621 = vpop.xlane.xlu0 %2620
    %v2622 = vsub.f32 %v2614, %v2618
    %v2623 = vsub.f32 %v2615, %v2621
    %v2624 = vmul.f32 %v2622, 1.442695
    %v2625 = vpow.pop %v2624
    %v2626 = vmul.f32 %v2623, 1.442695
    %v2627 = vpow.pop %v2626
    %v2628 = vsel %vm217, %v2625, 0.0
    %2629 = vadd.xlane.f32.xlu0 %v2628
    %v2630 = vpop.xlane.xlu0 %2629
    %v2631 = vsel %vm217, %v2627, 0.0
    %2632 = vadd.xlane.f32.xlu0 %v2631
    %v2633 = vpop.xlane.xlu0 %2632
    %v2634 = vrcp.pop %v2630
    %v2635 = vrcp.pop %v2633
    %v2636 = vmul.f32 %v2625, %v2634
    %v2637 = vmul.f32 %v2627, %v2635
    %v2638 = vpack.c.bf16 %v2636, %v2636
    %v2639 = vpack.c.bf16 %v2637, %v2637
    %2640 = vrot.lane.b32.xlu0 %v2290, 60
    %v2641 = vpop.permute.xlu0 %2640
    %v2643 = vsel %vm217, %v2638, 0
    %v2646 = vsel %vm247, %v2641, 0
    %2648 = vmatprep.subr.bf16.mxu0 0
    %2649 = vmatpush1.bf16.msra.mxu0 0
    %2650 = vmatprep.subr.bf16.mxu0 0
    %2651 = vmatpush1.bf16.msra.mxu0 0
    %2652 = vmatprep.subr.bf16.mxu0 0
    %2653 = vmatpush1.bf16.msra.mxu0 0
    %2654 = vmatprep.subr.bf16.mxu0 0
    %2655 = vmatpush1.bf16.msra.mxu0 0
    %2656 = vmatprep.subr.bf16.mxu0 0
    %2657 = vmatpush1.bf16.msra.mxu0 0
    %2658 = vmatprep.subr.bf16.mxu0 0
    %2659 = vmatpush1.bf16.msra.mxu0 0
    %2660 = vmatprep.subr.bf16.mxu0 0
    %2661 = vmatpush1.bf16.msra.mxu0 0
    %2662 = vmatprep.subr.bf16.mxu0 0
    %2663 = vmatpush1.bf16.msra.mxu0 %v2646
    %2664 = vmatprep.subr.bf16.mxu0 0
    %2665 = vmatpush2.bf16.msra.mxu0 0
    %2666 = vmatprep.subr.bf16.mxu0 0
    %2667 = vmatpush2.bf16.msra.mxu0 0
    %2668 = vmatprep.subr.bf16.mxu0 0
    %2669 = vmatpush2.bf16.msra.mxu0 0
    %2670 = vmatprep.subr.bf16.mxu0 0
    %2671 = vmatpush2.bf16.msra.mxu0 0
    %2672 = vmatprep.subr.bf16.mxu0 0
    %2673 = vmatpush2.bf16.msra.mxu0 0
    %2674 = vmatprep.subr.bf16.mxu0 0
    %2675 = vmatpush2.bf16.msra.mxu0 0
    %2676 = vmatprep.subr.bf16.mxu0 0
    %2677 = vmatpush2.bf16.msra.mxu0 0
    %2678 = vmatprep.subr.bf16.mxu0 0
    %2679 = vmatpush2.bf16.msra.mxu0 0
    %2680 = vmatprep.mubr.bf16.mxu0 0
    %2681 = vmatmul.mubr.bf16.gmra.mxu0 %v2643
    %v2682 = vpop.f32.mrf.mxu0
    %v2683 = vadd.f32 0.0, %v2682
    %v2684 = vpop.f32.mrf.mxu0
    %v2685 = vpop.f32.mrf.mxu0
    %v2686 = vpop.f32.mrf.mxu0
    %2687 = vdwg.mxu0
    %2688 = vrot.lane.b32.xlu0 %v2291, 60
    %v2689 = vpop.permute.xlu0 %2688
    %v2691 = vsel %vm217, %v2639, 0
    %v2694 = vsel %vm247, %v2689, 0
    %2696 = vmatprep.subr.bf16.mxu0 0
    %2697 = vmatpush1.bf16.msra.mxu0 0
    %2698 = vmatprep.subr.bf16.mxu0 0
    %2699 = vmatpush1.bf16.msra.mxu0 0
    %2700 = vmatprep.subr.bf16.mxu0 0
    %2701 = vmatpush1.bf16.msra.mxu0 0
    %2702 = vmatprep.subr.bf16.mxu0 0
    %2703 = vmatpush1.bf16.msra.mxu0 0
    %2704 = vmatprep.subr.bf16.mxu0 0
    %2705 = vmatpush1.bf16.msra.mxu0 0
    %2706 = vmatprep.subr.bf16.mxu0 0
    %2707 = vmatpush1.bf16.msra.mxu0 0
    %2708 = vmatprep.subr.bf16.mxu0 0
    %2709 = vmatpush1.bf16.msra.mxu0 0
    %2710 = vmatprep.subr.bf16.mxu0 0
    %2711 = vmatpush1.bf16.msra.mxu0 %v2694
    %2712 = vmatprep.subr.bf16.mxu0 0
    %2713 = vmatpush2.bf16.msra.mxu0 0
    %2714 = vmatprep.subr.bf16.mxu0 0
    %2715 = vmatpush2.bf16.msra.mxu0 0
    %2716 = vmatprep.subr.bf16.mxu0 0
    %2717 = vmatpush2.bf16.msra.mxu0 0
    %2718 = vmatprep.subr.bf16.mxu0 0
    %2719 = vmatpush2.bf16.msra.mxu0 0
    %2720 = vmatprep.subr.bf16.mxu0 0
    %2721 = vmatpush2.bf16.msra.mxu0 0
    %2722 = vmatprep.subr.bf16.mxu0 0
    %2723 = vmatpush2.bf16.msra.mxu0 0
    %2724 = vmatprep.subr.bf16.mxu0 0
    %2725 = vmatpush2.bf16.msra.mxu0 0
    %2726 = vmatprep.subr.bf16.mxu0 0
    %2727 = vmatpush2.bf16.msra.mxu0 0
    %2728 = vmatprep.mubr.bf16.mxu0 0
    %2729 = vmatmul.mubr.bf16.gmra.mxu0 %v2691
    %v2730 = vpop.f32.mrf.mxu0
    %v2731 = vadd.f32 0.0, %v2730
    %v2732 = vpop.f32.mrf.mxu0
    %v2733 = vpop.f32.mrf.mxu0
    %v2734 = vpop.f32.mrf.mxu0
    %2735 = vdwg.mxu0
    %2738 = vrot.lane.b32.xlu0 %v2683, 4
    %v2739 = vpop.permute.xlu0 %2738
    %2740 = vrot.lane.b32.xlu0 %v2731, 4
    %v2741 = vpop.permute.xlu0 %2740
    %2744 = vst.msk [vmem:[#allocation2] sm:$0xff] %vm571, %v2739
    %2745 = vst.msk [vmem:[#allocation2 + $0x8] sm:$0xff] %vm571, %v2741
    %2746 = vrot.lane.b32.xlu0 %v2290, 120
    %v2747 = vpop.permute.xlu0 %2746
    %2748 = vrot.lane.b32.xlu0 %v2290, 88
    %v2749 = vpop.permute.xlu0 %2748
    %v2751 = vsel %vm119, %v2747, 0
    %v2754 = vsel %vm119, %v2749, 0
    %2756 = vmatprep.subr.bf16.mxu0 0
    %2757 = vmatpush1.bf16.xpose.msra.mxu0 0
    %2758 = vmatprep.subr.bf16.mxu0 0
    %2759 = vmatpush1.bf16.xpose.msra.mxu0 0
    %2760 = vmatprep.subr.bf16.mxu0 0
    %2761 = vmatpush1.bf16.xpose.msra.mxu0 0
    %2762 = vmatprep.subr.bf16.mxu0 0
    %2763 = vmatpush1.bf16.xpose.msra.mxu0 0
    %2764 = vmatprep.subr.bf16.mxu0 0
    %2765 = vmatpush1.bf16.xpose.msra.mxu0 0
    %2766 = vmatprep.subr.bf16.mxu0 0
    %2767 = vmatpush1.bf16.xpose.msra.mxu0 0
    %2768 = vmatprep.subr.bf16.mxu0 0
    %2769 = vmatpush1.bf16.xpose.msra.mxu0 0
    %2770 = vmatprep.subr.bf16.mxu0 0
    %2771 = vmatpush1.bf16.xpose.msra.mxu0 %v2754
    %2772 = vmatprep.subr.bf16.mxu0 0
    %2773 = vmatpush2.bf16.xpose.msra.mxu0 0
    %2774 = vmatprep.subr.bf16.mxu0 0
    %2775 = vmatpush2.bf16.xpose.msra.mxu0 0
    %2776 = vmatprep.subr.bf16.mxu0 0
    %2777 = vmatpush2.bf16.xpose.msra.mxu0 0
    %2778 = vmatprep.subr.bf16.mxu0 0
    %2779 = vmatpush2.bf16.xpose.msra.mxu0 0
    %2780 = vmatprep.subr.bf16.mxu0 0
    %2781 = vmatpush2.bf16.xpose.msra.mxu0 0
    %2782 = vmatprep.subr.bf16.mxu0 0
    %2783 = vmatpush2.bf16.xpose.msra.mxu0 0
    %2784 = vmatprep.subr.bf16.mxu0 0
    %2785 = vmatpush2.bf16.xpose.msra.mxu0 0
    %2786 = vmatprep.subr.bf16.mxu0 0
    %2787 = vmatpush2.bf16.xpose.msra.mxu0 0
    %2788 = vmatprep.mubr.bf16.mxu0 0
    %2789 = vmatmul.mubr.bf16.gmra.mxu0 %v2751
    %v2790 = vpop.f32.mrf.mxu0
    %v2791 = vadd.f32 0.0, %v2790
    %v2792 = vpop.f32.mrf.mxu0
    %v2793 = vpop.f32.mrf.mxu0
    %v2794 = vpop.f32.mrf.mxu0
    %2795 = vdwg.mxu0
    %2796 = vrot.lane.b32.xlu0 %v2291, 120
    %v2797 = vpop.permute.xlu0 %2796
    %2798 = vrot.lane.b32.xlu0 %v2291, 88
    %v2799 = vpop.permute.xlu0 %2798
    %v2801 = vsel %vm119, %v2797, 0
    %v2804 = vsel %vm119, %v2799, 0
    %2806 = vmatprep.subr.bf16.mxu0 0
    %2807 = vmatpush1.bf16.xpose.msra.mxu0 0
    %2808 = vmatprep.subr.bf16.mxu0 0
    %2809 = vmatpush1.bf16.xpose.msra.mxu0 0
    %2810 = vmatprep.subr.bf16.mxu0 0
    %2811 = vmatpush1.bf16.xpose.msra.mxu0 0
    %2812 = vmatprep.subr.bf16.mxu0 0
    %2813 = vmatpush1.bf16.xpose.msra.mxu0 0
    %2814 = vmatprep.subr.bf16.mxu0 0
    %2815 = vmatpush1.bf16.xpose.msra.mxu0 0
    %2816 = vmatprep.subr.bf16.mxu0 0
    %2817 = vmatpush1.bf16.xpose.msra.mxu0 0
    %2818 = vmatprep.subr.bf16.mxu0 0
    %2819 = vmatpush1.bf16.xpose.msra.mxu0 0
    %2820 = vmatprep.subr.bf16.mxu0 0
    %2821 = vmatpush1.bf16.xpose.msra.mxu0 %v2804
    %2822 = vmatprep.subr.bf16.mxu0 0
    %2823 = vmatpush2.bf16.xpose.msra.mxu0 0
    %2824 = vmatprep.subr.bf16.mxu0 0
    %2825 = vmatpush2.bf16.xpose.msra.mxu0 0
    %2826 = vmatprep.subr.bf16.mxu0 0
    %2827 = vmatpush2.bf16.xpose.msra.mxu0 0
    %2828 = vmatprep.subr.bf16.mxu0 0
    %2829 = vmatpush2.bf16.xpose.msra.mxu0 0
    %2830 = vmatprep.subr.bf16.mxu0 0
    %2831 = vmatpush2.bf16.xpose.msra.mxu0 0
    %2832 = vmatprep.subr.bf16.mxu0 0
    %2833 = vmatpush2.bf16.xpose.msra.mxu0 0
    %2834 = vmatprep.subr.bf16.mxu0 0
    %2835 = vmatpush2.bf16.xpose.msra.mxu0 0
    %2836 = vmatprep.subr.bf16.mxu0 0
    %2837 = vmatpush2.bf16.xpose.msra.mxu0 0
    %2838 = vmatprep.mubr.bf16.mxu0 0
    %2839 = vmatmul.mubr.bf16.gmra.mxu0 %v2801
    %v2840 = vpop.f32.mrf.mxu0
    %v2841 = vadd.f32 0.0, %v2840
    %v2842 = vpop.f32.mrf.mxu0
    %v2843 = vpop.f32.mrf.mxu0
    %v2844 = vpop.f32.mrf.mxu0
    %2845 = vdwg.mxu0
    %v2846 = vmul.f32 %v2791, 0.5
    %v2847 = vmul.f32 %v2841, 0.5
    %v2848 = vsel %vm217, %v2846, -inf
    %2849 = vmax.xlane.f32.xlu0 %v2848
    %v2850 = vpop.xlane.xlu0 %2849
    %v2851 = vsel %vm217, %v2847, -inf
    %2852 = vmax.xlane.f32.xlu0 %v2851
    %v2853 = vpop.xlane.xlu0 %2852
    %v2854 = vsub.f32 %v2846, %v2850
    %v2855 = vsub.f32 %v2847, %v2853
    %v2856 = vmul.f32 %v2854, 1.442695
    %v2857 = vpow.pop %v2856
    %v2858 = vmul.f32 %v2855, 1.442695
    %v2859 = vpow.pop %v2858
    %v2860 = vsel %vm217, %v2857, 0.0
    %2861 = vadd.xlane.f32.xlu0 %v2860
    %v2862 = vpop.xlane.xlu0 %2861
    %v2863 = vsel %vm217, %v2859, 0.0
    %2864 = vadd.xlane.f32.xlu0 %v2863
    %v2865 = vpop.xlane.xlu0 %2864
    %v2866 = vrcp.pop %v2862
    %v2867 = vrcp.pop %v2865
    %v2868 = vmul.f32 %v2857, %v2866
    %v2869 = vmul.f32 %v2859, %v2867
    %v2870 = vpack.c.bf16 %v2868, %v2868
    %v2871 = vpack.c.bf16 %v2869, %v2869
    %2872 = vrot.lane.b32.xlu0 %v2290, 56
    %v2873 = vpop.permute.xlu0 %2872
    %v2875 = vsel %vm217, %v2870, 0
    %v2878 = vsel %vm247, %v2873, 0
    %2880 = vmatprep.subr.bf16.mxu0 0
    %2881 = vmatpush1.bf16.msra.mxu0 0
    %2882 = vmatprep.subr.bf16.mxu0 0
    %2883 = vmatpush1.bf16.msra.mxu0 0
    %2884 = vmatprep.subr.bf16.mxu0 0
    %2885 = vmatpush1.bf16.msra.mxu0 0
    %2886 = vmatprep.subr.bf16.mxu0 0
    %2887 = vmatpush1.bf16.msra.mxu0 0
    %2888 = vmatprep.subr.bf16.mxu0 0
    %2889 = vmatpush1.bf16.msra.mxu0 0
    %2890 = vmatprep.subr.bf16.mxu0 0
    %2891 = vmatpush1.bf16.msra.mxu0 0
    %2892 = vmatprep.subr.bf16.mxu0 0
    %2893 = vmatpush1.bf16.msra.mxu0 0
    %2894 = vmatprep.subr.bf16.mxu0 0
    %2895 = vmatpush1.bf16.msra.mxu0 %v2878
    %2896 = vmatprep.subr.bf16.mxu0 0
    %2897 = vmatpush2.bf16.msra.mxu0 0
    %2898 = vmatprep.subr.bf16.mxu0 0
    %2899 = vmatpush2.bf16.msra.mxu0 0
    %2900 = vmatprep.subr.bf16.mxu0 0
    %2901 = vmatpush2.bf16.msra.mxu0 0
    %2902 = vmatprep.subr.bf16.mxu0 0
    %2903 = vmatpush2.bf16.msra.mxu0 0
    %2904 = vmatprep.subr.bf16.mxu0 0
    %2905 = vmatpush2.bf16.msra.mxu0 0
    %2906 = vmatprep.subr.bf16.mxu0 0
    %2907 = vmatpush2.bf16.msra.mxu0 0
    %2908 = vmatprep.subr.bf16.mxu0 0
    %2909 = vmatpush2.bf16.msra.mxu0 0
    %2910 = vmatprep.subr.bf16.mxu0 0
    %2911 = vmatpush2.bf16.msra.mxu0 0
    %2912 = vmatprep.mubr.bf16.mxu0 0
    %2913 = vmatmul.mubr.bf16.gmra.mxu0 %v2875
    %v2914 = vpop.f32.mrf.mxu0
    %v2915 = vadd.f32 0.0, %v2914
    %v2916 = vpop.f32.mrf.mxu0
    %v2917 = vpop.f32.mrf.mxu0
    %v2918 = vpop.f32.mrf.mxu0
    %2919 = vdwg.mxu0
    %2920 = vrot.lane.b32.xlu0 %v2291, 56
    %v2921 = vpop.permute.xlu0 %2920
    %v2923 = vsel %vm217, %v2871, 0
    %v2926 = vsel %vm247, %v2921, 0
    %2928 = vmatprep.subr.bf16.mxu0 0
    %2929 = vmatpush1.bf16.msra.mxu0 0
    %2930 = vmatprep.subr.bf16.mxu0 0
    %2931 = vmatpush1.bf16.msra.mxu0 0
    %2932 = vmatprep.subr.bf16.mxu0 0
    %2933 = vmatpush1.bf16.msra.mxu0 0
    %2934 = vmatprep.subr.bf16.mxu0 0
    %2935 = vmatpush1.bf16.msra.mxu0 0
    %2936 = vmatprep.subr.bf16.mxu0 0
    %2937 = vmatpush1.bf16.msra.mxu0 0
    %2938 = vmatprep.subr.bf16.mxu0 0
    %2939 = vmatpush1.bf16.msra.mxu0 0
    %2940 = vmatprep.subr.bf16.mxu0 0
    %2941 = vmatpush1.bf16.msra.mxu0 0
    %2942 = vmatprep.subr.bf16.mxu0 0
    %2943 = vmatpush1.bf16.msra.mxu0 %v2926
    %2944 = vmatprep.subr.bf16.mxu0 0
    %2945 = vmatpush2.bf16.msra.mxu0 0
    %2946 = vmatprep.subr.bf16.mxu0 0
    %2947 = vmatpush2.bf16.msra.mxu0 0
    %2948 = vmatprep.subr.bf16.mxu0 0
    %2949 = vmatpush2.bf16.msra.mxu0 0
    %2950 = vmatprep.subr.bf16.mxu0 0
    %2951 = vmatpush2.bf16.msra.mxu0 0
    %2952 = vmatprep.subr.bf16.mxu0 0
    %2953 = vmatpush2.bf16.msra.mxu0 0
    %2954 = vmatprep.subr.bf16.mxu0 0
    %2955 = vmatpush2.bf16.msra.mxu0 0
    %2956 = vmatprep.subr.bf16.mxu0 0
    %2957 = vmatpush2.bf16.msra.mxu0 0
    %2958 = vmatprep.subr.bf16.mxu0 0
    %2959 = vmatpush2.bf16.msra.mxu0 0
    %2960 = vmatprep.mubr.bf16.mxu0 0
    %2961 = vmatmul.mubr.bf16.gmra.mxu0 %v2923
    %v2962 = vpop.f32.mrf.mxu0
    %v2963 = vadd.f32 0.0, %v2962
    %v2964 = vpop.f32.mrf.mxu0
    %v2965 = vpop.f32.mrf.mxu0
    %v2966 = vpop.f32.mrf.mxu0
    %2967 = vdwg.mxu0
    %2970 = vrot.lane.b32.xlu0 %v2915, 8
    %v2971 = vpop.permute.xlu0 %2970
    %2972 = vrot.lane.b32.xlu0 %v2963, 8
    %v2973 = vpop.permute.xlu0 %2972
    %2976 = vst.msk [vmem:[#allocation2] sm:$0xff] %vm804, %v2971
    %2977 = vst.msk [vmem:[#allocation2 + $0x8] sm:$0xff] %vm804, %v2973
    %2978 = vrot.lane.b32.xlu0 %v2290, 116
    %v2979 = vpop.permute.xlu0 %2978
    %2980 = vrot.lane.b32.xlu0 %v2290, 84
    %v2981 = vpop.permute.xlu0 %2980
    %v2983 = vsel %vm119, %v2979, 0
    %v2986 = vsel %vm119, %v2981, 0
    %2988 = vmatprep.subr.bf16.mxu0 0
    %2989 = vmatpush1.bf16.xpose.msra.mxu0 0
    %2990 = vmatprep.subr.bf16.mxu0 0
    %2991 = vmatpush1.bf16.xpose.msra.mxu0 0
    %2992 = vmatprep.subr.bf16.mxu0 0
    %2993 = vmatpush1.bf16.xpose.msra.mxu0 0
    %2994 = vmatprep.subr.bf16.mxu0 0
    %2995 = vmatpush1.bf16.xpose.msra.mxu0 0
    %2996 = vmatprep.subr.bf16.mxu0 0
    %2997 = vmatpush1.bf16.xpose.msra.mxu0 0
    %2998 = vmatprep.subr.bf16.mxu0 0
    %2999 = vmatpush1.bf16.xpose.msra.mxu0 0
    %3000 = vmatprep.subr.bf16.mxu0 0
    %3001 = vmatpush1.bf16.xpose.msra.mxu0 0
    %3002 = vmatprep.subr.bf16.mxu0 0
    %3003 = vmatpush1.bf16.xpose.msra.mxu0 %v2986
    %3004 = vmatprep.subr.bf16.mxu0 0
    %3005 = vmatpush2.bf16.xpose.msra.mxu0 0
    %3006 = vmatprep.subr.bf16.mxu0 0
    %3007 = vmatpush2.bf16.xpose.msra.mxu0 0
    %3008 = vmatprep.subr.bf16.mxu0 0
    %3009 = vmatpush2.bf16.xpose.msra.mxu0 0
    %3010 = vmatprep.subr.bf16.mxu0 0
    %3011 = vmatpush2.bf16.xpose.msra.mxu0 0
    %3012 = vmatprep.subr.bf16.mxu0 0
    %3013 = vmatpush2.bf16.xpose.msra.mxu0 0
    %3014 = vmatprep.subr.bf16.mxu0 0
    %3015 = vmatpush2.bf16.xpose.msra.mxu0 0
    %3016 = vmatprep.subr.bf16.mxu0 0
    %3017 = vmatpush2.bf16.xpose.msra.mxu0 0
    %3018 = vmatprep.subr.bf16.mxu0 0
    %3019 = vmatpush2.bf16.xpose.msra.mxu0 0
    %3020 = vmatprep.mubr.bf16.mxu0 0
    %3021 = vmatmul.mubr.bf16.gmra.mxu0 %v2983
    %v3022 = vpop.f32.mrf.mxu0
    %v3023 = vadd.f32 0.0, %v3022
    %v3024 = vpop.f32.mrf.mxu0
    %v3025 = vpop.f32.mrf.mxu0
    %v3026 = vpop.f32.mrf.mxu0
    %3027 = vdwg.mxu0
    %3028 = vrot.lane.b32.xlu0 %v2291, 116
    %v3029 = vpop.permute.xlu0 %3028
    %3030 = vrot.lane.b32.xlu0 %v2291, 84
    %v3031 = vpop.permute.xlu0 %3030
    %v3033 = vsel %vm119, %v3029, 0
    %v3036 = vsel %vm119, %v3031, 0
    %3038 = vmatprep.subr.bf16.mxu0 0
    %3039 = vmatpush1.bf16.xpose.msra.mxu0 0
    %3040 = vmatprep.subr.bf16.mxu0 0
    %3041 = vmatpush1.bf16.xpose.msra.mxu0 0
    %3042 = vmatprep.subr.bf16.mxu0 0
    %3043 = vmatpush1.bf16.xpose.msra.mxu0 0
    %3044 = vmatprep.subr.bf16.mxu0 0
    %3045 = vmatpush1.bf16.xpose.msra.mxu0 0
    %3046 = vmatprep.subr.bf16.mxu0 0
    %3047 = vmatpush1.bf16.xpose.msra.mxu0 0
    %3048 = vmatprep.subr.bf16.mxu0 0
    %3049 = vmatpush1.bf16.xpose.msra.mxu0 0
    %3050 = vmatprep.subr.bf16.mxu0 0
    %3051 = vmatpush1.bf16.xpose.msra.mxu0 0
    %3052 = vmatprep.subr.bf16.mxu0 0
    %3053 = vmatpush1.bf16.xpose.msra.mxu0 %v3036
    %3054 = vmatprep.subr.bf16.mxu0 0
    %3055 = vmatpush2.bf16.xpose.msra.mxu0 0
    %3056 = vmatprep.subr.bf16.mxu0 0
    %3057 = vmatpush2.bf16.xpose.msra.mxu0 0
    %3058 = vmatprep.subr.bf16.mxu0 0
    %3059 = vmatpush2.bf16.xpose.msra.mxu0 0
    %3060 = vmatprep.subr.bf16.mxu0 0
    %3061 = vmatpush2.bf16.xpose.msra.mxu0 0
    %3062 = vmatprep.subr.bf16.mxu0 0
    %3063 = vmatpush2.bf16.xpose.msra.mxu0 0
    %3064 = vmatprep.subr.bf16.mxu0 0
    %3065 = vmatpush2.bf16.xpose.msra.mxu0 0
    %3066 = vmatprep.subr.bf16.mxu0 0
    %3067 = vmatpush2.bf16.xpose.msra.mxu0 0
    %3068 = vmatprep.subr.bf16.mxu0 0
    %3069 = vmatpush2.bf16.xpose.msra.mxu0 0
    %3070 = vmatprep.mubr.bf16.mxu0 0
    %3071 = vmatmul.mubr.bf16.gmra.mxu0 %v3033
    %v3072 = vpop.f32.mrf.mxu0
    %v3073 = vadd.f32 0.0, %v3072
    %v3074 = vpop.f32.mrf.mxu0
    %v3075 = vpop.f32.mrf.mxu0
    %v3076 = vpop.f32.mrf.mxu0
    %3077 = vdwg.mxu0
    %v3078 = vmul.f32 %v3023, 0.5
    %v3079 = vmul.f32 %v3073, 0.5
    %v3080 = vsel %vm217, %v3078, -inf
    %3081 = vmax.xlane.f32.xlu0 %v3080
    %v3082 = vpop.xlane.xlu0 %3081
    %v3083 = vsel %vm217, %v3079, -inf
    %3084 = vmax.xlane.f32.xlu0 %v3083
    %v3085 = vpop.xlane.xlu0 %3084
    %v3086 = vsub.f32 %v3078, %v3082
    %v3087 = vsub.f32 %v3079, %v3085
    %v3088 = vmul.f32 %v3086, 1.442695
    %v3089 = vpow.pop %v3088
    %v3090 = vmul.f32 %v3087, 1.442695
    %v3091 = vpow.pop %v3090
    %v3092 = vsel %vm217, %v3089, 0.0
    %3093 = vadd.xlane.f32.xlu0 %v3092
    %v3094 = vpop.xlane.xlu0 %3093
    %v3095 = vsel %vm217, %v3091, 0.0
    %3096 = vadd.xlane.f32.xlu0 %v3095
    %v3097 = vpop.xlane.xlu0 %3096
    %v3098 = vrcp.pop %v3094
    %v3099 = vrcp.pop %v3097
    %v3100 = vmul.f32 %v3089, %v3098
    %v3101 = vmul.f32 %v3091, %v3099
    %v3102 = vpack.c.bf16 %v3100, %v3100
    %v3103 = vpack.c.bf16 %v3101, %v3101
    %3104 = vrot.lane.b32.xlu0 %v2290, 52
    %v3105 = vpop.permute.xlu0 %3104
    %v3107 = vsel %vm217, %v3102, 0
    %v3110 = vsel %vm247, %v3105, 0
    %3112 = vmatprep.subr.bf16.mxu0 0
    %3113 = vmatpush1.bf16.msra.mxu0 0
    %3114 = vmatprep.subr.bf16.mxu0 0
    %3115 = vmatpush1.bf16.msra.mxu0 0
    %3116 = vmatprep.subr.bf16.mxu0 0
    %3117 = vmatpush1.bf16.msra.mxu0 0
    %3118 = vmatprep.subr.bf16.mxu0 0
    %3119 = vmatpush1.bf16.msra.mxu0 0
    %3120 = vmatprep.subr.bf16.mxu0 0
    %3121 = vmatpush1.bf16.msra.mxu0 0
    %3122 = vmatprep.subr.bf16.mxu0 0
    %3123 = vmatpush1.bf16.msra.mxu0 0
    %3124 = vmatprep.subr.bf16.mxu0 0
    %3125 = vmatpush1.bf16.msra.mxu0 0
    %3126 = vmatprep.subr.bf16.mxu0 0
    %3127 = vmatpush1.bf16.msra.mxu0 %v3110
    %3128 = vmatprep.subr.bf16.mxu0 0
    %3129 = vmatpush2.bf16.msra.mxu0 0
    %3130 = vmatprep.subr.bf16.mxu0 0
    %3131 = vmatpush2.bf16.msra.mxu0 0
    %3132 = vmatprep.subr.bf16.mxu0 0
    %3133 = vmatpush2.bf16.msra.mxu0 0
    %3134 = vmatprep.subr.bf16.mxu0 0
    %3135 = vmatpush2.bf16.msra.mxu0 0
    %3136 = vmatprep.subr.bf16.mxu0 0
    %3137 = vmatpush2.bf16.msra.mxu0 0
    %3138 = vmatprep.subr.bf16.mxu0 0
    %3139 = vmatpush2.bf16.msra.mxu0 0
    %3140 = vmatprep.subr.bf16.mxu0 0
    %3141 = vmatpush2.bf16.msra.mxu0 0
    %3142 = vmatprep.subr.bf16.mxu0 0
    %3143 = vmatpush2.bf16.msra.mxu0 0
    %3144 = vmatprep.mubr.bf16.mxu0 0
    %3145 = vmatmul.mubr.bf16.gmra.mxu0 %v3107
    %v3146 = vpop.f32.mrf.mxu0
    %v3147 = vadd.f32 0.0, %v3146
    %v3148 = vpop.f32.mrf.mxu0
    %v3149 = vpop.f32.mrf.mxu0
    %v3150 = vpop.f32.mrf.mxu0
    %3151 = vdwg.mxu0
    %3152 = vrot.lane.b32.xlu0 %v2291, 52
    %v3153 = vpop.permute.xlu0 %3152
    %v3155 = vsel %vm217, %v3103, 0
    %v3158 = vsel %vm247, %v3153, 0
    %3160 = vmatprep.subr.bf16.mxu0 0
    %3161 = vmatpush1.bf16.msra.mxu0 0
    %3162 = vmatprep.subr.bf16.mxu0 0
    %3163 = vmatpush1.bf16.msra.mxu0 0
    %3164 = vmatprep.subr.bf16.mxu0 0
    %3165 = vmatpush1.bf16.msra.mxu0 0
    %3166 = vmatprep.subr.bf16.mxu0 0
    %3167 = vmatpush1.bf16.msra.mxu0 0
    %3168 = vmatprep.subr.bf16.mxu0 0
    %3169 = vmatpush1.bf16.msra.mxu0 0
    %3170 = vmatprep.subr.bf16.mxu0 0
    %3171 = vmatpush1.bf16.msra.mxu0 0
    %3172 = vmatprep.subr.bf16.mxu0 0
    %3173 = vmatpush1.bf16.msra.mxu0 0
    %3174 = vmatprep.subr.bf16.mxu0 0
    %3175 = vmatpush1.bf16.msra.mxu0 %v3158
    %3176 = vmatprep.subr.bf16.mxu0 0
    %3177 = vmatpush2.bf16.msra.mxu0 0
    %3178 = vmatprep.subr.bf16.mxu0 0
    %3179 = vmatpush2.bf16.msra.mxu0 0
    %3180 = vmatprep.subr.bf16.mxu0 0
    %3181 = vmatpush2.bf16.msra.mxu0 0
    %3182 = vmatprep.subr.bf16.mxu0 0
    %3183 = vmatpush2.bf16.msra.mxu0 0
    %3184 = vmatprep.subr.bf16.mxu0 0
    %3185 = vmatpush2.bf16.msra.mxu0 0
    %3186 = vmatprep.subr.bf16.mxu0 0
    %3187 = vmatpush2.bf16.msra.mxu0 0
    %3188 = vmatprep.subr.bf16.mxu0 0
    %3189 = vmatpush2.bf16.msra.mxu0 0
    %3190 = vmatprep.subr.bf16.mxu0 0
    %3191 = vmatpush2.bf16.msra.mxu0 0
    %3192 = vmatprep.mubr.bf16.mxu0 0
    %3193 = vmatmul.mubr.bf16.gmra.mxu0 %v3155
    %v3194 = vpop.f32.mrf.mxu0
    %v3195 = vadd.f32 0.0, %v3194
    %v3196 = vpop.f32.mrf.mxu0
    %v3197 = vpop.f32.mrf.mxu0
    %v3198 = vpop.f32.mrf.mxu0
    %3199 = vdwg.mxu0
    %3202 = vrot.lane.b32.xlu0 %v3147, 12
    %v3203 = vpop.permute.xlu0 %3202
    %3204 = vrot.lane.b32.xlu0 %v3195, 12
    %v3205 = vpop.permute.xlu0 %3204
    %3208 = vst.msk [vmem:[#allocation2] sm:$0xff] %vm1037, %v3203
    %3209 = vst.msk [vmem:[#allocation2 + $0x8] sm:$0xff] %vm1037, %v3205
    %3210 = vrot.lane.b32.xlu0 %v2290, 112
    %v3211 = vpop.permute.xlu0 %3210
    %3212 = vrot.lane.b32.xlu0 %v2290, 80
    %v3213 = vpop.permute.xlu0 %3212
    %v3215 = vsel %vm119, %v3211, 0
    %v3218 = vsel %vm119, %v3213, 0
    %3220 = vmatprep.subr.bf16.mxu0 0
    %3221 = vmatpush1.bf16.xpose.msra.mxu0 0
    %3222 = vmatprep.subr.bf16.mxu0 0
    %3223 = vmatpush1.bf16.xpose.msra.mxu0 0
    %3224 = vmatprep.subr.bf16.mxu0 0
    %3225 = vmatpush1.bf16.xpose.msra.mxu0 0
    %3226 = vmatprep.subr.bf16.mxu0 0
    %3227 = vmatpush1.bf16.xpose.msra.mxu0 0
    %3228 = vmatprep.subr.bf16.mxu0 0
    %3229 = vmatpush1.bf16.xpose.msra.mxu0 0
    %3230 = vmatprep.subr.bf16.mxu0 0
    %3231 = vmatpush1.bf16.xpose.msra.mxu0 0
    %3232 = vmatprep.subr.bf16.mxu0 0
    %3233 = vmatpush1.bf16.xpose.msra.mxu0 0
    %3234 = vmatprep.subr.bf16.mxu0 0
    %3235 = vmatpush1.bf16.xpose.msra.mxu0 %v3218
    %3236 = vmatprep.subr.bf16.mxu0 0
    %3237 = vmatpush2.bf16.xpose.msra.mxu0 0
    %3238 = vmatprep.subr.bf16.mxu0 0
    %3239 = vmatpush2.bf16.xpose.msra.mxu0 0
    %3240 = vmatprep.subr.bf16.mxu0 0
    %3241 = vmatpush2.bf16.xpose.msra.mxu0 0
    %3242 = vmatprep.subr.bf16.mxu0 0
    %3243 = vmatpush2.bf16.xpose.msra.mxu0 0
    %3244 = vmatprep.subr.bf16.mxu0 0
    %3245 = vmatpush2.bf16.xpose.msra.mxu0 0
    %3246 = vmatprep.subr.bf16.mxu0 0
    %3247 = vmatpush2.bf16.xpose.msra.mxu0 0
    %3248 = vmatprep.subr.bf16.mxu0 0
    %3249 = vmatpush2.bf16.xpose.msra.mxu0 0
    %3250 = vmatprep.subr.bf16.mxu0 0
    %3251 = vmatpush2.bf16.xpose.msra.mxu0 0
    %3252 = vmatprep.mubr.bf16.mxu0 0
    %3253 = vmatmul.mubr.bf16.gmra.mxu0 %v3215
    %v3254 = vpop.f32.mrf.mxu0
    %v3255 = vadd.f32 0.0, %v3254
    %v3256 = vpop.f32.mrf.mxu0
    %v3257 = vpop.f32.mrf.mxu0
    %v3258 = vpop.f32.mrf.mxu0
    %3259 = vdwg.mxu0
    %3260 = vrot.lane.b32.xlu0 %v2291, 112
    %v3261 = vpop.permute.xlu0 %3260
    %3262 = vrot.lane.b32.xlu0 %v2291, 80
    %v3263 = vpop.permute.xlu0 %3262
    %v3265 = vsel %vm119, %v3261, 0
    %v3268 = vsel %vm119, %v3263, 0
    %3270 = vmatprep.subr.bf16.mxu0 0
    %3271 = vmatpush1.bf16.xpose.msra.mxu0 0
    %3272 = vmatprep.subr.bf16.mxu0 0
    %3273 = vmatpush1.bf16.xpose.msra.mxu0 0
    %3274 = vmatprep.subr.bf16.mxu0 0
    %3275 = vmatpush1.bf16.xpose.msra.mxu0 0
    %3276 = vmatprep.subr.bf16.mxu0 0
    %3277 = vmatpush1.bf16.xpose.msra.mxu0 0
    %3278 = vmatprep.subr.bf16.mxu0 0
    %3279 = vmatpush1.bf16.xpose.msra.mxu0 0
    %3280 = vmatprep.subr.bf16.mxu0 0
    %3281 = vmatpush1.bf16.xpose.msra.mxu0 0
    %3282 = vmatprep.subr.bf16.mxu0 0
    %3283 = vmatpush1.bf16.xpose.msra.mxu0 0
    %3284 = vmatprep.subr.bf16.mxu0 0
    %3285 = vmatpush1.bf16.xpose.msra.mxu0 %v3268
    %3286 = vmatprep.subr.bf16.mxu0 0
    %3287 = vmatpush2.bf16.xpose.msra.mxu0 0
    %3288 = vmatprep.subr.bf16.mxu0 0
    %3289 = vmatpush2.bf16.xpose.msra.mxu0 0
    %3290 = vmatprep.subr.bf16.mxu0 0
    %3291 = vmatpush2.bf16.xpose.msra.mxu0 0
    %3292 = vmatprep.subr.bf16.mxu0 0
    %3293 = vmatpush2.bf16.xpose.msra.mxu0 0
    %3294 = vmatprep.subr.bf16.mxu0 0
    %3295 = vmatpush2.bf16.xpose.msra.mxu0 0
    %3296 = vmatprep.subr.bf16.mxu0 0
    %3297 = vmatpush2.bf16.xpose.msra.mxu0 0
    %3298 = vmatprep.subr.bf16.mxu0 0
    %3299 = vmatpush2.bf16.xpose.msra.mxu0 0
    %3300 = vmatprep.subr.bf16.mxu0 0
    %3301 = vmatpush2.bf16.xpose.msra.mxu0 0
    %3302 = vmatprep.mubr.bf16.mxu0 0
    %3303 = vmatmul.mubr.bf16.gmra.mxu0 %v3265
    %v3304 = vpop.f32.mrf.mxu0
    %v3305 = vadd.f32 0.0, %v3304
    %v3306 = vpop.f32.mrf.mxu0
    %v3307 = vpop.f32.mrf.mxu0
    %v3308 = vpop.f32.mrf.mxu0
    %3309 = vdwg.mxu0
    %v3310 = vmul.f32 %v3255, 0.5
    %v3311 = vmul.f32 %v3305, 0.5
    %v3312 = vsel %vm217, %v3310, -inf
    %3313 = vmax.xlane.f32.xlu0 %v3312
    %v3314 = vpop.xlane.xlu0 %3313
    %v3315 = vsel %vm217, %v3311, -inf
    %3316 = vmax.xlane.f32.xlu0 %v3315
    %v3317 = vpop.xlane.xlu0 %3316
    %v3318 = vsub.f32 %v3310, %v3314
    %v3319 = vsub.f32 %v3311, %v3317
    %v3320 = vmul.f32 %v3318, 1.442695
    %v3321 = vpow.pop %v3320
    %v3322 = vmul.f32 %v3319, 1.442695
    %v3323 = vpow.pop %v3322
    %v3324 = vsel %vm217, %v3321, 0.0
    %3325 = vadd.xlane.f32.xlu0 %v3324
    %v3326 = vpop.xlane.xlu0 %3325
    %v3327 = vsel %vm217, %v3323, 0.0
    %3328 = vadd.xlane.f32.xlu0 %v3327
    %v3329 = vpop.xlane.xlu0 %3328
    %v3330 = vrcp.pop %v3326
    %v3331 = vrcp.pop %v3329
    %v3332 = vmul.f32 %v3321, %v3330
    %v3333 = vmul.f32 %v3323, %v3331
    %v3334 = vpack.c.bf16 %v3332, %v3332
    %v3335 = vpack.c.bf16 %v3333, %v3333
    %3336 = vrot.lane.b32.xlu0 %v2290, 48
    %v3337 = vpop.permute.xlu0 %3336
    %v3339 = vsel %vm217, %v3334, 0
    %v3342 = vsel %vm247, %v3337, 0
    %3344 = vmatprep.subr.bf16.mxu0 0
    %3345 = vmatpush1.bf16.msra.mxu0 0
    %3346 = vmatprep.subr.bf16.mxu0 0
    %3347 = vmatpush1.bf16.msra.mxu0 0
    %3348 = vmatprep.subr.bf16.mxu0 0
    %3349 = vmatpush1.bf16.msra.mxu0 0
    %3350 = vmatprep.subr.bf16.mxu0 0
    %3351 = vmatpush1.bf16.msra.mxu0 0
    %3352 = vmatprep.subr.bf16.mxu0 0
    %3353 = vmatpush1.bf16.msra.mxu0 0
    %3354 = vmatprep.subr.bf16.mxu0 0
    %3355 = vmatpush1.bf16.msra.mxu0 0
    %3356 = vmatprep.subr.bf16.mxu0 0
    %3357 = vmatpush1.bf16.msra.mxu0 0
    %3358 = vmatprep.subr.bf16.mxu0 0
    %3359 = vmatpush1.bf16.msra.mxu0 %v3342
    %3360 = vmatprep.subr.bf16.mxu0 0
    %3361 = vmatpush2.bf16.msra.mxu0 0
    %3362 = vmatprep.subr.bf16.mxu0 0
    %3363 = vmatpush2.bf16.msra.mxu0 0
    %3364 = vmatprep.subr.bf16.mxu0 0
    %3365 = vmatpush2.bf16.msra.mxu0 0
    %3366 = vmatprep.subr.bf16.mxu0 0
    %3367 = vmatpush2.bf16.msra.mxu0 0
    %3368 = vmatprep.subr.bf16.mxu0 0
    %3369 = vmatpush2.bf16.msra.mxu0 0
    %3370 = vmatprep.subr.bf16.mxu0 0
    %3371 = vmatpush2.bf16.msra.mxu0 0
    %3372 = vmatprep.subr.bf16.mxu0 0
    %3373 = vmatpush2.bf16.msra.mxu0 0
    %3374 = vmatprep.subr.bf16.mxu0 0
    %3375 = vmatpush2.bf16.msra.mxu0 0
    %3376 = vmatprep.mubr.bf16.mxu0 0
    %3377 = vmatmul.mubr.bf16.gmra.mxu0 %v3339
    %v3378 = vpop.f32.mrf.mxu0
    %v3379 = vadd.f32 0.0, %v3378
    %v3380 = vpop.f32.mrf.mxu0
    %v3381 = vpop.f32.mrf.mxu0
    %v3382 = vpop.f32.mrf.mxu0
    %3383 = vdwg.mxu0
    %3384 = vrot.lane.b32.xlu0 %v2291, 48
    %v3385 = vpop.permute.xlu0 %3384
    %v3387 = vsel %vm217, %v3335, 0
    %v3390 = vsel %vm247, %v3385, 0
    %3392 = vmatprep.subr.bf16.mxu0 0
    %3393 = vmatpush1.bf16.msra.mxu0 0
    %3394 = vmatprep.subr.bf16.mxu0 0
    %3395 = vmatpush1.bf16.msra.mxu0 0
    %3396 = vmatprep.subr.bf16.mxu0 0
    %3397 = vmatpush1.bf16.msra.mxu0 0
    %3398 = vmatprep.subr.bf16.mxu0 0
    %3399 = vmatpush1.bf16.msra.mxu0 0
    %3400 = vmatprep.subr.bf16.mxu0 0
    %3401 = vmatpush1.bf16.msra.mxu0 0
    %3402 = vmatprep.subr.bf16.mxu0 0
    %3403 = vmatpush1.bf16.msra.mxu0 0
    %3404 = vmatprep.subr.bf16.mxu0 0
    %3405 = vmatpush1.bf16.msra.mxu0 0
    %3406 = vmatprep.subr.bf16.mxu0 0
    %3407 = vmatpush1.bf16.msra.mxu0 %v3390
    %3408 = vmatprep.subr.bf16.mxu0 0
    %3409 = vmatpush2.bf16.msra.mxu0 0
    %3410 = vmatprep.subr.bf16.mxu0 0
    %3411 = vmatpush2.bf16.msra.mxu0 0
    %3412 = vmatprep.subr.bf16.mxu0 0
    %3413 = vmatpush2.bf16.msra.mxu0 0
    %3414 = vmatprep.subr.bf16.mxu0 0
    %3415 = vmatpush2.bf16.msra.mxu0 0
    %3416 = vmatprep.subr.bf16.mxu0 0
    %3417 = vmatpush2.bf16.msra.mxu0 0
    %3418 = vmatprep.subr.bf16.mxu0 0
    %3419 = vmatpush2.bf16.msra.mxu0 0
    %3420 = vmatprep.subr.bf16.mxu0 0
    %3421 = vmatpush2.bf16.msra.mxu0 0
    %3422 = vmatprep.subr.bf16.mxu0 0
    %3423 = vmatpush2.bf16.msra.mxu0 0
    %3424 = vmatprep.mubr.bf16.mxu0 0
    %3425 = vmatmul.mubr.bf16.gmra.mxu0 %v3387
    %v3426 = vpop.f32.mrf.mxu0
    %v3427 = vadd.f32 0.0, %v3426
    %v3428 = vpop.f32.mrf.mxu0
    %v3429 = vpop.f32.mrf.mxu0
    %v3430 = vpop.f32.mrf.mxu0
    %3431 = vdwg.mxu0
    %3434 = vrot.lane.b32.xlu0 %v3379, 16
    %v3435 = vpop.permute.xlu0 %3434
    %3436 = vrot.lane.b32.xlu0 %v3427, 16
    %v3437 = vpop.permute.xlu0 %3436
    %3440 = vst.msk [vmem:[#allocation2] sm:$0xff] %vm1270, %v3435
    %3441 = vst.msk [vmem:[#allocation2 + $0x8] sm:$0xff] %vm1270, %v3437
    %3442 = vrot.lane.b32.xlu0 %v2290, 108
    %v3443 = vpop.permute.xlu0 %3442
    %3444 = vrot.lane.b32.xlu0 %v2290, 76
    %v3445 = vpop.permute.xlu0 %3444
    %v3447 = vsel %vm119, %v3443, 0
    %v3450 = vsel %vm119, %v3445, 0
    %3452 = vmatprep.subr.bf16.mxu0 0
    %3453 = vmatpush1.bf16.xpose.msra.mxu0 0
    %3454 = vmatprep.subr.bf16.mxu0 0
    %3455 = vmatpush1.bf16.xpose.msra.mxu0 0
    %3456 = vmatprep.subr.bf16.mxu0 0
    %3457 = vmatpush1.bf16.xpose.msra.mxu0 0
    %3458 = vmatprep.subr.bf16.mxu0 0
    %3459 = vmatpush1.bf16.xpose.msra.mxu0 0
    %3460 = vmatprep.subr.bf16.mxu0 0
    %3461 = vmatpush1.bf16.xpose.msra.mxu0 0
    %3462 = vmatprep.subr.bf16.mxu0 0
    %3463 = vmatpush1.bf16.xpose.msra.mxu0 0
    %3464 = vmatprep.subr.bf16.mxu0 0
    %3465 = vmatpush1.bf16.xpose.msra.mxu0 0
    %3466 = vmatprep.subr.bf16.mxu0 0
    %3467 = vmatpush1.bf16.xpose.msra.mxu0 %v3450
    %3468 = vmatprep.subr.bf16.mxu0 0
    %3469 = vmatpush2.bf16.xpose.msra.mxu0 0
    %3470 = vmatprep.subr.bf16.mxu0 0
    %3471 = vmatpush2.bf16.xpose.msra.mxu0 0
    %3472 = vmatprep.subr.bf16.mxu0 0
    %3473 = vmatpush2.bf16.xpose.msra.mxu0 0
    %3474 = vmatprep.subr.bf16.mxu0 0
    %3475 = vmatpush2.bf16.xpose.msra.mxu0 0
    %3476 = vmatprep.subr.bf16.mxu0 0
    %3477 = vmatpush2.bf16.xpose.msra.mxu0 0
    %3478 = vmatprep.subr.bf16.mxu0 0
    %3479 = vmatpush2.bf16.xpose.msra.mxu0 0
    %3480 = vmatprep.subr.bf16.mxu0 0
    %3481 = vmatpush2.bf16.xpose.msra.mxu0 0
    %3482 = vmatprep.subr.bf16.mxu0 0
    %3483 = vmatpush2.bf16.xpose.msra.mxu0 0
    %3484 = vmatprep.mubr.bf16.mxu0 0
    %3485 = vmatmul.mubr.bf16.gmra.mxu0 %v3447
    %v3486 = vpop.f32.mrf.mxu0
    %v3487 = vadd.f32 0.0, %v3486
    %v3488 = vpop.f32.mrf.mxu0
    %v3489 = vpop.f32.mrf.mxu0
    %v3490 = vpop.f32.mrf.mxu0
    %3491 = vdwg.mxu0
    %3492 = vrot.lane.b32.xlu0 %v2291, 108
    %v3493 = vpop.permute.xlu0 %3492
    %3494 = vrot.lane.b32.xlu0 %v2291, 76
    %v3495 = vpop.permute.xlu0 %3494
    %v3497 = vsel %vm119, %v3493, 0
    %v3500 = vsel %vm119, %v3495, 0
    %3502 = vmatprep.subr.bf16.mxu0 0
    %3503 = vmatpush1.bf16.xpose.msra.mxu0 0
    %3504 = vmatprep.subr.bf16.mxu0 0
    %3505 = vmatpush1.bf16.xpose.msra.mxu0 0
    %3506 = vmatprep.subr.bf16.mxu0 0
    %3507 = vmatpush1.bf16.xpose.msra.mxu0 0
    %3508 = vmatprep.subr.bf16.mxu0 0
    %3509 = vmatpush1.bf16.xpose.msra.mxu0 0
    %3510 = vmatprep.subr.bf16.mxu0 0
    %3511 = vmatpush1.bf16.xpose.msra.mxu0 0
    %3512 = vmatprep.subr.bf16.mxu0 0
    %3513 = vmatpush1.bf16.xpose.msra.mxu0 0
    %3514 = vmatprep.subr.bf16.mxu0 0
    %3515 = vmatpush1.bf16.xpose.msra.mxu0 0
    %3516 = vmatprep.subr.bf16.mxu0 0
    %3517 = vmatpush1.bf16.xpose.msra.mxu0 %v3500
    %3518 = vmatprep.subr.bf16.mxu0 0
    %3519 = vmatpush2.bf16.xpose.msra.mxu0 0
    %3520 = vmatprep.subr.bf16.mxu0 0
    %3521 = vmatpush2.bf16.xpose.msra.mxu0 0
    %3522 = vmatprep.subr.bf16.mxu0 0
    %3523 = vmatpush2.bf16.xpose.msra.mxu0 0
    %3524 = vmatprep.subr.bf16.mxu0 0
    %3525 = vmatpush2.bf16.xpose.msra.mxu0 0
    %3526 = vmatprep.subr.bf16.mxu0 0
    %3527 = vmatpush2.bf16.xpose.msra.mxu0 0
    %3528 = vmatprep.subr.bf16.mxu0 0
    %3529 = vmatpush2.bf16.xpose.msra.mxu0 0
    %3530 = vmatprep.subr.bf16.mxu0 0
    %3531 = vmatpush2.bf16.xpose.msra.mxu0 0
    %3532 = vmatprep.subr.bf16.mxu0 0
    %3533 = vmatpush2.bf16.xpose.msra.mxu0 0
    %3534 = vmatprep.mubr.bf16.mxu0 0
    %3535 = vmatmul.mubr.bf16.gmra.mxu0 %v3497
    %v3536 = vpop.f32.mrf.mxu0
    %v3537 = vadd.f32 0.0, %v3536
    %v3538 = vpop.f32.mrf.mxu0
    %v3539 = vpop.f32.mrf.mxu0
    %v3540 = vpop.f32.mrf.mxu0
    %3541 = vdwg.mxu0
    %v3542 = vmul.f32 %v3487, 0.5
    %v3543 = vmul.f32 %v3537, 0.5
    %v3544 = vsel %vm217, %v3542, -inf
    %3545 = vmax.xlane.f32.xlu0 %v3544
    %v3546 = vpop.xlane.xlu0 %3545
    %v3547 = vsel %vm217, %v3543, -inf
    %3548 = vmax.xlane.f32.xlu0 %v3547
    %v3549 = vpop.xlane.xlu0 %3548
    %v3550 = vsub.f32 %v3542, %v3546
    %v3551 = vsub.f32 %v3543, %v3549
    %v3552 = vmul.f32 %v3550, 1.442695
    %v3553 = vpow.pop %v3552
    %v3554 = vmul.f32 %v3551, 1.442695
    %v3555 = vpow.pop %v3554
    %v3556 = vsel %vm217, %v3553, 0.0
    %3557 = vadd.xlane.f32.xlu0 %v3556
    %v3558 = vpop.xlane.xlu0 %3557
    %v3559 = vsel %vm217, %v3555, 0.0
    %3560 = vadd.xlane.f32.xlu0 %v3559
    %v3561 = vpop.xlane.xlu0 %3560
    %v3562 = vrcp.pop %v3558
    %v3563 = vrcp.pop %v3561
    %v3564 = vmul.f32 %v3553, %v3562
    %v3565 = vmul.f32 %v3555, %v3563
    %v3566 = vpack.c.bf16 %v3564, %v3564
    %v3567 = vpack.c.bf16 %v3565, %v3565
    %3568 = vrot.lane.b32.xlu0 %v2290, 44
    %v3569 = vpop.permute.xlu0 %3568
    %v3571 = vsel %vm217, %v3566, 0
    %v3574 = vsel %vm247, %v3569, 0
    %3576 = vmatprep.subr.bf16.mxu0 0
    %3577 = vmatpush1.bf16.msra.mxu0 0
    %3578 = vmatprep.subr.bf16.mxu0 0
    %3579 = vmatpush1.bf16.msra.mxu0 0
    %3580 = vmatprep.subr.bf16.mxu0 0
    %3581 = vmatpush1.bf16.msra.mxu0 0
    %3582 = vmatprep.subr.bf16.mxu0 0
    %3583 = vmatpush1.bf16.msra.mxu0 0
    %3584 = vmatprep.subr.bf16.mxu0 0
    %3585 = vmatpush1.bf16.msra.mxu0 0
    %3586 = vmatprep.subr.bf16.mxu0 0
    %3587 = vmatpush1.bf16.msra.mxu0 0
    %3588 = vmatprep.subr.bf16.mxu0 0
    %3589 = vmatpush1.bf16.msra.mxu0 0
    %3590 = vmatprep.subr.bf16.mxu0 0
    %3591 = vmatpush1.bf16.msra.mxu0 %v3574
    %3592 = vmatprep.subr.bf16.mxu0 0
    %3593 = vmatpush2.bf16.msra.mxu0 0
    %3594 = vmatprep.subr.bf16.mxu0 0
    %3595 = vmatpush2.bf16.msra.mxu0 0
    %3596 = vmatprep.subr.bf16.mxu0 0
    %3597 = vmatpush2.bf16.msra.mxu0 0
    %3598 = vmatprep.subr.bf16.mxu0 0
    %3599 = vmatpush2.bf16.msra.mxu0 0
    %3600 = vmatprep.subr.bf16.mxu0 0
    %3601 = vmatpush2.bf16.msra.mxu0 0
    %3602 = vmatprep.subr.bf16.mxu0 0
    %3603 = vmatpush2.bf16.msra.mxu0 0
    %3604 = vmatprep.subr.bf16.mxu0 0
    %3605 = vmatpush2.bf16.msra.mxu0 0
    %3606 = vmatprep.subr.bf16.mxu0 0
    %3607 = vmatpush2.bf16.msra.mxu0 0
    %3608 = vmatprep.mubr.bf16.mxu0 0
    %3609 = vmatmul.mubr.bf16.gmra.mxu0 %v3571
    %v3610 = vpop.f32.mrf.mxu0
    %v3611 = vadd.f32 0.0, %v3610
    %v3612 = vpop.f32.mrf.mxu0
    %v3613 = vpop.f32.mrf.mxu0
    %v3614 = vpop.f32.mrf.mxu0
    %3615 = vdwg.mxu0
    %3616 = vrot.lane.b32.xlu0 %v2291, 44
    %v3617 = vpop.permute.xlu0 %3616
    %v3619 = vsel %vm217, %v3567, 0
    %v3622 = vsel %vm247, %v3617, 0
    %3624 = vmatprep.subr.bf16.mxu0 0
    %3625 = vmatpush1.bf16.msra.mxu0 0
    %3626 = vmatprep.subr.bf16.mxu0 0
    %3627 = vmatpush1.bf16.msra.mxu0 0
    %3628 = vmatprep.subr.bf16.mxu0 0
    %3629 = vmatpush1.bf16.msra.mxu0 0
    %3630 = vmatprep.subr.bf16.mxu0 0
    %3631 = vmatpush1.bf16.msra.mxu0 0
    %3632 = vmatprep.subr.bf16.mxu0 0
    %3633 = vmatpush1.bf16.msra.mxu0 0
    %3634 = vmatprep.subr.bf16.mxu0 0
    %3635 = vmatpush1.bf16.msra.mxu0 0
    %3636 = vmatprep.subr.bf16.mxu0 0
    %3637 = vmatpush1.bf16.msra.mxu0 0
    %3638 = vmatprep.subr.bf16.mxu0 0
    %3639 = vmatpush1.bf16.msra.mxu0 %v3622
    %3640 = vmatprep.subr.bf16.mxu0 0
    %3641 = vmatpush2.bf16.msra.mxu0 0
    %3642 = vmatprep.subr.bf16.mxu0 0
    %3643 = vmatpush2.bf16.msra.mxu0 0
    %3644 = vmatprep.subr.bf16.mxu0 0
    %3645 = vmatpush2.bf16.msra.mxu0 0
    %3646 = vmatprep.subr.bf16.mxu0 0
    %3647 = vmatpush2.bf16.msra.mxu0 0
    %3648 = vmatprep.subr.bf16.mxu0 0
    %3649 = vmatpush2.bf16.msra.mxu0 0
    %3650 = vmatprep.subr.bf16.mxu0 0
    %3651 = vmatpush2.bf16.msra.mxu0 0
    %3652 = vmatprep.subr.bf16.mxu0 0
    %3653 = vmatpush2.bf16.msra.mxu0 0
    %3654 = vmatprep.subr.bf16.mxu0 0
    %3655 = vmatpush2.bf16.msra.mxu0 0
    %3656 = vmatprep.mubr.bf16.mxu0 0
    %3657 = vmatmul.mubr.bf16.gmra.mxu0 %v3619
    %v3658 = vpop.f32.mrf.mxu0
    %v3659 = vadd.f32 0.0, %v3658
    %v3660 = vpop.f32.mrf.mxu0
    %v3661 = vpop.f32.mrf.mxu0
    %v3662 = vpop.f32.mrf.mxu0
    %3663 = vdwg.mxu0
    %3666 = vrot.lane.b32.xlu0 %v3611, 20
    %v3667 = vpop.permute.xlu0 %3666
    %3668 = vrot.lane.b32.xlu0 %v3659, 20
    %v3669 = vpop.permute.xlu0 %3668
    %3672 = vst.msk [vmem:[#allocation2] sm:$0xff] %vm1503, %v3667
    %3673 = vst.msk [vmem:[#allocation2 + $0x8] sm:$0xff] %vm1503, %v3669
    %3674 = vrot.lane.b32.xlu0 %v2290, 104
    %v3675 = vpop.permute.xlu0 %3674
    %3676 = vrot.lane.b32.xlu0 %v2290, 72
    %v3677 = vpop.permute.xlu0 %3676
    %v3679 = vsel %vm119, %v3675, 0
    %v3682 = vsel %vm119, %v3677, 0
    %3684 = vmatprep.subr.bf16.mxu0 0
    %3685 = vmatpush1.bf16.xpose.msra.mxu0 0
    %3686 = vmatprep.subr.bf16.mxu0 0
    %3687 = vmatpush1.bf16.xpose.msra.mxu0 0
    %3688 = vmatprep.subr.bf16.mxu0 0
    %3689 = vmatpush1.bf16.xpose.msra.mxu0 0
    %3690 = vmatprep.subr.bf16.mxu0 0
    %3691 = vmatpush1.bf16.xpose.msra.mxu0 0
    %3692 = vmatprep.subr.bf16.mxu0 0
    %3693 = vmatpush1.bf16.xpose.msra.mxu0 0
    %3694 = vmatprep.subr.bf16.mxu0 0
    %3695 = vmatpush1.bf16.xpose.msra.mxu0 0
    %3696 = vmatprep.subr.bf16.mxu0 0
    %3697 = vmatpush1.bf16.xpose.msra.mxu0 0
    %3698 = vmatprep.subr.bf16.mxu0 0
    %3699 = vmatpush1.bf16.xpose.msra.mxu0 %v3682
    %3700 = vmatprep.subr.bf16.mxu0 0
    %3701 = vmatpush2.bf16.xpose.msra.mxu0 0
    %3702 = vmatprep.subr.bf16.mxu0 0
    %3703 = vmatpush2.bf16.xpose.msra.mxu0 0
    %3704 = vmatprep.subr.bf16.mxu0 0
    %3705 = vmatpush2.bf16.xpose.msra.mxu0 0
    %3706 = vmatprep.subr.bf16.mxu0 0
    %3707 = vmatpush2.bf16.xpose.msra.mxu0 0
    %3708 = vmatprep.subr.bf16.mxu0 0
    %3709 = vmatpush2.bf16.xpose.msra.mxu0 0
    %3710 = vmatprep.subr.bf16.mxu0 0
    %3711 = vmatpush2.bf16.xpose.msra.mxu0 0
    %3712 = vmatprep.subr.bf16.mxu0 0
    %3713 = vmatpush2.bf16.xpose.msra.mxu0 0
    %3714 = vmatprep.subr.bf16.mxu0 0
    %3715 = vmatpush2.bf16.xpose.msra.mxu0 0
    %3716 = vmatprep.mubr.bf16.mxu0 0
    %3717 = vmatmul.mubr.bf16.gmra.mxu0 %v3679
    %v3718 = vpop.f32.mrf.mxu0
    %v3719 = vadd.f32 0.0, %v3718
    %v3720 = vpop.f32.mrf.mxu0
    %v3721 = vpop.f32.mrf.mxu0
    %v3722 = vpop.f32.mrf.mxu0
    %3723 = vdwg.mxu0
    %3724 = vrot.lane.b32.xlu0 %v2291, 104
    %v3725 = vpop.permute.xlu0 %3724
    %3726 = vrot.lane.b32.xlu0 %v2291, 72
    %v3727 = vpop.permute.xlu0 %3726
    %v3729 = vsel %vm119, %v3725, 0
    %v3732 = vsel %vm119, %v3727, 0
    %3734 = vmatprep.subr.bf16.mxu0 0
    %3735 = vmatpush1.bf16.xpose.msra.mxu0 0
    %3736 = vmatprep.subr.bf16.mxu0 0
    %3737 = vmatpush1.bf16.xpose.msra.mxu0 0
    %3738 = vmatprep.subr.bf16.mxu0 0
    %3739 = vmatpush1.bf16.xpose.msra.mxu0 0
    %3740 = vmatprep.subr.bf16.mxu0 0
    %3741 = vmatpush1.bf16.xpose.msra.mxu0 0
    %3742 = vmatprep.subr.bf16.mxu0 0
    %3743 = vmatpush1.bf16.xpose.msra.mxu0 0
    %3744 = vmatprep.subr.bf16.mxu0 0
    %3745 = vmatpush1.bf16.xpose.msra.mxu0 0
    %3746 = vmatprep.subr.bf16.mxu0 0
    %3747 = vmatpush1.bf16.xpose.msra.mxu0 0
    %3748 = vmatprep.subr.bf16.mxu0 0
    %3749 = vmatpush1.bf16.xpose.msra.mxu0 %v3732
    %3750 = vmatprep.subr.bf16.mxu0 0
    %3751 = vmatpush2.bf16.xpose.msra.mxu0 0
    %3752 = vmatprep.subr.bf16.mxu0 0
    %3753 = vmatpush2.bf16.xpose.msra.mxu0 0
    %3754 = vmatprep.subr.bf16.mxu0 0
    %3755 = vmatpush2.bf16.xpose.msra.mxu0 0
    %3756 = vmatprep.subr.bf16.mxu0 0
    %3757 = vmatpush2.bf16.xpose.msra.mxu0 0
    %3758 = vmatprep.subr.bf16.mxu0 0
    %3759 = vmatpush2.bf16.xpose.msra.mxu0 0
    %3760 = vmatprep.subr.bf16.mxu0 0
    %3761 = vmatpush2.bf16.xpose.msra.mxu0 0
    %3762 = vmatprep.subr.bf16.mxu0 0
    %3763 = vmatpush2.bf16.xpose.msra.mxu0 0
    %3764 = vmatprep.subr.bf16.mxu0 0
    %3765 = vmatpush2.bf16.xpose.msra.mxu0 0
    %3766 = vmatprep.mubr.bf16.mxu0 0
    %3767 = vmatmul.mubr.bf16.gmra.mxu0 %v3729
    %v3768 = vpop.f32.mrf.mxu0
    %v3769 = vadd.f32 0.0, %v3768
    %v3770 = vpop.f32.mrf.mxu0
    %v3771 = vpop.f32.mrf.mxu0
    %v3772 = vpop.f32.mrf.mxu0
    %3773 = vdwg.mxu0
    %v3774 = vmul.f32 %v3719, 0.5
    %v3775 = vmul.f32 %v3769, 0.5
    %v3776 = vsel %vm217, %v3774, -inf
    %3777 = vmax.xlane.f32.xlu0 %v3776
    %v3778 = vpop.xlane.xlu0 %3777
    %v3779 = vsel %vm217, %v3775, -inf
    %3780 = vmax.xlane.f32.xlu0 %v3779
    %v3781 = vpop.xlane.xlu0 %3780
    %v3782 = vsub.f32 %v3774, %v3778
    %v3783 = vsub.f32 %v3775, %v3781
    %v3784 = vmul.f32 %v3782, 1.442695
    %v3785 = vpow.pop %v3784
    %v3786 = vmul.f32 %v3783, 1.442695
    %v3787 = vpow.pop %v3786
    %v3788 = vsel %vm217, %v3785, 0.0
    %3789 = vadd.xlane.f32.xlu0 %v3788
    %v3790 = vpop.xlane.xlu0 %3789
    %v3791 = vsel %vm217, %v3787, 0.0
    %3792 = vadd.xlane.f32.xlu0 %v3791
    %v3793 = vpop.xlane.xlu0 %3792
    %v3794 = vrcp.pop %v3790
    %v3795 = vrcp.pop %v3793
    %v3796 = vmul.f32 %v3785, %v3794
    %v3797 = vmul.f32 %v3787, %v3795
    %v3798 = vpack.c.bf16 %v3796, %v3796
    %v3799 = vpack.c.bf16 %v3797, %v3797
    %3800 = vrot.lane.b32.xlu0 %v2290, 40
    %v3801 = vpop.permute.xlu0 %3800
    %v3803 = vsel %vm217, %v3798, 0
    %v3806 = vsel %vm247, %v3801, 0
    %3808 = vmatprep.subr.bf16.mxu0 0
    %3809 = vmatpush1.bf16.msra.mxu0 0
    %3810 = vmatprep.subr.bf16.mxu0 0
    %3811 = vmatpush1.bf16.msra.mxu0 0
    %3812 = vmatprep.subr.bf16.mxu0 0
    %3813 = vmatpush1.bf16.msra.mxu0 0
    %3814 = vmatprep.subr.bf16.mxu0 0
    %3815 = vmatpush1.bf16.msra.mxu0 0
    %3816 = vmatprep.subr.bf16.mxu0 0
    %3817 = vmatpush1.bf16.msra.mxu0 0
    %3818 = vmatprep.subr.bf16.mxu0 0
    %3819 = vmatpush1.bf16.msra.mxu0 0
    %3820 = vmatprep.subr.bf16.mxu0 0
    %3821 = vmatpush1.bf16.msra.mxu0 0
    %3822 = vmatprep.subr.bf16.mxu0 0
    %3823 = vmatpush1.bf16.msra.mxu0 %v3806
    %3824 = vmatprep.subr.bf16.mxu0 0
    %3825 = vmatpush2.bf16.msra.mxu0 0
    %3826 = vmatprep.subr.bf16.mxu0 0
    %3827 = vmatpush2.bf16.msra.mxu0 0
    %3828 = vmatprep.subr.bf16.mxu0 0
    %3829 = vmatpush2.bf16.msra.mxu0 0
    %3830 = vmatprep.subr.bf16.mxu0 0
    %3831 = vmatpush2.bf16.msra.mxu0 0
    %3832 = vmatprep.subr.bf16.mxu0 0
    %3833 = vmatpush2.bf16.msra.mxu0 0
    %3834 = vmatprep.subr.bf16.mxu0 0
    %3835 = vmatpush2.bf16.msra.mxu0 0
    %3836 = vmatprep.subr.bf16.mxu0 0
    %3837 = vmatpush2.bf16.msra.mxu0 0
    %3838 = vmatprep.subr.bf16.mxu0 0
    %3839 = vmatpush2.bf16.msra.mxu0 0
    %3840 = vmatprep.mubr.bf16.mxu0 0
    %3841 = vmatmul.mubr.bf16.gmra.mxu0 %v3803
    %v3842 = vpop.f32.mrf.mxu0
    %v3843 = vadd.f32 0.0, %v3842
    %v3844 = vpop.f32.mrf.mxu0
    %v3845 = vpop.f32.mrf.mxu0
    %v3846 = vpop.f32.mrf.mxu0
    %3847 = vdwg.mxu0
    %3848 = vrot.lane.b32.xlu0 %v2291, 40
    %v3849 = vpop.permute.xlu0 %3848
    %v3851 = vsel %vm217, %v3799, 0
    %v3854 = vsel %vm247, %v3849, 0
    %3856 = vmatprep.subr.bf16.mxu0 0
    %3857 = vmatpush1.bf16.msra.mxu0 0
    %3858 = vmatprep.subr.bf16.mxu0 0
    %3859 = vmatpush1.bf16.msra.mxu0 0
    %3860 = vmatprep.subr.bf16.mxu0 0
    %3861 = vmatpush1.bf16.msra.mxu0 0
    %3862 = vmatprep.subr.bf16.mxu0 0
    %3863 = vmatpush1.bf16.msra.mxu0 0
    %3864 = vmatprep.subr.bf16.mxu0 0
    %3865 = vmatpush1.bf16.msra.mxu0 0
    %3866 = vmatprep.subr.bf16.mxu0 0
    %3867 = vmatpush1.bf16.msra.mxu0 0
    %3868 = vmatprep.subr.bf16.mxu0 0
    %3869 = vmatpush1.bf16.msra.mxu0 0
    %3870 = vmatprep.subr.bf16.mxu0 0
    %3871 = vmatpush1.bf16.msra.mxu0 %v3854
    %3872 = vmatprep.subr.bf16.mxu0 0
    %3873 = vmatpush2.bf16.msra.mxu0 0
    %3874 = vmatprep.subr.bf16.mxu0 0
    %3875 = vmatpush2.bf16.msra.mxu0 0
    %3876 = vmatprep.subr.bf16.mxu0 0
    %3877 = vmatpush2.bf16.msra.mxu0 0
    %3878 = vmatprep.subr.bf16.mxu0 0
    %3879 = vmatpush2.bf16.msra.mxu0 0
    %3880 = vmatprep.subr.bf16.mxu0 0
    %3881 = vmatpush2.bf16.msra.mxu0 0
    %3882 = vmatprep.subr.bf16.mxu0 0
    %3883 = vmatpush2.bf16.msra.mxu0 0
    %3884 = vmatprep.subr.bf16.mxu0 0
    %3885 = vmatpush2.bf16.msra.mxu0 0
    %3886 = vmatprep.subr.bf16.mxu0 0
    %3887 = vmatpush2.bf16.msra.mxu0 0
    %3888 = vmatprep.mubr.bf16.mxu0 0
    %3889 = vmatmul.mubr.bf16.gmra.mxu0 %v3851
    %v3890 = vpop.f32.mrf.mxu0
    %v3891 = vadd.f32 0.0, %v3890
    %v3892 = vpop.f32.mrf.mxu0
    %v3893 = vpop.f32.mrf.mxu0
    %v3894 = vpop.f32.mrf.mxu0
    %3895 = vdwg.mxu0
    %3898 = vrot.lane.b32.xlu0 %v3843, 24
    %v3899 = vpop.permute.xlu0 %3898
    %3900 = vrot.lane.b32.xlu0 %v3891, 24
    %v3901 = vpop.permute.xlu0 %3900
    %3904 = vst.msk [vmem:[#allocation2] sm:$0xff] %vm1736, %v3899
    %3905 = vst.msk [vmem:[#allocation2 + $0x8] sm:$0xff] %vm1736, %v3901
    %3906 = vrot.lane.b32.xlu0 %v2290, 100
    %v3907 = vpop.permute.xlu0 %3906
    %3908 = vrot.lane.b32.xlu0 %v2290, 68
    %v3909 = vpop.permute.xlu0 %3908
    %v3911 = vsel %vm119, %v3907, 0
    %v3914 = vsel %vm119, %v3909, 0
    %3916 = vmatprep.subr.bf16.mxu0 0
    %3917 = vmatpush1.bf16.xpose.msra.mxu0 0
    %3918 = vmatprep.subr.bf16.mxu0 0
    %3919 = vmatpush1.bf16.xpose.msra.mxu0 0
    %3920 = vmatprep.subr.bf16.mxu0 0
    %3921 = vmatpush1.bf16.xpose.msra.mxu0 0
    %3922 = vmatprep.subr.bf16.mxu0 0
    %3923 = vmatpush1.bf16.xpose.msra.mxu0 0
    %3924 = vmatprep.subr.bf16.mxu0 0
    %3925 = vmatpush1.bf16.xpose.msra.mxu0 0
    %3926 = vmatprep.subr.bf16.mxu0 0
    %3927 = vmatpush1.bf16.xpose.msra.mxu0 0
    %3928 = vmatprep.subr.bf16.mxu0 0
    %3929 = vmatpush1.bf16.xpose.msra.mxu0 0
    %3930 = vmatprep.subr.bf16.mxu0 0
    %3931 = vmatpush1.bf16.xpose.msra.mxu0 %v3914
    %3932 = vmatprep.subr.bf16.mxu0 0
    %3933 = vmatpush2.bf16.xpose.msra.mxu0 0
    %3934 = vmatprep.subr.bf16.mxu0 0
    %3935 = vmatpush2.bf16.xpose.msra.mxu0 0
    %3936 = vmatprep.subr.bf16.mxu0 0
    %3937 = vmatpush2.bf16.xpose.msra.mxu0 0
    %3938 = vmatprep.subr.bf16.mxu0 0
    %3939 = vmatpush2.bf16.xpose.msra.mxu0 0
    %3940 = vmatprep.subr.bf16.mxu0 0
    %3941 = vmatpush2.bf16.xpose.msra.mxu0 0
    %3942 = vmatprep.subr.bf16.mxu0 0
    %3943 = vmatpush2.bf16.xpose.msra.mxu0 0
    %3944 = vmatprep.subr.bf16.mxu0 0
    %3945 = vmatpush2.bf16.xpose.msra.mxu0 0
    %3946 = vmatprep.subr.bf16.mxu0 0
    %3947 = vmatpush2.bf16.xpose.msra.mxu0 0
    %3948 = vmatprep.mubr.bf16.mxu0 0
    %3949 = vmatmul.mubr.bf16.gmra.mxu0 %v3911
    %v3950 = vpop.f32.mrf.mxu0
    %v3951 = vadd.f32 0.0, %v3950
    %v3952 = vpop.f32.mrf.mxu0
    %v3953 = vpop.f32.mrf.mxu0
    %v3954 = vpop.f32.mrf.mxu0
    %3955 = vdwg.mxu0
    %3956 = vrot.lane.b32.xlu0 %v2291, 100
    %v3957 = vpop.permute.xlu0 %3956
    %3958 = vrot.lane.b32.xlu0 %v2291, 68
    %v3959 = vpop.permute.xlu0 %3958
    %v3961 = vsel %vm119, %v3957, 0
    %v3964 = vsel %vm119, %v3959, 0
    %3966 = vmatprep.subr.bf16.mxu0 0
    %3967 = vmatpush1.bf16.xpose.msra.mxu0 0
    %3968 = vmatprep.subr.bf16.mxu0 0
    %3969 = vmatpush1.bf16.xpose.msra.mxu0 0
    %3970 = vmatprep.subr.bf16.mxu0 0
    %3971 = vmatpush1.bf16.xpose.msra.mxu0 0
    %3972 = vmatprep.subr.bf16.mxu0 0
    %3973 = vmatpush1.bf16.xpose.msra.mxu0 0
    %3974 = vmatprep.subr.bf16.mxu0 0
    %3975 = vmatpush1.bf16.xpose.msra.mxu0 0
    %3976 = vmatprep.subr.bf16.mxu0 0
    %3977 = vmatpush1.bf16.xpose.msra.mxu0 0
    %3978 = vmatprep.subr.bf16.mxu0 0
    %3979 = vmatpush1.bf16.xpose.msra.mxu0 0
    %3980 = vmatprep.subr.bf16.mxu0 0
    %3981 = vmatpush1.bf16.xpose.msra.mxu0 %v3964
    %3982 = vmatprep.subr.bf16.mxu0 0
    %3983 = vmatpush2.bf16.xpose.msra.mxu0 0
    %3984 = vmatprep.subr.bf16.mxu0 0
    %3985 = vmatpush2.bf16.xpose.msra.mxu0 0
    %3986 = vmatprep.subr.bf16.mxu0 0
    %3987 = vmatpush2.bf16.xpose.msra.mxu0 0
    %3988 = vmatprep.subr.bf16.mxu0 0
    %3989 = vmatpush2.bf16.xpose.msra.mxu0 0
    %3990 = vmatprep.subr.bf16.mxu0 0
    %3991 = vmatpush2.bf16.xpose.msra.mxu0 0
    %3992 = vmatprep.subr.bf16.mxu0 0
    %3993 = vmatpush2.bf16.xpose.msra.mxu0 0
    %3994 = vmatprep.subr.bf16.mxu0 0
    %3995 = vmatpush2.bf16.xpose.msra.mxu0 0
    %3996 = vmatprep.subr.bf16.mxu0 0
    %3997 = vmatpush2.bf16.xpose.msra.mxu0 0
    %3998 = vmatprep.mubr.bf16.mxu0 0
    %3999 = vmatmul.mubr.bf16.gmra.mxu0 %v3961
    %v4000 = vpop.f32.mrf.mxu0
    %v4001 = vadd.f32 0.0, %v4000
    %v4002 = vpop.f32.mrf.mxu0
    %v4003 = vpop.f32.mrf.mxu0
    %v4004 = vpop.f32.mrf.mxu0
    %4005 = vdwg.mxu0
    %v4006 = vmul.f32 %v3951, 0.5
    %v4007 = vmul.f32 %v4001, 0.5
    %v4008 = vsel %vm217, %v4006, -inf
    %4009 = vmax.xlane.f32.xlu0 %v4008
    %v4010 = vpop.xlane.xlu0 %4009
    %v4011 = vsel %vm217, %v4007, -inf
    %4012 = vmax.xlane.f32.xlu0 %v4011
    %v4013 = vpop.xlane.xlu0 %4012
    %v4014 = vsub.f32 %v4006, %v4010
    %v4015 = vsub.f32 %v4007, %v4013
    %v4016 = vmul.f32 %v4014, 1.442695
    %v4017 = vpow.pop %v4016
    %v4018 = vmul.f32 %v4015, 1.442695
    %v4019 = vpow.pop %v4018
    %v4020 = vsel %vm217, %v4017, 0.0
    %4021 = vadd.xlane.f32.xlu0 %v4020
    %v4022 = vpop.xlane.xlu0 %4021
    %v4023 = vsel %vm217, %v4019, 0.0
    %4024 = vadd.xlane.f32.xlu0 %v4023
    %v4025 = vpop.xlane.xlu0 %4024
    %v4026 = vrcp.pop %v4022
    %v4027 = vrcp.pop %v4025
    %v4028 = vmul.f32 %v4017, %v4026
    %v4029 = vmul.f32 %v4019, %v4027
    %v4030 = vpack.c.bf16 %v4028, %v4028
    %v4031 = vpack.c.bf16 %v4029, %v4029
    %4032 = vrot.lane.b32.xlu0 %v2290, 36
    %v4033 = vpop.permute.xlu0 %4032
    %v4035 = vsel %vm217, %v4030, 0
    %v4038 = vsel %vm247, %v4033, 0
    %4040 = vmatprep.subr.bf16.mxu0 0
    %4041 = vmatpush1.bf16.msra.mxu0 0
    %4042 = vmatprep.subr.bf16.mxu0 0
    %4043 = vmatpush1.bf16.msra.mxu0 0
    %4044 = vmatprep.subr.bf16.mxu0 0
    %4045 = vmatpush1.bf16.msra.mxu0 0
    %4046 = vmatprep.subr.bf16.mxu0 0
    %4047 = vmatpush1.bf16.msra.mxu0 0
    %4048 = vmatprep.subr.bf16.mxu0 0
    %4049 = vmatpush1.bf16.msra.mxu0 0
    %4050 = vmatprep.subr.bf16.mxu0 0
    %4051 = vmatpush1.bf16.msra.mxu0 0
    %4052 = vmatprep.subr.bf16.mxu0 0
    %4053 = vmatpush1.bf16.msra.mxu0 0
    %4054 = vmatprep.subr.bf16.mxu0 0
    %4055 = vmatpush1.bf16.msra.mxu0 %v4038
    %4056 = vmatprep.subr.bf16.mxu0 0
    %4057 = vmatpush2.bf16.msra.mxu0 0
    %4058 = vmatprep.subr.bf16.mxu0 0
    %4059 = vmatpush2.bf16.msra.mxu0 0
    %4060 = vmatprep.subr.bf16.mxu0 0
    %4061 = vmatpush2.bf16.msra.mxu0 0
    %4062 = vmatprep.subr.bf16.mxu0 0
    %4063 = vmatpush2.bf16.msra.mxu0 0
    %4064 = vmatprep.subr.bf16.mxu0 0
    %4065 = vmatpush2.bf16.msra.mxu0 0
    %4066 = vmatprep.subr.bf16.mxu0 0
    %4067 = vmatpush2.bf16.msra.mxu0 0
    %4068 = vmatprep.subr.bf16.mxu0 0
    %4069 = vmatpush2.bf16.msra.mxu0 0
    %4070 = vmatprep.subr.bf16.mxu0 0
    %4071 = vmatpush2.bf16.msra.mxu0 0
    %4072 = vmatprep.mubr.bf16.mxu0 0
    %4073 = vmatmul.mubr.bf16.gmra.mxu0 %v4035
    %v4074 = vpop.f32.mrf.mxu0
    %v4075 = vadd.f32 0.0, %v4074
    %v4076 = vpop.f32.mrf.mxu0
    %v4077 = vpop.f32.mrf.mxu0
    %v4078 = vpop.f32.mrf.mxu0
    %4079 = vdwg.mxu0
    %4080 = vrot.lane.b32.xlu0 %v2291, 36
    %v4081 = vpop.permute.xlu0 %4080
    %v4083 = vsel %vm217, %v4031, 0
    %v4086 = vsel %vm247, %v4081, 0
    %4088 = vmatprep.subr.bf16.mxu0 0
    %4089 = vmatpush1.bf16.msra.mxu0 0
    %4090 = vmatprep.subr.bf16.mxu0 0
    %4091 = vmatpush1.bf16.msra.mxu0 0
    %4092 = vmatprep.subr.bf16.mxu0 0
    %4093 = vmatpush1.bf16.msra.mxu0 0
    %4094 = vmatprep.subr.bf16.mxu0 0
    %4095 = vmatpush1.bf16.msra.mxu0 0
    %4096 = vmatprep.subr.bf16.mxu0 0
    %4097 = vmatpush1.bf16.msra.mxu0 0
    %4098 = vmatprep.subr.bf16.mxu0 0
    %4099 = vmatpush1.bf16.msra.mxu0 0
    %4100 = vmatprep.subr.bf16.mxu0 0
    %4101 = vmatpush1.bf16.msra.mxu0 0
    %4102 = vmatprep.subr.bf16.mxu0 0
    %4103 = vmatpush1.bf16.msra.mxu0 %v4086
    %4104 = vmatprep.subr.bf16.mxu0 0
    %4105 = vmatpush2.bf16.msra.mxu0 0
    %4106 = vmatprep.subr.bf16.mxu0 0
    %4107 = vmatpush2.bf16.msra.mxu0 0
    %4108 = vmatprep.subr.bf16.mxu0 0
    %4109 = vmatpush2.bf16.msra.mxu0 0
    %4110 = vmatprep.subr.bf16.mxu0 0
    %4111 = vmatpush2.bf16.msra.mxu0 0
    %4112 = vmatprep.subr.bf16.mxu0 0
    %4113 = vmatpush2.bf16.msra.mxu0 0
    %4114 = vmatprep.subr.bf16.mxu0 0
    %4115 = vmatpush2.bf16.msra.mxu0 0
    %4116 = vmatprep.subr.bf16.mxu0 0
    %4117 = vmatpush2.bf16.msra.mxu0 0
    %4118 = vmatprep.subr.bf16.mxu0 0
    %4119 = vmatpush2.bf16.msra.mxu0 0
    %4120 = vmatprep.mubr.bf16.mxu0 0
    %4121 = vmatmul.mubr.bf16.gmra.mxu0 %v4083
    %v4122 = vpop.f32.mrf.mxu0
    %v4123 = vadd.f32 0.0, %v4122
    %v4124 = vpop.f32.mrf.mxu0
    %v4125 = vpop.f32.mrf.mxu0
    %v4126 = vpop.f32.mrf.mxu0
    %4127 = vdwg.mxu0
    %4130 = vrot.lane.b32.xlu0 %v4075, 28
    %v4131 = vpop.permute.xlu0 %4130
    %4132 = vrot.lane.b32.xlu0 %v4123, 28
    %v4133 = vpop.permute.xlu0 %4132
    %4136 = vst.msk [vmem:[#allocation2] sm:$0xff] %vm1969, %v4131
    %4137 = vst.msk [vmem:[#allocation2 + $0x8] sm:$0xff] %vm1969, %v4133
    %v4138 = vld [vmem:[#allocation2] sm:$0xff]
    %v4139 = vld [vmem:[#allocation2 + $0x8] sm:$0xff]
    %v4140 = vpack.c.bf16 %v4139, %v4138
    %v4141 = vlaneseq
    %v4142 = vshrl.u32 %v4141, 7
    %v4143 = vsub.s32 2, %v4142
    %v4144 = vrot.slane %v2240, %v4143
    %v4146 = vsel %vm69, %v4140, 0
    %4148 = vmatprep.subr.bf16.mxu0 0
    %4149 = vmatpush1.bf16.msra.mxu0 0
    %4150 = vmatprep.subr.bf16.mxu0 0
    %4151 = vmatpush1.bf16.msra.mxu0 0
    %4152 = vmatprep.subr.bf16.mxu0 0
    %4153 = vmatpush1.bf16.msra.mxu0 0
    %4154 = vmatprep.subr.bf16.mxu0 0
    %4155 = vmatpush1.bf16.msra.mxu0 0
    %4156 = vmatprep.subr.bf16.mxu0 0
    %4157 = vmatpush1.bf16.msra.mxu0 0
    %4158 = vmatprep.subr.bf16.mxu0 0
    %4159 = vmatpush1.bf16.msra.mxu0 0
    %4160 = vmatprep.subr.bf16.mxu0 0
    %4161 = vmatpush1.bf16.msra.mxu0 %v2218
    %4162 = vmatprep.subr.bf16.mxu0 0
    %4163 = vmatpush1.bf16.msra.mxu0 %v2217
    %4164 = vmatprep.subr.bf16.mxu0 0
    %4165 = vmatpush2.bf16.msra.mxu0 0
    %4166 = vmatprep.subr.bf16.mxu0 0
    %4167 = vmatpush2.bf16.msra.mxu0 0
    %4168 = vmatprep.subr.bf16.mxu0 0
    %4169 = vmatpush2.bf16.msra.mxu0 0
    %4170 = vmatprep.subr.bf16.mxu0 0
    %4171 = vmatpush2.bf16.msra.mxu0 0
    %4172 = vmatprep.subr.bf16.mxu0 0
    %4173 = vmatpush2.bf16.msra.mxu0 0
    %4174 = vmatprep.subr.bf16.mxu0 0
    %4175 = vmatpush2.bf16.msra.mxu0 0
    %4176 = vmatprep.subr.bf16.mxu0 0
    %4177 = vmatpush2.bf16.msra.mxu0 0
    %4178 = vmatprep.subr.bf16.mxu0 0
    %4179 = vmatpush2.bf16.msra.mxu0 0
    %4180 = vmatprep.mubr.bf16.mxu0 0
    %4181 = vmatmul.mubr.bf16.gmra.mxu0 %v4146
    %v4182 = vpop.f32.mrf.mxu0
    %v4183 = vadd.f32 %v4144, %v4182
    %v4184 = vpop.f32.mrf.mxu0
    %v4185 = vpop.f32.mrf.mxu0
    %v4186 = vadd.f32 %v4144, %v4185
    %v4187 = vpop.f32.mrf.mxu0
    %4188 = vdwg.mxu0
    %v4189 = vadd.f32 %v2203, %v4183
    %v4190 = vadd.f32 %v2204, %v4186
    %v4191 = vsel %vm69, %v4189, 0.0
    %4192 = vadd.xlane.f32.xlu0 %v4191
    %v4193 = vpop.xlane.xlu0 %4192
    %v4194 = vsel %vm69, %v4190, 0.0
    %4195 = vadd.xlane.f32.xlu0 %v4194
    %v4196 = vpop.xlane.xlu0 %4195
    %v4197 = vmul.f32 %v4193, %v2031
    %v4198 = vmul.f32 %v4196, %v2031
    %v4199 = vsub.f32 %v4189, %v4197
    %v4200 = vsub.f32 %v4190, %v4198
    %v4201 = vmul.f32 %v4199, %v4199
    %v4202 = vmul.f32 %v4200, %v4200
    %v4203 = vsel %vm69, %v4201, 0.0
    %4204 = vadd.xlane.f32.xlu0 %v4203
    %v4205 = vpop.xlane.xlu0 %4204
    %v4206 = vsel %vm69, %v4202, 0.0
    %4207 = vadd.xlane.f32.xlu0 %v4206
    %v4208 = vpop.xlane.xlu0 %4207
    %v4209 = vmul.f32 %v4205, %v2031
    %v4210 = vmul.f32 %v4208, %v2031
    %v4211 = vadd.f32 %v4209, 1e-05
    %v4212 = vadd.f32 %v4210, 1e-05
    %v4213 = vrsqrt.pop %v4211
    %v4214 = vrsqrt.pop %v4212
    %v4215 = vmul.f32 %v4199, %v4213
    %v4216 = vmul.f32 %v4200, %v4214
    %v4217 = vlaneseq
    %v4218 = vshrl.u32 %v4217, 7
    %v4219 = vsub.s32 4, %v4218
    %v4220 = vrot.slane %v2240, %v4219
    %v4221 = vmul.f32 %v4215, %v4220
    %v4222 = vmul.f32 %v4216, %v4220
    %v4223 = vlaneseq
    %v4224 = vshrl.u32 %v4223, 7
    %v4225 = vsub.s32 5, %v4224
    %v4226 = vrot.slane %v2240, %v4225
    %v4227 = vadd.f32 %v4221, %v4226
    %v4228 = vadd.f32 %v4222, %v4226
    %v4229 = vpack.c.bf16 %v4228, %v4227
    %v4230 = vlaneseq
    %v4231 = vshrl.u32 %v4230, 7
    %v4232 = vsub.s32 1, %v4231
    %v4233 = vrot.slane %v2240, %v4232
    %v4235 = vsel %vm69, %v4229, 0
    %4237 = vmatprep.subr.bf16.mxu0 0
    %4238 = vmatpush1.bf16.msra.mxu0 0
    %4239 = vmatprep.subr.bf16.mxu0 0
    %4240 = vmatpush1.bf16.msra.mxu0 0
    %4241 = vmatprep.subr.bf16.mxu0 0
    %4242 = vmatpush1.bf16.msra.mxu0 0
    %4243 = vmatprep.subr.bf16.mxu0 0
    %4244 = vmatpush1.bf16.msra.mxu0 0
    %4245 = vmatprep.subr.bf16.mxu0 0
    %4246 = vmatpush1.bf16.msra.mxu0 0
    %4247 = vmatprep.subr.bf16.mxu0 0
    %4248 = vmatpush1.bf16.msra.mxu0 0
    %4249 = vmatprep.subr.bf16.mxu0 0
    %4250 = vmatpush1.bf16.msra.mxu0 %v2225
    %4251 = vmatprep.subr.bf16.mxu0 0
    %4252 = vmatpush1.bf16.msra.mxu0 %v2224
    %4253 = vmatprep.subr.bf16.mxu0 0
    %4254 = vmatpush2.bf16.msra.mxu0 0
    %4255 = vmatprep.subr.bf16.mxu0 0
    %4256 = vmatpush2.bf16.msra.mxu0 0
    %4257 = vmatprep.subr.bf16.mxu0 0
    %4258 = vmatpush2.bf16.msra.mxu0 0
    %4259 = vmatprep.subr.bf16.mxu0 0
    %4260 = vmatpush2.bf16.msra.mxu0 0
    %4261 = vmatprep.subr.bf16.mxu0 0
    %4262 = vmatpush2.bf16.msra.mxu0 0
    %4263 = vmatprep.subr.bf16.mxu0 0
    %4264 = vmatpush2.bf16.msra.mxu0 0
    %4265 = vmatprep.subr.bf16.mxu0 0
    %4266 = vmatpush2.bf16.msra.mxu0 0
    %4267 = vmatprep.subr.bf16.mxu0 0
    %4268 = vmatpush2.bf16.msra.mxu0 0
    %4269 = vmatprep.mubr.bf16.mxu0 0
    %4270 = vmatmul.mubr.bf16.gmra.mxu0 %v4235
    %v4271 = vpop.f32.mrf.mxu0
    %v4272 = vadd.f32 %v4233, %v4271
    %v4273 = vpop.f32.mrf.mxu0
    %v4274 = vpop.f32.mrf.mxu0
    %v4275 = vadd.f32 %v4233, %v4274
    %v4276 = vpop.f32.mrf.mxu0
    %4277 = vdwg.mxu0
    %v4278 = vmax.f32 %v4272, 0.0
    %v4279 = vmax.f32 %v4275, 0.0
    %v4280 = vpack.c.bf16 %v4279, %v4278
    %v4281 = vlaneseq
    %v4282 = vshrl.u32 %v4281, 7
    %v4283 = vsub.s32 3, %v4282
    %v4284 = vrot.slane %v2240, %v4283
    %v4286 = vsel %vm2120, %v4280, 0
    %4288 = vmatprep.subr.bf16.mxu0 0
    %4289 = vmatpush1.bf16.msra.mxu0 0
    %4290 = vmatprep.subr.bf16.mxu0 0
    %4291 = vmatpush1.bf16.msra.mxu0 0
    %4292 = vmatprep.subr.bf16.mxu0 0
    %4293 = vmatpush1.bf16.msra.mxu0 0
    %4294 = vmatprep.subr.bf16.mxu0 0
    %4295 = vmatpush1.bf16.msra.mxu0 0
    %4296 = vmatprep.subr.bf16.mxu0 0
    %4297 = vmatpush1.bf16.msra.mxu0 %v2238
    %4298 = vmatprep.subr.bf16.mxu0 0
    %4299 = vmatpush1.bf16.msra.mxu0 %v2237
    %4300 = vmatprep.subr.bf16.mxu0 0
    %4301 = vmatpush1.bf16.msra.mxu0 %v2236
    %4302 = vmatprep.subr.bf16.mxu0 0
    %4303 = vmatpush1.bf16.msra.mxu0 %v2235
    %4304 = vmatprep.subr.bf16.mxu0 0
    %4305 = vmatpush2.bf16.msra.mxu0 0
    %4306 = vmatprep.subr.bf16.mxu0 0
    %4307 = vmatpush2.bf16.msra.mxu0 0
    %4308 = vmatprep.subr.bf16.mxu0 0
    %4309 = vmatpush2.bf16.msra.mxu0 0
    %4310 = vmatprep.subr.bf16.mxu0 0
    %4311 = vmatpush2.bf16.msra.mxu0 0
    %4312 = vmatprep.subr.bf16.mxu0 0
    %4313 = vmatpush2.bf16.msra.mxu0 0
    %4314 = vmatprep.subr.bf16.mxu0 0
    %4315 = vmatpush2.bf16.msra.mxu0 0
    %4316 = vmatprep.subr.bf16.mxu0 0
    %4317 = vmatpush2.bf16.msra.mxu0 0
    %4318 = vmatprep.subr.bf16.mxu0 0
    %4319 = vmatpush2.bf16.msra.mxu0 0
    %4320 = vmatprep.mubr.bf16.mxu0 0
    %4321 = vmatmul.mubr.bf16.gmra.mxu0 %v4286
    %v4322 = vpop.f32.mrf.mxu0
    %v4323 = vadd.f32 %v4284, %v4322
    %v4324 = vpop.f32.mrf.mxu0
    %v4325 = vpop.f32.mrf.mxu0
    %v4326 = vadd.f32 %v4284, %v4325
    %v4327 = vpop.f32.mrf.mxu0
    %4328 = vdwg.mxu0
    %v4329 = vadd.f32 %v4227, %v4323
    %v4330 = vadd.f32 %v4228, %v4326
    %v4331 = vsel %vm69, %v4329, 0.0
    %4332 = vadd.xlane.f32.xlu0 %v4331
    %v4333 = vpop.xlane.xlu0 %4332
    %v4334 = vsel %vm69, %v4330, 0.0
    %4335 = vadd.xlane.f32.xlu0 %v4334
    %v4336 = vpop.xlane.xlu0 %4335
    %v4337 = vmul.f32 %v4333, %v2031
    %v4338 = vmul.f32 %v4336, %v2031
    %v4339 = vsub.f32 %v4329, %v4337
    %v4340 = vsub.f32 %v4330, %v4338
    %v4341 = vmul.f32 %v4339, %v4339
    %v4342 = vmul.f32 %v4340, %v4340
    %v4343 = vsel %vm69, %v4341, 0.0
    %4344 = vadd.xlane.f32.xlu0 %v4343
    %v4345 = vpop.xlane.xlu0 %4344
    %v4346 = vsel %vm69, %v4342, 0.0
    %4347 = vadd.xlane.f32.xlu0 %v4346
    %v4348 = vpop.xlane.xlu0 %4347
    %v4349 = vmul.f32 %v4345, %v2031
    %v4350 = vmul.f32 %v4348, %v2031
    %v4351 = vadd.f32 %v4349, 1e-05
    %v4352 = vadd.f32 %v4350, 1e-05
    %v4353 = vrsqrt.pop %v4351
    %v4354 = vrsqrt.pop %v4352
    %v4355 = vmul.f32 %v4339, %v4353
    %v4356 = vmul.f32 %v4340, %v4354
    %v4357 = vlaneseq
    %v4358 = vshrl.u32 %v4357, 7
    %v4359 = vsub.s32 6, %v4358
    %v4360 = vrot.slane %v2240, %v4359
    %v4361 = vmul.f32 %v4355, %v4360
    %v4362 = vmul.f32 %v4356, %v4360
    %v4363 = vlaneseq
    %v4364 = vshrl.u32 %v4363, 7
    %v4365 = vsub.s32 7, %v4364
    %v4366 = vrot.slane %v2240, %v4365
    %v4367 = vadd.f32 %v4361, %v4366
    %v4368 = vadd.f32 %v4362, %v4366
    %v4369 = vpack.c.bf16 %v4367, %v4367
    %v4370 = vpack.c.bf16 %v4368, %v4368
    %v4371 = vld [vmem:[%s6] sm:$0xff]
    %v4372 = vld [vmem:[%s6 + $0x8] sm:$0xff]
    %v4373 = vld [vmem:[%s6 + $0x10] sm:$0xff]
    %v4374 = vld [vmem:[%s6 + $0x18] sm:$0xff]
    %v4375 = vpack.c.bf16 %v4372, %v4371
    %v4376 = vpack.c.bf16 %v4374, %v4373
    %v4377 = vld [vmem:[%s7] sm:$0x1]
    %v4379 = vlaneseq
    %v4380 = vshrl.u32 %v4379, 7
    %v4381 = vsub.s32 0, %v4380
    %v4382 = vrot.slane %v4377, %v4381
    %v4386 = vunpack.c.l.b16 %v4369
    %v4387 = vunpack.c.l.b16 %v4370
    %v4388 = vrot.slane %v4386, 7
    %v4389 = vrot.slane %v4387, 6
    %vm4390 = vcmask 1041409
    %v4391 = vsel %vm4390, %v4389, %v4388
    %v4392 = vpack.c.b16 %v4391, %v4391
    %v4394 = vsel %vm69, %v4392, 0
    %4396 = vmatprep.subr.bf16.mxu0 0
    %4397 = vmatpush1.bf16.msra.mxu0 0
    %4398 = vmatprep.subr.bf16.mxu0 0
    %4399 = vmatpush1.bf16.msra.mxu0 0
    %4400 = vmatprep.subr.bf16.mxu0 0
    %4401 = vmatpush1.bf16.msra.mxu0 0
    %4402 = vmatprep.subr.bf16.mxu0 0
    %4403 = vmatpush1.bf16.msra.mxu0 0
    %4404 = vmatprep.subr.bf16.mxu0 0
    %4405 = vmatpush1.bf16.msra.mxu0 0
    %4406 = vmatprep.subr.bf16.mxu0 0
    %4407 = vmatpush1.bf16.msra.mxu0 0
    %4408 = vmatprep.subr.bf16.mxu0 0
    %4409 = vmatpush1.bf16.msra.mxu0 %v4376
    %4410 = vmatprep.subr.bf16.mxu0 0
    %4411 = vmatpush1.bf16.msra.mxu0 %v4375
    %4412 = vmatprep.subr.bf16.mxu0 0
    %4413 = vmatpush2.bf16.msra.mxu0 0
    %4414 = vmatprep.subr.bf16.mxu0 0
    %4415 = vmatpush2.bf16.msra.mxu0 0
    %4416 = vmatprep.subr.bf16.mxu0 0
    %4417 = vmatpush2.bf16.msra.mxu0 0
    %4418 = vmatprep.subr.bf16.mxu0 0
    %4419 = vmatpush2.bf16.msra.mxu0 0
    %4420 = vmatprep.subr.bf16.mxu0 0
    %4421 = vmatpush2.bf16.msra.mxu0 0
    %4422 = vmatprep.subr.bf16.mxu0 0
    %4423 = vmatpush2.bf16.msra.mxu0 0
    %4424 = vmatprep.subr.bf16.mxu0 0
    %4425 = vmatpush2.bf16.msra.mxu0 0
    %4426 = vmatprep.subr.bf16.mxu0 0
    %4427 = vmatpush2.bf16.msra.mxu0 0
    %4428 = vmatprep.mubr.bf16.mxu0 0
    %4429 = vmatmul.mubr.bf16.gmra.mxu0 %v4394
    %v4430 = vpop.f32.mrf.mxu0
    %v4431 = vadd.f32 %v4382, %v4430
    %v4432 = vpop.f32.mrf.mxu0
    %v4433 = vpop.f32.mrf.mxu0
    %v4434 = vpop.f32.mrf.mxu0
    %4435 = vdwg.mxu0
    %vm4436 = vcmask 74752
    %4437 = vst.msk [vmem:[#allocation3] sm:$0x3] %vm4436, %v4431
    // Predicated region
    $region34: #{tpu_custom_call.1} parent=1 // pred_check
      _
    $region35: #{tpu_custom_call.1} parent=1 // pred_check_branch
      %4439 = sbr.rel (0) target = $region37
    $region36: #{tpu_custom_call.1} parent=1 // pred_region
      %s4441 = ssub.s32 32, 32
      %4442 = vsyncadd [#allocation4], %s4441
      %s4444 = sshll.u32 [#allocation3], 4
      %s4445 = int_to_ptr.vmem [resolvable:$true] %s4444
      %4447 = dma.vmem_to_hbm [thread:$0]  %s4445, 32, %s8, [#allocation4]
    $region37: #{tpu_custom_call.1} parent=1 // pred_fallthru
      _
    // Predicated region
    $region38: #{tpu_custom_call.1} parent=1 // pred_check
      _
    $region39: #{tpu_custom_call.1} parent=1 // pred_check_branch
      %4449 = sbr.rel (0) target = $region41
    $region40: #{tpu_custom_call.1} parent=1 // pred_region
      %4450 = dma.done [#allocation4], 32
    $region41: #{tpu_custom_call.1} parent=1 // pred_fallthru
      _
    %4451 = vsyncpa [#allocation4], 1

</llo_original>
